<compile_context>
chip_gen: v6e
topology: v6e:2x2x1
jax: 0.10.0
libtpu: 0.0.40
codegen_flags: <defaults>
</compile_context>

<pallas_src>
import functools

import jax
import jax.numpy as jnp
from jax.experimental import pallas as pl
from jax.experimental.pallas import tpu as pltpu

BN_EPS = 1e-5
LANE = 128
_GROUP_UNROLL_CAP = 16  # max output channels unrolled per grid step in the grouped kernel


# ---------------------------------------------------------------------------
# Small helpers
# ---------------------------------------------------------------------------
def _round_up(v, m):
    return -(-v // m) * m


def _round_down(v, m):
    return (v // m) * m


@functools.lru_cache(maxsize=None)
def _vmem_budgets():
    """Generation-aware (tile_budget_bytes, vmem_limit_bytes)."""
    try:
        cap = int(pltpu.get_tpu_info().vmem_capacity_bytes)
    except Exception:
        cap = 64 * 1024 * 1024
    if cap >= 100 * 1024 * 1024:                       # v5e / v6e: 128 MiB physical VMEM
        return 64 * 1024 * 1024, 96 * 1024 * 1024
    return 40 * 1024 * 1024, 48 * 1024 * 1024          # v7x: 64 MiB physical VMEM


def _fold_bn(sums, count, gamma, beta):
    """sums: [Cout, 2] (sum, sum-of-squares) -> per-channel (scale, shift) for BN."""
    # TODO(synk): E[x^2]-E[x]^2 in f32 can cancel for large-mean activations; a shifted /
    # Welford-style partial would be tighter if needed.
    mean = sums[:, 0] / count
    var = jnp.maximum(sums[:, 1] / count - mean * mean, 0.0)
    inv_std = jax.lax.rsqrt(var + BN_EPS)
    scale = gamma.astype(jnp.float32) * inv_std
    shift = beta.astype(jnp.float32) - mean * scale
    return scale, shift


# ---------------------------------------------------------------------------
# Pallas kernels: dense 1x1 pointwise conv  ([Cout, Cin] @ [Cin, THW])
# ---------------------------------------------------------------------------
def _pw_body(w_ref, x_ref):
    """One tile of W @ x in f32. Spatial (lanes) on the last dim, no channel padding."""
    cout, cin = w_ref.shape
    if cin >= 16 and cout >= 16:
        # MXU path (bf16 inputs, f32 accumulation) for larger channel counts.
        return jnp.dot(w_ref[...].astype(jnp.bfloat16), x_ref[...].astype(jnp.bfloat16),
                       preferred_element_type=jnp.float32)
    # Tiny-channel VPU path: explicit outer-product accumulation (robust for Cin<8).
    w = w_ref[...].astype(jnp.float32)
    x = x_ref[...].astype(jnp.float32)
    acc = w[:, 0:1] * x[0:1, :]
    for i in range(1, cin):
        acc = acc + w[:, i:i + 1] * x[i:i + 1, :]
    return acc


def _pw_stats_kernel(w_ref, x_ref, part_ref):
    """Pass 1 (bn_act): conv tile + per-output-channel partial (sum, sumsq)."""
    y = _pw_body(w_ref, x_ref)                        # [Cout, THW] f32
    part_ref[:, 0:1] = jnp.sum(y, axis=1, keepdims=True)
    part_ref[:, 1:2] = jnp.sum(y * y, axis=1, keepdims=True)


def _pw_act_kernel(w_ref, sa_ref, x_ref, o_ref):
    """Pass 2: conv tile (BN scale folded into W) + shift + PReLU (alpha=1 => identity)."""
    y = _pw_body(w_ref, x_ref)                        # [Cout, THW] f32
    sa = sa_ref[...]                                  # [Cout, 2] = (shift, alpha)
    y = y + sa[:, 0:1]
    o_ref[...] = jnp.where(y > 0, y, sa[:, 1:2] * y).astype(o_ref.dtype)


# ---------------------------------------------------------------------------
# Pallas kernels: grouped conv with 1 input channel per group (depthwise-style)
# (covers FEM's conv_dws1 [1x1, groups=C/2] and branch3 depthwise 3x3)
# ---------------------------------------------------------------------------
def _group_stats_kernel(w_ref, x_ref, part_ref, *, cb, r, kh, kw, ho, wo):
    """Direct kh*kw VPU conv + per-channel partial (sum, sumsq) over the output plane."""
    b = pl.program_id(1)
    for k in range(cb):                               # cb output channels per grid step
        o = b * cb + k                                # global output channel (traced)
        ci = k // r                                   # within-block input channel (static)
        acc = w_ref[o, 0] * x_ref[ci, 0:ho, 0:wo].astype(jnp.float32)
        for t in range(1, kh * kw):
            i, j = divmod(t, kw)
            acc = acc + w_ref[o, t] * x_ref[ci, i:i + ho, j:j + wo].astype(jnp.float32)
        part_ref[k, 0:1, :] = jnp.sum(acc, axis=0, keepdims=True)
        part_ref[k, 1:2, :] = jnp.sum(acc * acc, axis=0, keepdims=True)


def _group_act_kernel(w_ref, sa_ref, x_ref, o_ref, *, cb, r, kh, kw, ho, wo):
    """Direct kh*kw VPU conv (BN scale folded into weights) + shift + PReLU."""
    b = pl.program_id(1)
    for k in range(cb):
        o = b * cb + k
        ci = k // r
        acc = w_ref[o, 0] * x_ref[ci, 0:ho, 0:wo].astype(jnp.float32)
        for t in range(1, kh * kw):
            i, j = divmod(t, kw)
            acc = acc + w_ref[o, t] * x_ref[ci, i:i + ho, j:j + wo].astype(jnp.float32)
        y = acc + sa_ref[o, 0]
        alpha = sa_ref[o, 1]
        o_ref[k, :, :] = jnp.where(y > 0, y, alpha * y).astype(o_ref.dtype)


# ---------------------------------------------------------------------------
# conv_block wrappers
# ---------------------------------------------------------------------------
def _pick_group_cb(Cout, r):
    cap = min(Cout, max(r, _GROUP_UNROLL_CAP))
    for cb in range(cap, r - 1, -1):
        if Cout % cb == 0 and cb % r == 0:
            return cb
    return r


def grouped_conv_block(x, weight, gamma, beta, alpha, *, padding=(0, 0),
                       bn_act=True, out_dtype=jnp.bfloat16):
    """Grouped conv with Cin_per_group == 1 (FEM's dws/depthwise convs), stride 1,
    + optional BatchNorm (training-mode batch stats) + PReLU. Direct VPU kernel."""
    N, Cin, H, W = x.shape
    Cout, cin_g, kh, kw = weight.shape
    assert cin_g == 1 and Cout % Cin == 0
    r = Cout // Cin                                   # output channels per group
    ph, pw = padding
    Hp, Wp = H + 2 * ph, W + 2 * pw
    Ho, Wo = Hp - kh + 1, Wp - kw + 1

    xp = jnp.pad(x.astype(jnp.bfloat16), ((0, 0), (0, 0), (ph, ph), (pw, pw)))
    w2 = weight.reshape(Cout, kh * kw).astype(jnp.float32)
    # TODO(synk): the [Cout, kh*kw] SMEM weight table pads to [Cout, 128] words; for very
    # large channel counts keep it in VMEM instead.

    cb = _pick_group_cb(Cout, r)
    nb = Cout // cb
    grid = (N, nb)
    _, vmem_limit = _vmem_budgets()
    cparams = pltpu.CompilerParams(
        dimension_semantics=("parallel", "parallel"),
        vmem_limit_bytes=vmem_limit)
    smem_spec = pl.BlockSpec(memory_space=pltpu.MemorySpace.SMEM)
    x_spec = pl.BlockSpec((None, cb // r, Hp, Wp), lambda n, b: (n, b, 0, 0))
    conv_flops = 2 * N * Cout * Ho * Wo * kh * kw
    x_bytes = N * Cin * Hp * Wp * 2

    if bn_act:
        part = pl.pallas_call(
            functools.partial(_group_stats_kernel, cb=cb, r=r, kh=kh, kw=kw, ho=Ho, wo=Wo),
            out_shape=jax.ShapeDtypeStruct((N, Cout, 2, Wo), jnp.float32),
            grid_spec=pltpu.PrefetchScalarGridSpec(
                num_scalar_prefetch=0, grid=grid,
                in_specs=[smem_spec, x_spec],
                out_specs=pl.BlockSpec((None, cb, 2, Wo), lambda n, b: (n, b, 0, 0))),
            compiler_params=cparams,
            cost_estimate=pl.CostEstimate(flops=conv_flops + 3 * N * Cout * Ho * Wo,
                                          transcendentals=0,
                                          bytes_accessed=x_bytes + N * Cout * 2 * Wo * 4),
        )(w2, xp)
        sums = jnp.sum(part, axis=(0, 3))             # [Cout, 2]
        scale, shift = _fold_bn(sums, N * Ho * Wo, gamma, beta)
        w_run = w2 * scale[:, None]                   # fold BN scale into the taps
        sa = jnp.stack([shift, alpha.astype(jnp.float32)], axis=1)
    else:
        w_run = w2
        sa = jnp.stack([jnp.zeros((Cout,), jnp.float32),
                        jnp.ones((Cout,), jnp.float32)], axis=1)   # alpha=1 => identity

    out = pl.pallas_call(
        functools.partial(_group_act_kernel, cb=cb, r=r, kh=kh, kw=kw, ho=Ho, wo=Wo),
        out_shape=jax.ShapeDtypeStruct((N, Cout, Ho, Wo), out_dtype),
        grid_spec=pltpu.PrefetchScalarGridSpec(
            num_scalar_prefetch=0, grid=grid,
            in_specs=[smem_spec, smem_spec, x_spec],
            out_specs=pl.BlockSpec((None, cb, Ho, Wo), lambda n, b: (n, b, 0, 0))),
        compiler_params=cparams,
        cost_estimate=pl.CostEstimate(
            flops=conv_flops + 3 * N * Cout * Ho * Wo, transcendentals=0,
            bytes_accessed=x_bytes + N * Cout * Ho * Wo * jnp.dtype(out_dtype).itemsize),
    )(w_run, sa, xp)
    return out


def _pick_pw_tile(HW, Cin, Cout, out_bytes, tile_budget):
    HWp = _round_up(HW, LANE)
    per_col = 2 * (Cin * 2 + Cout * out_bytes)        # double-buffered in/out per lane column
    thw = max(LANE, _round_down(tile_budget // max(per_col, 1), LANE))
    thw = min(thw, HWp)
    if HWp >= 2 * LANE:                               # keep >=2 spatial tiles (v7x 2 TCs)
        thw = min(thw, max(LANE, _round_down(HWp // 2, LANE)))
    nT = -(-HWp // thw)
    return thw, nT * thw, nT


def pointwise_conv_block(x, weight, gamma, beta, alpha, *, bn_act, out_dtype):
    """Dense 1x1 conv (+ optional BN batch-stats + PReLU). [Cout,Cin] @ [Cin,THW] with the
    spatial axis lane-dense; channels are never padded to 128."""
    N, Cin, H, W = x.shape
    Cout = weight.shape[0]
    w2 = weight.reshape(Cout, Cin).astype(jnp.float32)
    HW = H * W
    out_bytes = jnp.dtype(out_dtype).itemsize
    tile_budget, vmem_limit = _vmem_budgets()
    thw, HWp, nT = _pick_pw_tile(HW, Cin, Cout, out_bytes, tile_budget)

    xf = x.reshape(N, Cin, HW).astype(jnp.bfloat16)
    if HWp > HW:
        # Zero padding keeps the statistics exact: bias-free conv => padded columns are 0.
        xf = jnp.pad(xf, ((0, 0), (0, 0), (0, HWp - HW)))

    grid = (N, nT)
    cparams = pltpu.CompilerParams(
        dimension_semantics=("parallel", "parallel"),
        vmem_limit_bytes=vmem_limit)
    x_spec = pl.BlockSpec((None, Cin, thw), lambda n, t: (n, 0, t))
    w_spec = pl.BlockSpec((Cout, Cin), lambda n, t: (0, 0))
    sa_spec = pl.BlockSpec((Cout, 2), lambda n, t: (0, 0))
    o_spec = pl.BlockSpec((None, Cout, thw), lambda n, t: (n, 0, t))
    mm_flops = 2 * N * Cout * Cin * HWp
    x_bytes = N * Cin * HWp * 2

    if bn_act:
        part = pl.pallas_call(
            _pw_stats_kernel,
            out_shape=jax.ShapeDtypeStruct((N, nT, Cout, 2), jnp.float32),
            grid_spec=pltpu.PrefetchScalarGridSpec(
                num_scalar_prefetch=0, grid=grid,
                in_specs=[w_spec, x_spec],
                out_specs=pl.BlockSpec((None, None, Cout, 2), lambda n, t: (n, t, 0, 0))),
            compiler_params=cparams,
            cost_estimate=pl.CostEstimate(flops=mm_flops + 3 * N * Cout * HWp,
                                          transcendentals=0,
                                          bytes_accessed=x_bytes + N * nT * Cout * 2 * 4),
        )(w2, xf)
        sums = jnp.sum(part, axis=(0, 1))             # [Cout, 2]
        scale, shift = _fold_bn(sums, N * HW, gamma, beta)
        w_run = w2 * scale[:, None]
        sa = jnp.stack([shift, alpha.astype(jnp.float32)], axis=1)
    else:
        w_run = w2
        sa = jnp.stack([jnp.zeros((Cout,), jnp.float32),
                        jnp.ones((Cout,), jnp.float32)], axis=1)

    out = pl.pallas_call(
        _pw_act_kernel,
        out_shape=jax.ShapeDtypeStruct((N, Cout, HWp), out_dtype),
        grid_spec=pltpu.PrefetchScalarGridSpec(
            num_scalar_prefetch=0, grid=grid,
            in_specs=[w_spec, sa_spec, x_spec],
            out_specs=o_spec),
        compiler_params=cparams,
        cost_estimate=pl.CostEstimate(flops=mm_flops + 3 * N * Cout * HWp,
                                      transcendentals=0,
                                      bytes_accessed=x_bytes + N * Cout * HWp * out_bytes),
    )(w_run, sa, xf)
    if HWp > HW:
        out = out[:, :, :HW]
    return out.reshape(N, Cout, H, W)


# ---------------------------------------------------------------------------
# FEM forward (Pallas conv_blocks + plain-JAX glue)
# ---------------------------------------------------------------------------
def _maxpool_3x3_s1_p1(x):
    # nn.MaxPool2d(kernel_size=3, stride=1, padding=1); -inf init => padded cells never win.
    return jax.lax.reduce_window(
        x, jnp.array(-jnp.inf, x.dtype), jax.lax.max,
        window_dimensions=(1, 1, 3, 3), window_strides=(1, 1, 1, 1),
        padding=((0, 0), (0, 0), (1, 1), (1, 1)))


def channel_shuffle(x, groups):
    N, C, H, W = x.shape
    x = x.reshape(N, groups, C // groups, H, W)
    x = jnp.transpose(x, (0, 2, 1, 3, 4))
    return x.reshape(N, C, H, W)


@jax.jit
def fem_forward(x, params):
    """FEM.forward with every conv_block running as Pallas TPU kernels (NCHW end-to-end)."""
    N, C, H, W = x.shape
    half = C // 2
    x0, x1 = x[:, :half], x[:, half:]

    def branch12(xi):
        # NB: the original forward reuses conv_dws1 / maxpool1 / conv_pw1 for BOTH chunks.
        o = grouped_conv_block(xi, params["dws1_w"], params["dws1_gamma"],
                               params["dws1_beta"], params["dws1_alpha"],
                               padding=(0, 0), bn_act=True, out_dtype=jnp.bfloat16)
        o = _maxpool_3x3_s1_p1(o)
        o = pointwise_conv_block(o, params["pw1_w"], None, None, None,
                                 bn_act=False, out_dtype=jnp.float32)
        return o

    out = branch12(x0) + branch12(x1)
    out = jax.nn.softmax(out.astype(jnp.float32), axis=1)   # softmax over channels per pixel
    out = out * x + x                                        # .expand(...) is a no-op
    out = channel_shuffle(out, groups=2)

    b3 = grouped_conv_block(x, params["b3dw_w"], params["b3dw_gamma"],
                            params["b3dw_beta"], params["b3dw_alpha"],
                            padding=(1, 1), bn_act=True, out_dtype=jnp.bfloat16)
    b3 = pointwise_conv_block(b3, params["b3pw_w"], params["b3pw_gamma"],
                              params["b3pw_beta"], params["b3pw_alpha"],
                              bn_act=True, out_dtype=jnp.float32)
    return b3 + out


# ---------------------------------------------------------------------------
# Pure-JAX reference (f32) for verification
# ---------------------------------------------------------------------------
def _ref_conv_block(x, w, gamma, beta, alpha, *, stride, padding, dilation=(1, 1),
                    groups=1, bn_act=False):
    y = jax.lax.conv_general_dilated(
        x, w, window_strides=stride,
        padding=[(padding[0], padding[0]), (padding[1], padding[1])],
        rhs_dilation=dilation, dimension_numbers=("NCHW", "OIHW", "NCHW"),
        feature_group_count=groups)
    if bn_act:
        mean = y.mean(axis=(0, 2, 3), keepdims=True)
        var = y.var(axis=(0, 2, 3), keepdims=True)        # biased, like BN training mode
        yn = (y - mean) * jax.lax.rsqrt(var + BN_EPS)
        yn = yn * gamma.reshape(1, -1, 1, 1) + beta.reshape(1, -1, 1, 1)
        y = jnp.where(yn > 0, yn, alpha.reshape(1, -1, 1, 1) * yn)
    return y


def fem_reference(x, params):
    N, C, H, W = x.shape
    half = C // 2
    x0, x1 = x[:, :half], x[:, half:]

    def branch12(xi):
        o = _ref_conv_block(xi, params["dws1_w"], params["dws1_gamma"],
                            params["dws1_beta"], params["dws1_alpha"],
                            stride=(1, 1), padding=(0, 0), groups=half, bn_act=True)
        o = _maxpool_3x3_s1_p1(o)
        o = _ref_conv_block(o, params["pw1_w"], None, None, None,
                            stride=(1, 1), padding=(0, 0), groups=1, bn_act=False)
        return o

    out = branch12(x0) + branch12(x1)
    out = jax.nn.softmax(out, axis=1)
    out = out * x + x
    out = channel_shuffle(out, groups=2)

    b3 = _ref_conv_block(x, params["b3dw_w"], params["b3dw_gamma"],
                         params["b3dw_beta"], params["b3dw_alpha"],
                         stride=(1, 1), padding=(1, 1), groups=C, bn_act=True)
    b3 = _ref_conv_block(b3, params["b3pw_w"], params["b3pw_gamma"],
                         params["b3pw_beta"], params["b3pw_alpha"],
                         stride=(1, 1), padding=(0, 0), groups=1, bn_act=True)
    return b3 + out


# ---------------------------------------------------------------------------
# Demo / self-check
# ---------------------------------------------------------------------------
if __name__ == "__main__":
    key = jax.random.PRNGKey(0)
    ks = jax.random.split(key, 12)

    N, C, H, W = 2, 4, 16, 16          # FEM(in_channels=4), small demo shapes
    x = jax.random.normal(ks[0], (N, C, H, W), jnp.float32)

    params = {
        # conv_dws1: Conv2d(C//2 -> C, 1x1, groups=C//2, bias=False) + BN(C) + PReLU(C)
        "dws1_w": 0.5 * jax.random.normal(ks[1], (C, 1, 1, 1), jnp.float32),
        "dws1_gamma": 1.0 + 0.1 * jax.random.normal(ks[2], (C,), jnp.float32),
        "dws1_beta": 0.1 * jax.random.normal(ks[3], (C,), jnp.float32),
        "dws1_alpha": 0.25 * jnp.ones((C,), jnp.float32),
        # conv_pw1: Conv2d(C -> C, 1x1, bias=False), bn_act=False
        "pw1_w": 0.3 * jax.random.normal(ks[4], (C, C, 1, 1), jnp.float32),
        # branch3[0]: depthwise Conv2d(C -> C, 3x3, pad=1, groups=C) + BN + PReLU
        "b3dw_w": 0.3 * jax.random.normal(ks[5], (C, 1, 3, 3), jnp.float32),
        "b3dw_gamma": 1.0 + 0.1 * jax.random.normal(ks[6], (C,), jnp.float32),
        "b3dw_beta": 0.1 * jax.random.normal(ks[7], (C,), jnp.float32),
        "b3dw_alpha": 0.25 * jnp.ones((C,), jnp.float32),
        # branch3[1]: Conv2d(C -> C, 1x1) + BN + PReLU
        "b3pw_w": 0.3 * jax.random.normal(ks[8], (C, C, 1, 1), jnp.float32),
        "b3pw_gamma": 1.0 + 0.1 * jax.random.normal(ks[9], (C,), jnp.float32),
        "b3pw_beta": 0.1 * jax.random.normal(ks[10], (C,), jnp.float32),
        "b3pw_alpha": 0.25 * jnp.ones((C,), jnp.float32),
    }

    out = fem_forward(x, params)
    jax.block_until_ready(out)

    ref = fem_reference(x, params)
    assert out.shape == ref.shape == (N, C, H, W)
    max_err = float(jnp.max(jnp.abs(out - ref)))
    mean_err = float(jnp.mean(jnp.abs(out - ref)))
    # bf16 intermediate activations through two stacked batch-norms => loose bound.
    assert max_err < 1e-1 and mean_err < 2e-2, (max_err, mean_err)
    print("KERNEL_OK")
</pallas_src>

<mosaic_0001>
module attributes {stable_mosaic.version = 11 : i64} {
  func.func @_group_stats_kernel(%arg0: i32, %arg1: i32, %arg2: memref<4x1xf32, #tpu.memory_space<smem>>, %arg3: memref<1x2x16x16xbf16, #tpu.memory_space<vmem>>, %arg4: memref<1x4x2x16xf32, #tpu.memory_space<vmem>>) attributes {dimension_semantics = [#tpu.dimension_semantics<parallel>, #tpu.dimension_semantics<parallel>], iteration_bounds = array<i64: 2, 1>, scalar_prefetch = 0 : i64, scratch_operands = 0 : i64, tpu.core_type = #tpu.core_type<tc>, window_params = [{transform_indices = @transform_0, window_bounds = array<i64: 4, 1>}, {transform_indices = @transform_1, window_bounds = array<i64: 1, 2, 16, 16>}, {transform_indices = @transform_2, window_bounds = array<i64: 1, 4, 2, 16>}]} {
    %c4_i32 = arith.constant 4 : i32
    %0 = arith.muli %arg1, %c4_i32 : i32
    %c0_i32 = arith.constant 0 : i32
    %1 = arith.addi %0, %c0_i32 : i32
    %2 = arith.index_cast %1 : i32 to index
    %c0 = arith.constant 0 : index
    %3 = memref.load %arg2[%2, %c0] : memref<4x1xf32, #tpu.memory_space<smem>>
    %c0_0 = arith.constant 0 : index
    %c0_1 = arith.constant 0 : index
    %c0_2 = arith.constant 0 : index
    %c0_3 = arith.constant 0 : index
    %4 = vector.load %arg3[%c0_0, %c0_1, %c0_2, %c0_3] : memref<1x2x16x16xbf16, #tpu.memory_space<vmem>>, vector<1x1x16x16xbf16>
    %5 = vector.shape_cast %4 : vector<1x1x16x16xbf16> to vector<16x16xbf16>
    %6 = arith.extf %5 : vector<16x16xbf16> to vector<16x16xf32>
    %7 = vector.broadcast %3 : f32 to vector<16x16xf32>
    %8 = arith.mulf %7, %6 : vector<16x16xf32>
    %cst = arith.constant dense<0.000000e+00> : vector<16xf32>
    %9 = vector.multi_reduction <add>, %8, %cst [0] : vector<16x16xf32> to vector<16xf32>
    %10 = vector.shape_cast %9 : vector<16xf32> to vector<1x16xf32>
    %c0_4 = arith.constant 0 : index
    %c0_5 = arith.constant 0 : index
    %c0_6 = arith.constant 0 : index
    %c0_7 = arith.constant 0 : index
    %11 = vector.load %arg4[%c0_4, %c0_5, %c0_6, %c0_7] : memref<1x4x2x16xf32, #tpu.memory_space<vmem>>, vector<1x1x1x16xf32>
    %12 = vector.shape_cast %11 : vector<1x1x1x16xf32> to vector<1x16xf32>
    %13 = vector.shape_cast %10 : vector<1x16xf32> to vector<1x1x1x16xf32>
    tpu.vector_store %arg4[%c0_4, %c0_5, %c0_6, %c0_7], %13 {strides = array<i32>} : memref<1x4x2x16xf32, #tpu.memory_space<vmem>>, vector<1x1x1x16xf32>,
    %14 = arith.mulf %8, %8 : vector<16x16xf32>
    %cst_8 = arith.constant dense<0.000000e+00> : vector<16xf32>
    %15 = vector.multi_reduction <add>, %14, %cst_8 [0] : vector<16x16xf32> to vector<16xf32>
    %16 = vector.shape_cast %15 : vector<16xf32> to vector<1x16xf32>
    %c0_9 = arith.constant 0 : index
    %c0_10 = arith.constant 0 : index
    %c1 = arith.constant 1 : index
    %c0_11 = arith.constant 0 : index
    %17 = vector.load %arg4[%c0_9, %c0_10, %c1, %c0_11] : memref<1x4x2x16xf32, #tpu.memory_space<vmem>>, vector<1x1x1x16xf32>
    %18 = vector.shape_cast %17 : vector<1x1x1x16xf32> to vector<1x16xf32>
    %19 = vector.shape_cast %16 : vector<1x16xf32> to vector<1x1x1x16xf32>
    tpu.vector_store %arg4[%c0_9, %c0_10, %c1, %c0_11], %19 {strides = array<i32>} : memref<1x4x2x16xf32, #tpu.memory_space<vmem>>, vector<1x1x1x16xf32>,
    %c4_i32_12 = arith.constant 4 : i32
    %20 = arith.muli %arg1, %c4_i32_12 : i32
    %c1_i32 = arith.constant 1 : i32
    %21 = arith.addi %20, %c1_i32 : i32
    %22 = arith.index_cast %21 : i32 to index
    %c0_13 = arith.constant 0 : index
    %23 = memref.load %arg2[%22, %c0_13] : memref<4x1xf32, #tpu.memory_space<smem>>
    %c0_14 = arith.constant 0 : index
    %c0_15 = arith.constant 0 : index
    %c0_16 = arith.constant 0 : index
    %c0_17 = arith.constant 0 : index
    %24 = vector.load %arg3[%c0_14, %c0_15, %c0_16, %c0_17] : memref<1x2x16x16xbf16, #tpu.memory_space<vmem>>, vector<1x1x16x16xbf16>
    %25 = vector.shape_cast %24 : vector<1x1x16x16xbf16> to vector<16x16xbf16>
    %26 = arith.extf %25 : vector<16x16xbf16> to vector<16x16xf32>
    %27 = vector.broadcast %23 : f32 to vector<16x16xf32>
    %28 = arith.mulf %27, %26 : vector<16x16xf32>
    %cst_18 = arith.constant dense<0.000000e+00> : vector<16xf32>
    %29 = vector.multi_reduction <add>, %28, %cst_18 [0] : vector<16x16xf32> to vector<16xf32>
    %30 = vector.shape_cast %29 : vector<16xf32> to vector<1x16xf32>
    %c0_19 = arith.constant 0 : index
    %c1_20 = arith.constant 1 : index
    %c0_21 = arith.constant 0 : index
    %c0_22 = arith.constant 0 : index
    %31 = vector.load %arg4[%c0_19, %c1_20, %c0_21, %c0_22] : memref<1x4x2x16xf32, #tpu.memory_space<vmem>>, vector<1x1x1x16xf32>
    %32 = vector.shape_cast %31 : vector<1x1x1x16xf32> to vector<1x16xf32>
    %33 = vector.shape_cast %30 : vector<1x16xf32> to vector<1x1x1x16xf32>
    tpu.vector_store %arg4[%c0_19, %c1_20, %c0_21, %c0_22], %33 {strides = array<i32>} : memref<1x4x2x16xf32, #tpu.memory_space<vmem>>, vector<1x1x1x16xf32>,
    %34 = arith.mulf %28, %28 : vector<16x16xf32>
    %cst_23 = arith.constant dense<0.000000e+00> : vector<16xf32>
    %35 = vector.multi_reduction <add>, %34, %cst_23 [0] : vector<16x16xf32> to vector<16xf32>
    %36 = vector.shape_cast %35 : vector<16xf32> to vector<1x16xf32>
    %c0_24 = arith.constant 0 : index
    %c1_25 = arith.constant 1 : index
    %c1_26 = arith.constant 1 : index
    %c0_27 = arith.constant 0 : index
    %37 = vector.load %arg4[%c0_24, %c1_25, %c1_26, %c0_27] : memref<1x4x2x16xf32, #tpu.memory_space<vmem>>, vector<1x1x1x16xf32>
    %38 = vector.shape_cast %37 : vector<1x1x1x16xf32> to vector<1x16xf32>
    %39 = vector.shape_cast %36 : vector<1x16xf32> to vector<1x1x1x16xf32>
    tpu.vector_store %arg4[%c0_24, %c1_25, %c1_26, %c0_27], %39 {strides = array<i32>} : memref<1x4x2x16xf32, #tpu.memory_space<vmem>>, vector<1x1x1x16xf32>,
    %c4_i32_28 = arith.constant 4 : i32
    %40 = arith.muli %arg1, %c4_i32_28 : i32
    %c2_i32 = arith.constant 2 : i32
    %41 = arith.addi %40, %c2_i32 : i32
    %42 = arith.index_cast %41 : i32 to index
    %c0_29 = arith.constant 0 : index
    %43 = memref.load %arg2[%42, %c0_29] : memref<4x1xf32, #tpu.memory_space<smem>>
    %c0_30 = arith.constant 0 : index
    %c1_31 = arith.constant 1 : index
    %c0_32 = arith.constant 0 : index
    %c0_33 = arith.constant 0 : index
    %44 = vector.load %arg3[%c0_30, %c1_31, %c0_32, %c0_33] : memref<1x2x16x16xbf16, #tpu.memory_space<vmem>>, vector<1x1x16x16xbf16>
    %45 = vector.shape_cast %44 : vector<1x1x16x16xbf16> to vector<16x16xbf16>
    %46 = arith.extf %45 : vector<16x16xbf16> to vector<16x16xf32>
    %47 = vector.broadcast %43 : f32 to vector<16x16xf32>
    %48 = arith.mulf %47, %46 : vector<16x16xf32>
    %cst_34 = arith.constant dense<0.000000e+00> : vector<16xf32>
    %49 = vector.multi_reduction <add>, %48, %cst_34 [0] : vector<16x16xf32> to vector<16xf32>
    %50 = vector.shape_cast %49 : vector<16xf32> to vector<1x16xf32>
    %c0_35 = arith.constant 0 : index
    %c2 = arith.constant 2 : index
    %c0_36 = arith.constant 0 : index
    %c0_37 = arith.constant 0 : index
    %51 = vector.load %arg4[%c0_35, %c2, %c0_36, %c0_37] : memref<1x4x2x16xf32, #tpu.memory_space<vmem>>, vector<1x1x1x16xf32>
    %52 = vector.shape_cast %51 : vector<1x1x1x16xf32> to vector<1x16xf32>
    %53 = vector.shape_cast %50 : vector<1x16xf32> to vector<1x1x1x16xf32>
    tpu.vector_store %arg4[%c0_35, %c2, %c0_36, %c0_37], %53 {strides = array<i32>} : memref<1x4x2x16xf32, #tpu.memory_space<vmem>>, vector<1x1x1x16xf32>,
    %54 = arith.mulf %48, %48 : vector<16x16xf32>
    %cst_38 = arith.constant dense<0.000000e+00> : vector<16xf32>
    %55 = vector.multi_reduction <add>, %54, %cst_38 [0] : vector<16x16xf32> to vector<16xf32>
    %56 = vector.shape_cast %55 : vector<16xf32> to vector<1x16xf32>
    %c0_39 = arith.constant 0 : index
    %c2_40 = arith.constant 2 : index
    %c1_41 = arith.constant 1 : index
    %c0_42 = arith.constant 0 : index
    %57 = vector.load %arg4[%c0_39, %c2_40, %c1_41, %c0_42] : memref<1x4x2x16xf32, #tpu.memory_space<vmem>>, vector<1x1x1x16xf32>
    %58 = vector.shape_cast %57 : vector<1x1x1x16xf32> to vector<1x16xf32>
    %59 = vector.shape_cast %56 : vector<1x16xf32> to vector<1x1x1x16xf32>
    tpu.vector_store %arg4[%c0_39, %c2_40, %c1_41, %c0_42], %59 {strides = array<i32>} : memref<1x4x2x16xf32, #tpu.memory_space<vmem>>, vector<1x1x1x16xf32>,
    %c4_i32_43 = arith.constant 4 : i32
    %60 = arith.muli %arg1, %c4_i32_43 : i32
    %c3_i32 = arith.constant 3 : i32
    %61 = arith.addi %60, %c3_i32 : i32
    %62 = arith.index_cast %61 : i32 to index
    %c0_44 = arith.constant 0 : index
    %63 = memref.load %arg2[%62, %c0_44] : memref<4x1xf32, #tpu.memory_space<smem>>
    %c0_45 = arith.constant 0 : index
    %c1_46 = arith.constant 1 : index
    %c0_47 = arith.constant 0 : index
    %c0_48 = arith.constant 0 : index
    %64 = vector.load %arg3[%c0_45, %c1_46, %c0_47, %c0_48] : memref<1x2x16x16xbf16, #tpu.memory_space<vmem>>, vector<1x1x16x16xbf16>
    %65 = vector.shape_cast %64 : vector<1x1x16x16xbf16> to vector<16x16xbf16>
    %66 = arith.extf %65 : vector<16x16xbf16> to vector<16x16xf32>
    %67 = vector.broadcast %63 : f32 to vector<16x16xf32>
    %68 = arith.mulf %67, %66 : vector<16x16xf32>
    %cst_49 = arith.constant dense<0.000000e+00> : vector<16xf32>
    %69 = vector.multi_reduction <add>, %68, %cst_49 [0] : vector<16x16xf32> to vector<16xf32>
    %70 = vector.shape_cast %69 : vector<16xf32> to vector<1x16xf32>
    %c0_50 = arith.constant 0 : index
    %c3 = arith.constant 3 : index
    %c0_51 = arith.constant 0 : index
    %c0_52 = arith.constant 0 : index
    %71 = vector.load %arg4[%c0_50, %c3, %c0_51, %c0_52] : memref<1x4x2x16xf32, #tpu.memory_space<vmem>>, vector<1x1x1x16xf32>
    %72 = vector.shape_cast %71 : vector<1x1x1x16xf32> to vector<1x16xf32>
    %73 = vector.shape_cast %70 : vector<1x16xf32> to vector<1x1x1x16xf32>
    tpu.vector_store %arg4[%c0_50, %c3, %c0_51, %c0_52], %73 {strides = array<i32>} : memref<1x4x2x16xf32, #tpu.memory_space<vmem>>, vector<1x1x1x16xf32>,
    %74 = arith.mulf %68, %68 : vector<16x16xf32>
    %cst_53 = arith.constant dense<0.000000e+00> : vector<16xf32>
    %75 = vector.multi_reduction <add>, %74, %cst_53 [0] : vector<16x16xf32> to vector<16xf32>
    %76 = vector.shape_cast %75 : vector<16xf32> to vector<1x16xf32>
    %c0_54 = arith.constant 0 : index
    %c3_55 = arith.constant 3 : index
    %c1_56 = arith.constant 1 : index
    %c0_57 = arith.constant 0 : index
    %77 = vector.load %arg4[%c0_54, %c3_55, %c1_56, %c0_57] : memref<1x4x2x16xf32, #tpu.memory_space<vmem>>, vector<1x1x1x16xf32>
    %78 = vector.shape_cast %77 : vector<1x1x1x16xf32> to vector<1x16xf32>
    %79 = vector.shape_cast %76 : vector<1x16xf32> to vector<1x1x1x16xf32>
    tpu.vector_store %arg4[%c0_54, %c3_55, %c1_56, %c0_57], %79 {strides = array<i32>} : memref<1x4x2x16xf32, #tpu.memory_space<vmem>>, vector<1x1x1x16xf32>,
    return
  }
  func.func @transform_0(%arg0: i32, %arg1: i32) -> (i32, i32) {
    %c0_i32 = arith.constant 0 : i32
    %c0_i32_0 = arith.constant 0 : i32
    %c0_i32_1 = arith.constant 0 : i32
    return %c0_i32, %c0_i32_0 : i32, i32
  }
  func.func @transform_1(%arg0: i32, %arg1: i32) -> (i32, i32, i32, i32) {
    %c0_i32 = arith.constant 0 : i32
    %c0_i32_0 = arith.constant 0 : i32
    %c0_i32_1 = arith.constant 0 : i32
    return %arg0, %arg1, %c0_i32, %c0_i32_0 : i32, i32, i32, i32
  }
  func.func @transform_2(%arg0: i32, %arg1: i32) -> (i32, i32, i32, i32) {
    %c0_i32 = arith.constant 0 : i32
    %c0_i32_0 = arith.constant 0 : i32
    %c0_i32_1 = arith.constant 0 : i32
    return %arg0, %arg1, %c0_i32, %c0_i32_0 : i32, i32, i32, i32
  }
}

module attributes {stable_mosaic.version = 11 : i64} {
  func.func @_group_act_kernel(%arg0: i32, %arg1: i32, %arg2: memref<4x1xf32, #tpu.memory_space<smem>>, %arg3: memref<4x2xf32, #tpu.memory_space<smem>>, %arg4: memref<1x2x16x16xbf16, #tpu.memory_space<vmem>>, %arg5: memref<1x4x16x16xbf16, #tpu.memory_space<vmem>>) attributes {dimension_semantics = [#tpu.dimension_semantics<parallel>, #tpu.dimension_semantics<parallel>], iteration_bounds = array<i64: 2, 1>, scalar_prefetch = 0 : i64, scratch_operands = 0 : i64, tpu.core_type = #tpu.core_type<tc>, window_params = [{transform_indices = @transform_0, window_bounds = array<i64: 4, 1>}, {transform_indices = @transform_1, window_bounds = array<i64: 4, 2>}, {transform_indices = @transform_2, window_bounds = array<i64: 1, 2, 16, 16>}, {transform_indices = @transform_3, window_bounds = array<i64: 1, 4, 16, 16>}]} {
    %c4_i32 = arith.constant 4 : i32
    %0 = arith.muli %arg1, %c4_i32 : i32
    %c0_i32 = arith.constant 0 : i32
    %1 = arith.addi %0, %c0_i32 : i32
    %2 = arith.index_cast %1 : i32 to index
    %c0 = arith.constant 0 : index
    %3 = memref.load %arg2[%2, %c0] : memref<4x1xf32, #tpu.memory_space<smem>>
    %c0_0 = arith.constant 0 : index
    %c0_1 = arith.constant 0 : index
    %c0_2 = arith.constant 0 : index
    %c0_3 = arith.constant 0 : index
    %4 = vector.load %arg4[%c0_0, %c0_1, %c0_2, %c0_3] : memref<1x2x16x16xbf16, #tpu.memory_space<vmem>>, vector<1x1x16x16xbf16>
    %5 = vector.shape_cast %4 : vector<1x1x16x16xbf16> to vector<16x16xbf16>
    %6 = arith.extf %5 : vector<16x16xbf16> to vector<16x16xf32>
    %7 = vector.broadcast %3 : f32 to vector<16x16xf32>
    %8 = arith.mulf %7, %6 : vector<16x16xf32>
    %9 = arith.index_cast %1 : i32 to index
    %c0_4 = arith.constant 0 : index
    %10 = memref.load %arg3[%9, %c0_4] : memref<4x2xf32, #tpu.memory_space<smem>>
    %11 = vector.broadcast %10 : f32 to vector<16x16xf32>
    %12 = arith.addf %8, %11 : vector<16x16xf32>
    %13 = arith.index_cast %1 : i32 to index
    %c1 = arith.constant 1 : index
    %14 = memref.load %arg3[%13, %c1] : memref<4x2xf32, #tpu.memory_space<smem>>
    %cst = arith.constant 0.000000e+00 : f32
    %15 = vector.broadcast %cst : f32 to vector<16x16xf32>
    %16 = arith.cmpf ogt, %12, %15 : vector<16x16xf32>
    %17 = vector.broadcast %14 : f32 to vector<16x16xf32>
    %18 = arith.mulf %17, %12 : vector<16x16xf32>
    %19 = arith.select %16, %12, %18 : vector<16x16xi1>, vector<16x16xf32>
    %20 = arith.truncf %19 : vector<16x16xf32> to vector<16x16xbf16>
    %c0_5 = arith.constant 0 : index
    %c0_6 = arith.constant 0 : index
    %c0_7 = arith.constant 0 : index
    %c0_8 = arith.constant 0 : index
    %21 = vector.load %arg5[%c0_5, %c0_6, %c0_7, %c0_8] : memref<1x4x16x16xbf16, #tpu.memory_space<vmem>>, vector<1x1x16x16xbf16>
    %22 = vector.shape_cast %21 : vector<1x1x16x16xbf16> to vector<16x16xbf16>
    %23 = vector.shape_cast %20 : vector<16x16xbf16> to vector<1x1x16x16xbf16>
    tpu.vector_store %arg5[%c0_5, %c0_6, %c0_7, %c0_8], %23 {strides = array<i32>} : memref<1x4x16x16xbf16, #tpu.memory_space<vmem>>, vector<1x1x16x16xbf16>,
    %c4_i32_9 = arith.constant 4 : i32
    %24 = arith.muli %arg1, %c4_i32_9 : i32
    %c1_i32 = arith.constant 1 : i32
    %25 = arith.addi %24, %c1_i32 : i32
    %26 = arith.index_cast %25 : i32 to index
    %c0_10 = arith.constant 0 : index
    %27 = memref.load %arg2[%26, %c0_10] : memref<4x1xf32, #tpu.memory_space<smem>>
    %c0_11 = arith.constant 0 : index
    %c0_12 = arith.constant 0 : index
    %c0_13 = arith.constant 0 : index
    %c0_14 = arith.constant 0 : index
    %28 = vector.load %arg4[%c0_11, %c0_12, %c0_13, %c0_14] : memref<1x2x16x16xbf16, #tpu.memory_space<vmem>>, vector<1x1x16x16xbf16>
    %29 = vector.shape_cast %28 : vector<1x1x16x16xbf16> to vector<16x16xbf16>
    %30 = arith.extf %29 : vector<16x16xbf16> to vector<16x16xf32>
    %31 = vector.broadcast %27 : f32 to vector<16x16xf32>
    %32 = arith.mulf %31, %30 : vector<16x16xf32>
    %33 = arith.index_cast %25 : i32 to index
    %c0_15 = arith.constant 0 : index
    %34 = memref.load %arg3[%33, %c0_15] : memref<4x2xf32, #tpu.memory_space<smem>>
    %35 = vector.broadcast %34 : f32 to vector<16x16xf32>
    %36 = arith.addf %32, %35 : vector<16x16xf32>
    %37 = arith.index_cast %25 : i32 to index
    %c1_16 = arith.constant 1 : index
    %38 = memref.load %arg3[%37, %c1_16] : memref<4x2xf32, #tpu.memory_space<smem>>
    %cst_17 = arith.constant 0.000000e+00 : f32
    %39 = vector.broadcast %cst_17 : f32 to vector<16x16xf32>
    %40 = arith.cmpf ogt, %36, %39 : vector<16x16xf32>
    %41 = vector.broadcast %38 : f32 to vector<16x16xf32>
    %42 = arith.mulf %41, %36 : vector<16x16xf32>
    %43 = arith.select %40, %36, %42 : vector<16x16xi1>, vector<16x16xf32>
    %44 = arith.truncf %43 : vector<16x16xf32> to vector<16x16xbf16>
    %c0_18 = arith.constant 0 : index
    %c1_19 = arith.constant 1 : index
    %c0_20 = arith.constant 0 : index
    %c0_21 = arith.constant 0 : index
    %45 = vector.load %arg5[%c0_18, %c1_19, %c0_20, %c0_21] : memref<1x4x16x16xbf16, #tpu.memory_space<vmem>>, vector<1x1x16x16xbf16>
    %46 = vector.shape_cast %45 : vector<1x1x16x16xbf16> to vector<16x16xbf16>
    %47 = vector.shape_cast %44 : vector<16x16xbf16> to vector<1x1x16x16xbf16>
    tpu.vector_store %arg5[%c0_18, %c1_19, %c0_20, %c0_21], %47 {strides = array<i32>} : memref<1x4x16x16xbf16, #tpu.memory_space<vmem>>, vector<1x1x16x16xbf16>,
    %c4_i32_22 = arith.constant 4 : i32
    %48 = arith.muli %arg1, %c4_i32_22 : i32
    %c2_i32 = arith.constant 2 : i32
    %49 = arith.addi %48, %c2_i32 : i32
    %50 = arith.index_cast %49 : i32 to index
    %c0_23 = arith.constant 0 : index
    %51 = memref.load %arg2[%50, %c0_23] : memref<4x1xf32, #tpu.memory_space<smem>>
    %c0_24 = arith.constant 0 : index
    %c1_25 = arith.constant 1 : index
    %c0_26 = arith.constant 0 : index
    %c0_27 = arith.constant 0 : index
    %52 = vector.load %arg4[%c0_24, %c1_25, %c0_26, %c0_27] : memref<1x2x16x16xbf16, #tpu.memory_space<vmem>>, vector<1x1x16x16xbf16>
    %53 = vector.shape_cast %52 : vector<1x1x16x16xbf16> to vector<16x16xbf16>
    %54 = arith.extf %53 : vector<16x16xbf16> to vector<16x16xf32>
    %55 = vector.broadcast %51 : f32 to vector<16x16xf32>
    %56 = arith.mulf %55, %54 : vector<16x16xf32>
    %57 = arith.index_cast %49 : i32 to index
    %c0_28 = arith.constant 0 : index
    %58 = memref.load %arg3[%57, %c0_28] : memref<4x2xf32, #tpu.memory_space<smem>>
    %59 = vector.broadcast %58 : f32 to vector<16x16xf32>
    %60 = arith.addf %56, %59 : vector<16x16xf32>
    %61 = arith.index_cast %49 : i32 to index
    %c1_29 = arith.constant 1 : index
    %62 = memref.load %arg3[%61, %c1_29] : memref<4x2xf32, #tpu.memory_space<smem>>
    %cst_30 = arith.constant 0.000000e+00 : f32
    %63 = vector.broadcast %cst_30 : f32 to vector<16x16xf32>
    %64 = arith.cmpf ogt, %60, %63 : vector<16x16xf32>
    %65 = vector.broadcast %62 : f32 to vector<16x16xf32>
    %66 = arith.mulf %65, %60 : vector<16x16xf32>
    %67 = arith.select %64, %60, %66 : vector<16x16xi1>, vector<16x16xf32>
    %68 = arith.truncf %67 : vector<16x16xf32> to vector<16x16xbf16>
    %c0_31 = arith.constant 0 : index
    %c2 = arith.constant 2 : index
    %c0_32 = arith.constant 0 : index
    %c0_33 = arith.constant 0 : index
    %69 = vector.load %arg5[%c0_31, %c2, %c0_32, %c0_33] : memref<1x4x16x16xbf16, #tpu.memory_space<vmem>>, vector<1x1x16x16xbf16>
    %70 = vector.shape_cast %69 : vector<1x1x16x16xbf16> to vector<16x16xbf16>
    %71 = vector.shape_cast %68 : vector<16x16xbf16> to vector<1x1x16x16xbf16>
    tpu.vector_store %arg5[%c0_31, %c2, %c0_32, %c0_33], %71 {strides = array<i32>} : memref<1x4x16x16xbf16, #tpu.memory_space<vmem>>, vector<1x1x16x16xbf16>,
    %c4_i32_34 = arith.constant 4 : i32
    %72 = arith.muli %arg1, %c4_i32_34 : i32
    %c3_i32 = arith.constant 3 : i32
    %73 = arith.addi %72, %c3_i32 : i32
    %74 = arith.index_cast %73 : i32 to index
    %c0_35 = arith.constant 0 : index
    %75 = memref.load %arg2[%74, %c0_35] : memref<4x1xf32, #tpu.memory_space<smem>>
    %c0_36 = arith.constant 0 : index
    %c1_37 = arith.constant 1 : index
    %c0_38 = arith.constant 0 : index
    %c0_39 = arith.constant 0 : index
    %76 = vector.load %arg4[%c0_36, %c1_37, %c0_38, %c0_39] : memref<1x2x16x16xbf16, #tpu.memory_space<vmem>>, vector<1x1x16x16xbf16>
    %77 = vector.shape_cast %76 : vector<1x1x16x16xbf16> to vector<16x16xbf16>
    %78 = arith.extf %77 : vector<16x16xbf16> to vector<16x16xf32>
    %79 = vector.broadcast %75 : f32 to vector<16x16xf32>
    %80 = arith.mulf %79, %78 : vector<16x16xf32>
    %81 = arith.index_cast %73 : i32 to index
    %c0_40 = arith.constant 0 : index
    %82 = memref.load %arg3[%81, %c0_40] : memref<4x2xf32, #tpu.memory_space<smem>>
    %83 = vector.broadcast %82 : f32 to vector<16x16xf32>
    %84 = arith.addf %80, %83 : vector<16x16xf32>
    %85 = arith.index_cast %73 : i32 to index
    %c1_41 = arith.constant 1 : index
    %86 = memref.load %arg3[%85, %c1_41] : memref<4x2xf32, #tpu.memory_space<smem>>
    %cst_42 = arith.constant 0.000000e+00 : f32
    %87 = vector.broadcast %cst_42 : f32 to vector<16x16xf32>
    %88 = arith.cmpf ogt, %84, %87 : vector<16x16xf32>
    %89 = vector.broadcast %86 : f32 to vector<16x16xf32>
    %90 = arith.mulf %89, %84 : vector<16x16xf32>
    %91 = arith.select %88, %84, %90 : vector<16x16xi1>, vector<16x16xf32>
    %92 = arith.truncf %91 : vector<16x16xf32> to vector<16x16xbf16>
    %c0_43 = arith.constant 0 : index
    %c3 = arith.constant 3 : index
    %c0_44 = arith.constant 0 : index
    %c0_45 = arith.constant 0 : index
    %93 = vector.load %arg5[%c0_43, %c3, %c0_44, %c0_45] : memref<1x4x16x16xbf16, #tpu.memory_space<vmem>>, vector<1x1x16x16xbf16>
    %94 = vector.shape_cast %93 : vector<1x1x16x16xbf16> to vector<16x16xbf16>
    %95 = vector.shape_cast %92 : vector<16x16xbf16> to vector<1x1x16x16xbf16>
    tpu.vector_store %arg5[%c0_43, %c3, %c0_44, %c0_45], %95 {strides = array<i32>} : memref<1x4x16x16xbf16, #tpu.memory_space<vmem>>, vector<1x1x16x16xbf16>,
    return
  }
  func.func @transform_0(%arg0: i32, %arg1: i32) -> (i32, i32) {
    %c0_i32 = arith.constant 0 : i32
    %c0_i32_0 = arith.constant 0 : i32
    %c0_i32_1 = arith.constant 0 : i32
    return %c0_i32, %c0_i32_0 : i32, i32
  }
  func.func @transform_1(%arg0: i32, %arg1: i32) -> (i32, i32) {
    %c0_i32 = arith.constant 0 : i32
    %c0_i32_0 = arith.constant 0 : i32
    %c0_i32_1 = arith.constant 0 : i32
    return %c0_i32, %c0_i32_0 : i32, i32
  }
  func.func @transform_2(%arg0: i32, %arg1: i32) -> (i32, i32, i32, i32) {
    %c0_i32 = arith.constant 0 : i32
    %c0_i32_0 = arith.constant 0 : i32
    %c0_i32_1 = arith.constant 0 : i32
    return %arg0, %arg1, %c0_i32, %c0_i32_0 : i32, i32, i32, i32
  }
  func.func @transform_3(%arg0: i32, %arg1: i32) -> (i32, i32, i32, i32) {
    %c0_i32 = arith.constant 0 : i32
    %c0_i32_0 = arith.constant 0 : i32
    %c0_i32_1 = arith.constant 0 : i32
    return %arg0, %arg1, %c0_i32, %c0_i32_0 : i32, i32, i32, i32
  }
}

module attributes {stable_mosaic.version = 11 : i64} {
  func.func @_pw_act_kernel(%arg0: i32, %arg1: i32, %arg2: memref<4x4xf32, #tpu.memory_space<vmem>>, %arg3: memref<4x2xf32, #tpu.memory_space<vmem>>, %arg4: memref<1x4x128xbf16, #tpu.memory_space<vmem>>, %arg5: memref<1x4x128xf32, #tpu.memory_space<vmem>>) attributes {dimension_semantics = [#tpu.dimension_semantics<parallel>, #tpu.dimension_semantics<parallel>], iteration_bounds = array<i64: 2, 2>, scalar_prefetch = 0 : i64, scratch_operands = 0 : i64, tpu.core_type = #tpu.core_type<tc>, window_params = [{pipeline_mode = #tpu.pipeline_mode<synchronous>, transform_indices = @transform_0, window_bounds = array<i64: 4, 4>}, {pipeline_mode = #tpu.pipeline_mode<synchronous>, transform_indices = @transform_1, window_bounds = array<i64: 4, 2>}, {transform_indices = @transform_2, window_bounds = array<i64: 1, 4, 128>}, {transform_indices = @transform_3, window_bounds = array<i64: 1, 4, 128>}]} {
    %c0 = arith.constant 0 : index
    %c0_0 = arith.constant 0 : index
    %0 = vector.load %arg2[%c0, %c0_0] : memref<4x4xf32, #tpu.memory_space<vmem>>, vector<4x4xf32>
    %c0_1 = arith.constant 0 : index
    %c0_2 = arith.constant 0 : index
    %c0_3 = arith.constant 0 : index
    %1 = vector.load %arg4[%c0_1, %c0_2, %c0_3] : memref<1x4x128xbf16, #tpu.memory_space<vmem>>, vector<1x4x128xbf16>
    %2 = vector.shape_cast %1 : vector<1x4x128xbf16> to vector<4x128xbf16>
    %3 = arith.extf %2 : vector<4x128xbf16> to vector<4x128xf32>
    %4 = vector.extract_strided_slice %0 {offsets = [0, 0], sizes = [4, 1], strides = [1, 1]} : vector<4x4xf32> to vector<4x1xf32>
    %5 = vector.extract_strided_slice %3 {offsets = [0, 0], sizes = [1, 128], strides = [1, 1]} : vector<4x128xf32> to vector<1x128xf32>
    %6 = vector.broadcast %4 : vector<4x1xf32> to vector<4x128xf32>
    %7 = vector.broadcast %5 : vector<1x128xf32> to vector<4x128xf32>
    %8 = arith.mulf %6, %7 : vector<4x128xf32>
    %9 = vector.extract_strided_slice %0 {offsets = [0, 1], sizes = [4, 1], strides = [1, 1]} : vector<4x4xf32> to vector<4x1xf32>
    %10 = vector.extract_strided_slice %3 {offsets = [1, 0], sizes = [1, 128], strides = [1, 1]} : vector<4x128xf32> to vector<1x128xf32>
    %11 = vector.broadcast %9 : vector<4x1xf32> to vector<4x128xf32>
    %12 = vector.broadcast %10 : vector<1x128xf32> to vector<4x128xf32>
    %13 = arith.mulf %11, %12 : vector<4x128xf32>
    %14 = arith.addf %8, %13 : vector<4x128xf32>
    %15 = vector.extract_strided_slice %0 {offsets = [0, 2], sizes = [4, 1], strides = [1, 1]} : vector<4x4xf32> to vector<4x1xf32>
    %16 = vector.extract_strided_slice %3 {offsets = [2, 0], sizes = [1, 128], strides = [1, 1]} : vector<4x128xf32> to vector<1x128xf32>
    %17 = vector.broadcast %15 : vector<4x1xf32> to vector<4x128xf32>
    %18 = vector.broadcast %16 : vector<1x128xf32> to vector<4x128xf32>
    %19 = arith.mulf %17, %18 : vector<4x128xf32>
    %20 = arith.addf %14, %19 : vector<4x128xf32>
    %21 = vector.extract_strided_slice %0 {offsets = [0, 3], sizes = [4, 1], strides = [1, 1]} : vector<4x4xf32> to vector<4x1xf32>
    %22 = vector.extract_strided_slice %3 {offsets = [3, 0], sizes = [1, 128], strides = [1, 1]} : vector<4x128xf32> to vector<1x128xf32>
    %23 = vector.broadcast %21 : vector<4x1xf32> to vector<4x128xf32>
    %24 = vector.broadcast %22 : vector<1x128xf32> to vector<4x128xf32>
    %25 = arith.mulf %23, %24 : vector<4x128xf32>
    %26 = arith.addf %20, %25 : vector<4x128xf32>
    %c0_4 = arith.constant 0 : index
    %c0_5 = arith.constant 0 : index
    %27 = vector.load %arg3[%c0_4, %c0_5] : memref<4x2xf32, #tpu.memory_space<vmem>>, vector<4x2xf32>
    %28 = vector.extract_strided_slice %27 {offsets = [0, 0], sizes = [4, 1], strides = [1, 1]} : vector<4x2xf32> to vector<4x1xf32>
    %29 = vector.broadcast %28 : vector<4x1xf32> to vector<4x128xf32>
    %30 = arith.addf %26, %29 : vector<4x128xf32>
    %cst = arith.constant 0.000000e+00 : f32
    %31 = vector.broadcast %cst : f32 to vector<4x128xf32>
    %32 = arith.cmpf ogt, %30, %31 : vector<4x128xf32>
    %33 = vector.extract_strided_slice %27 {offsets = [0, 1], sizes = [4, 1], strides = [1, 1]} : vector<4x2xf32> to vector<4x1xf32>
    %34 = vector.broadcast %33 : vector<4x1xf32> to vector<4x128xf32>
    %35 = arith.mulf %34, %30 : vector<4x128xf32>
    %36 = arith.select %32, %30, %35 : vector<4x128xi1>, vector<4x128xf32>
    %c0_6 = arith.constant 0 : index
    %c0_7 = arith.constant 0 : index
    %c0_8 = arith.constant 0 : index
    %37 = vector.load %arg5[%c0_6, %c0_7, %c0_8] : memref<1x4x128xf32, #tpu.memory_space<vmem>>, vector<1x4x128xf32>
    %38 = vector.shape_cast %37 : vector<1x4x128xf32> to vector<4x128xf32>
    %39 = vector.shape_cast %36 : vector<4x128xf32> to vector<1x4x128xf32>
    tpu.vector_store %arg5[%c0_6, %c0_7, %c0_8], %39 {strides = array<i32>} : memref<1x4x128xf32, #tpu.memory_space<vmem>>, vector<1x4x128xf32>,
    return
  }
  func.func @transform_0(%arg0: i32, %arg1: i32) -> (i32, i32) {
    %c0_i32 = arith.constant 0 : i32
    %c0_i32_0 = arith.constant 0 : i32
    %c0_i32_1 = arith.constant 0 : i32
    return %c0_i32, %c0_i32_0 : i32, i32
  }
  func.func @transform_1(%arg0: i32, %arg1: i32) -> (i32, i32) {
    %c0_i32 = arith.constant 0 : i32
    %c0_i32_0 = arith.constant 0 : i32
    %c0_i32_1 = arith.constant 0 : i32
    return %c0_i32, %c0_i32_0 : i32, i32
  }
  func.func @transform_2(%arg0: i32, %arg1: i32) -> (i32, i32, i32) {
    %c0_i32 = arith.constant 0 : i32
    %c0_i32_0 = arith.constant 0 : i32
    return %arg0, %c0_i32, %arg1 : i32, i32, i32
  }
  func.func @transform_3(%arg0: i32, %arg1: i32) -> (i32, i32, i32) {
    %c0_i32 = arith.constant 0 : i32
    %c0_i32_0 = arith.constant 0 : i32
    return %arg0, %c0_i32, %arg1 : i32, i32, i32
  }
}

module attributes {stable_mosaic.version = 11 : i64} {
  func.func @_pw_stats_kernel(%arg0: i32, %arg1: i32, %arg2: memref<4x4xf32, #tpu.memory_space<vmem>>, %arg3: memref<1x4x128xbf16, #tpu.memory_space<vmem>>, %arg4: memref<1x1x4x2xf32, #tpu.memory_space<vmem>>) attributes {dimension_semantics = [#tpu.dimension_semantics<parallel>, #tpu.dimension_semantics<parallel>], iteration_bounds = array<i64: 2, 2>, scalar_prefetch = 0 : i64, scratch_operands = 0 : i64, tpu.core_type = #tpu.core_type<tc>, window_params = [{pipeline_mode = #tpu.pipeline_mode<synchronous>, transform_indices = @transform_0, window_bounds = array<i64: 4, 4>}, {transform_indices = @transform_1, window_bounds = array<i64: 1, 4, 128>}, {transform_indices = @transform_2, window_bounds = array<i64: 1, 1, 4, 2>}]} {
    %c0 = arith.constant 0 : index
    %c0_0 = arith.constant 0 : index
    %0 = vector.load %arg2[%c0, %c0_0] : memref<4x4xf32, #tpu.memory_space<vmem>>, vector<4x4xf32>
    %c0_1 = arith.constant 0 : index
    %c0_2 = arith.constant 0 : index
    %c0_3 = arith.constant 0 : index
    %1 = vector.load %arg3[%c0_1, %c0_2, %c0_3] : memref<1x4x128xbf16, #tpu.memory_space<vmem>>, vector<1x4x128xbf16>
    %2 = vector.shape_cast %1 : vector<1x4x128xbf16> to vector<4x128xbf16>
    %3 = arith.extf %2 : vector<4x128xbf16> to vector<4x128xf32>
    %4 = vector.extract_strided_slice %0 {offsets = [0, 0], sizes = [4, 1], strides = [1, 1]} : vector<4x4xf32> to vector<4x1xf32>
    %5 = vector.extract_strided_slice %3 {offsets = [0, 0], sizes = [1, 128], strides = [1, 1]} : vector<4x128xf32> to vector<1x128xf32>
    %6 = vector.broadcast %4 : vector<4x1xf32> to vector<4x128xf32>
    %7 = vector.broadcast %5 : vector<1x128xf32> to vector<4x128xf32>
    %8 = arith.mulf %6, %7 : vector<4x128xf32>
    %9 = vector.extract_strided_slice %0 {offsets = [0, 1], sizes = [4, 1], strides = [1, 1]} : vector<4x4xf32> to vector<4x1xf32>
    %10 = vector.extract_strided_slice %3 {offsets = [1, 0], sizes = [1, 128], strides = [1, 1]} : vector<4x128xf32> to vector<1x128xf32>
    %11 = vector.broadcast %9 : vector<4x1xf32> to vector<4x128xf32>
    %12 = vector.broadcast %10 : vector<1x128xf32> to vector<4x128xf32>
    %13 = arith.mulf %11, %12 : vector<4x128xf32>
    %14 = arith.addf %8, %13 : vector<4x128xf32>
    %15 = vector.extract_strided_slice %0 {offsets = [0, 2], sizes = [4, 1], strides = [1, 1]} : vector<4x4xf32> to vector<4x1xf32>
    %16 = vector.extract_strided_slice %3 {offsets = [2, 0], sizes = [1, 128], strides = [1, 1]} : vector<4x128xf32> to vector<1x128xf32>
    %17 = vector.broadcast %15 : vector<4x1xf32> to vector<4x128xf32>
    %18 = vector.broadcast %16 : vector<1x128xf32> to vector<4x128xf32>
    %19 = arith.mulf %17, %18 : vector<4x128xf32>
    %20 = arith.addf %14, %19 : vector<4x128xf32>
    %21 = vector.extract_strided_slice %0 {offsets = [0, 3], sizes = [4, 1], strides = [1, 1]} : vector<4x4xf32> to vector<4x1xf32>
    %22 = vector.extract_strided_slice %3 {offsets = [3, 0], sizes = [1, 128], strides = [1, 1]} : vector<4x128xf32> to vector<1x128xf32>
    %23 = vector.broadcast %21 : vector<4x1xf32> to vector<4x128xf32>
    %24 = vector.broadcast %22 : vector<1x128xf32> to vector<4x128xf32>
    %25 = arith.mulf %23, %24 : vector<4x128xf32>
    %26 = arith.addf %20, %25 : vector<4x128xf32>
    %cst = arith.constant dense<0.000000e+00> : vector<4xf32>
    %27 = vector.multi_reduction <add>, %26, %cst [1] : vector<4x128xf32> to vector<4xf32>
    %28 = vector.shape_cast %27 : vector<4xf32> to vector<4x1xf32>
    %c0_4 = arith.constant 0 : index
    %c0_5 = arith.constant 0 : index
    %c0_6 = arith.constant 0 : index
    %c0_7 = arith.constant 0 : index
    %29 = vector.load %arg4[%c0_4, %c0_5, %c0_6, %c0_7] : memref<1x1x4x2xf32, #tpu.memory_space<vmem>>, vector<1x1x4x1xf32>
    %30 = vector.shape_cast %29 : vector<1x1x4x1xf32> to vector<4x1xf32>
    %31 = vector.shape_cast %28 : vector<4x1xf32> to vector<1x1x4x1xf32>
    tpu.vector_store %arg4[%c0_4, %c0_5, %c0_6, %c0_7], %31 {strides = array<i32>} : memref<1x1x4x2xf32, #tpu.memory_space<vmem>>, vector<1x1x4x1xf32>,
    %32 = arith.mulf %26, %26 : vector<4x128xf32>
    %cst_8 = arith.constant dense<0.000000e+00> : vector<4xf32>
    %33 = vector.multi_reduction <add>, %32, %cst_8 [1] : vector<4x128xf32> to vector<4xf32>
    %34 = vector.shape_cast %33 : vector<4xf32> to vector<4x1xf32>
    %c0_9 = arith.constant 0 : index
    %c0_10 = arith.constant 0 : index
    %c0_11 = arith.constant 0 : index
    %c1 = arith.constant 1 : index
    %35 = vector.load %arg4[%c0_9, %c0_10, %c0_11, %c1] : memref<1x1x4x2xf32, #tpu.memory_space<vmem>>, vector<1x1x4x1xf32>
    %36 = vector.shape_cast %35 : vector<1x1x4x1xf32> to vector<4x1xf32>
    %37 = vector.shape_cast %34 : vector<4x1xf32> to vector<1x1x4x1xf32>
    tpu.vector_store %arg4[%c0_9, %c0_10, %c0_11, %c1], %37 {strides = array<i32>} : memref<1x1x4x2xf32, #tpu.memory_space<vmem>>, vector<1x1x4x1xf32>,
    return
  }
  func.func @transform_0(%arg0: i32, %arg1: i32) -> (i32, i32) {
    %c0_i32 = arith.constant 0 : i32
    %c0_i32_0 = arith.constant 0 : i32
    %c0_i32_1 = arith.constant 0 : i32
    return %c0_i32, %c0_i32_0 : i32, i32
  }
  func.func @transform_1(%arg0: i32, %arg1: i32) -> (i32, i32, i32) {
    %c0_i32 = arith.constant 0 : i32
    %c0_i32_0 = arith.constant 0 : i32
    return %arg0, %c0_i32, %arg1 : i32, i32, i32
  }
  func.func @transform_2(%arg0: i32, %arg1: i32) -> (i32, i32, i32, i32) {
    %c0_i32 = arith.constant 0 : i32
    %c0_i32_0 = arith.constant 0 : i32
    %c0_i32_1 = arith.constant 0 : i32
    return %arg0, %arg1, %c0_i32, %c0_i32_0 : i32, i32, i32, i32
  }
}

module attributes {stable_mosaic.version = 11 : i64} {
  func.func @_group_stats_kernel(%arg0: i32, %arg1: i32, %arg2: memref<4x9xf32, #tpu.memory_space<smem>>, %arg3: memref<1x4x18x18xbf16, #tpu.memory_space<vmem>>, %arg4: memref<1x4x2x16xf32, #tpu.memory_space<vmem>>) attributes {dimension_semantics = [#tpu.dimension_semantics<parallel>, #tpu.dimension_semantics<parallel>], iteration_bounds = array<i64: 2, 1>, scalar_prefetch = 0 : i64, scratch_operands = 0 : i64, tpu.core_type = #tpu.core_type<tc>, window_params = [{transform_indices = @transform_0, window_bounds = array<i64: 4, 9>}, {transform_indices = @transform_1, window_bounds = array<i64: 1, 4, 18, 18>}, {transform_indices = @transform_2, window_bounds = array<i64: 1, 4, 2, 16>}]} {
    %c4_i32 = arith.constant 4 : i32
    %0 = arith.muli %arg1, %c4_i32 : i32
    %c0_i32 = arith.constant 0 : i32
    %1 = arith.addi %0, %c0_i32 : i32
    %2 = arith.index_cast %1 : i32 to index
    %c0 = arith.constant 0 : index
    %3 = memref.load %arg2[%2, %c0] : memref<4x9xf32, #tpu.memory_space<smem>>
    %c0_0 = arith.constant 0 : index
    %c0_1 = arith.constant 0 : index
    %c0_2 = arith.constant 0 : index
    %c0_3 = arith.constant 0 : index
    %4 = vector.load %arg3[%c0_0, %c0_1, %c0_2, %c0_3] : memref<1x4x18x18xbf16, #tpu.memory_space<vmem>>, vector<1x1x16x16xbf16>
    %5 = vector.shape_cast %4 : vector<1x1x16x16xbf16> to vector<16x16xbf16>
    %6 = arith.extf %5 : vector<16x16xbf16> to vector<16x16xf32>
    %7 = vector.broadcast %3 : f32 to vector<16x16xf32>
    %8 = arith.mulf %7, %6 : vector<16x16xf32>
    %9 = arith.index_cast %1 : i32 to index
    %c1 = arith.constant 1 : index
    %10 = memref.load %arg2[%9, %c1] : memref<4x9xf32, #tpu.memory_space<smem>>
    %c0_4 = arith.constant 0 : index
    %c0_5 = arith.constant 0 : index
    %c0_6 = arith.constant 0 : index
    %c1_7 = arith.constant 1 : index
    %11 = vector.load %arg3[%c0_4, %c0_5, %c0_6, %c1_7] : memref<1x4x18x18xbf16, #tpu.memory_space<vmem>>, vector<1x1x16x16xbf16>
    %12 = vector.shape_cast %11 : vector<1x1x16x16xbf16> to vector<16x16xbf16>
    %13 = arith.extf %12 : vector<16x16xbf16> to vector<16x16xf32>
    %14 = vector.broadcast %10 : f32 to vector<16x16xf32>
    %15 = arith.mulf %14, %13 : vector<16x16xf32>
    %16 = arith.addf %8, %15 : vector<16x16xf32>
    %17 = arith.index_cast %1 : i32 to index
    %c2 = arith.constant 2 : index
    %18 = memref.load %arg2[%17, %c2] : memref<4x9xf32, #tpu.memory_space<smem>>
    %c0_8 = arith.constant 0 : index
    %c0_9 = arith.constant 0 : index
    %c0_10 = arith.constant 0 : index
    %c2_11 = arith.constant 2 : index
    %19 = vector.load %arg3[%c0_8, %c0_9, %c0_10, %c2_11] : memref<1x4x18x18xbf16, #tpu.memory_space<vmem>>, vector<1x1x16x16xbf16>
    %20 = vector.shape_cast %19 : vector<1x1x16x16xbf16> to vector<16x16xbf16>
    %21 = arith.extf %20 : vector<16x16xbf16> to vector<16x16xf32>
    %22 = vector.broadcast %18 : f32 to vector<16x16xf32>
    %23 = arith.mulf %22, %21 : vector<16x16xf32>
    %24 = arith.addf %16, %23 : vector<16x16xf32>
    %25 = arith.index_cast %1 : i32 to index
    %c3 = arith.constant 3 : index
    %26 = memref.load %arg2[%25, %c3] : memref<4x9xf32, #tpu.memory_space<smem>>
    %c0_12 = arith.constant 0 : index
    %c0_13 = arith.constant 0 : index
    %c1_14 = arith.constant 1 : index
    %c0_15 = arith.constant 0 : index
    %27 = vector.load %arg3[%c0_12, %c0_13, %c1_14, %c0_15] : memref<1x4x18x18xbf16, #tpu.memory_space<vmem>>, vector<1x1x16x16xbf16>
    %28 = vector.shape_cast %27 : vector<1x1x16x16xbf16> to vector<16x16xbf16>
    %29 = arith.extf %28 : vector<16x16xbf16> to vector<16x16xf32>
    %30 = vector.broadcast %26 : f32 to vector<16x16xf32>
    %31 = arith.mulf %30, %29 : vector<16x16xf32>
    %32 = arith.addf %24, %31 : vector<16x16xf32>
    %33 = arith.index_cast %1 : i32 to index
    %c4 = arith.constant 4 : index
    %34 = memref.load %arg2[%33, %c4] : memref<4x9xf32, #tpu.memory_space<smem>>
    %c0_16 = arith.constant 0 : index
    %c0_17 = arith.constant 0 : index
    %c1_18 = arith.constant 1 : index
    %c1_19 = arith.constant 1 : index
    %35 = vector.load %arg3[%c0_16, %c0_17, %c1_18, %c1_19] : memref<1x4x18x18xbf16, #tpu.memory_space<vmem>>, vector<1x1x16x16xbf16>
    %36 = vector.shape_cast %35 : vector<1x1x16x16xbf16> to vector<16x16xbf16>
    %37 = arith.extf %36 : vector<16x16xbf16> to vector<16x16xf32>
    %38 = vector.broadcast %34 : f32 to vector<16x16xf32>
    %39 = arith.mulf %38, %37 : vector<16x16xf32>
    %40 = arith.addf %32, %39 : vector<16x16xf32>
    %41 = arith.index_cast %1 : i32 to index
    %c5 = arith.constant 5 : index
    %42 = memref.load %arg2[%41, %c5] : memref<4x9xf32, #tpu.memory_space<smem>>
    %c0_20 = arith.constant 0 : index
    %c0_21 = arith.constant 0 : index
    %c1_22 = arith.constant 1 : index
    %c2_23 = arith.constant 2 : index
    %43 = vector.load %arg3[%c0_20, %c0_21, %c1_22, %c2_23] : memref<1x4x18x18xbf16, #tpu.memory_space<vmem>>, vector<1x1x16x16xbf16>
    %44 = vector.shape_cast %43 : vector<1x1x16x16xbf16> to vector<16x16xbf16>
    %45 = arith.extf %44 : vector<16x16xbf16> to vector<16x16xf32>
    %46 = vector.broadcast %42 : f32 to vector<16x16xf32>
    %47 = arith.mulf %46, %45 : vector<16x16xf32>
    %48 = arith.addf %40, %47 : vector<16x16xf32>
    %49 = arith.index_cast %1 : i32 to index
    %c6 = arith.constant 6 : index
    %50 = memref.load %arg2[%49, %c6] : memref<4x9xf32, #tpu.memory_space<smem>>
    %c0_24 = arith.constant 0 : index
    %c0_25 = arith.constant 0 : index
    %c2_26 = arith.constant 2 : index
    %c0_27 = arith.constant 0 : index
    %51 = vector.load %arg3[%c0_24, %c0_25, %c2_26, %c0_27] : memref<1x4x18x18xbf16, #tpu.memory_space<vmem>>, vector<1x1x16x16xbf16>
    %52 = vector.shape_cast %51 : vector<1x1x16x16xbf16> to vector<16x16xbf16>
    %53 = arith.extf %52 : vector<16x16xbf16> to vector<16x16xf32>
    %54 = vector.broadcast %50 : f32 to vector<16x16xf32>
    %55 = arith.mulf %54, %53 : vector<16x16xf32>
    %56 = arith.addf %48, %55 : vector<16x16xf32>
    %57 = arith.index_cast %1 : i32 to index
    %c7 = arith.constant 7 : index
    %58 = memref.load %arg2[%57, %c7] : memref<4x9xf32, #tpu.memory_space<smem>>
    %c0_28 = arith.constant 0 : index
    %c0_29 = arith.constant 0 : index
    %c2_30 = arith.constant 2 : index
    %c1_31 = arith.constant 1 : index
    %59 = vector.load %arg3[%c0_28, %c0_29, %c2_30, %c1_31] : memref<1x4x18x18xbf16, #tpu.memory_space<vmem>>, vector<1x1x16x16xbf16>
    %60 = vector.shape_cast %59 : vector<1x1x16x16xbf16> to vector<16x16xbf16>
    %61 = arith.extf %60 : vector<16x16xbf16> to vector<16x16xf32>
    %62 = vector.broadcast %58 : f32 to vector<16x16xf32>
    %63 = arith.mulf %62, %61 : vector<16x16xf32>
    %64 = arith.addf %56, %63 : vector<16x16xf32>
    %65 = arith.index_cast %1 : i32 to index
    %c8 = arith.constant 8 : index
    %66 = memref.load %arg2[%65, %c8] : memref<4x9xf32, #tpu.memory_space<smem>>
    %c0_32 = arith.constant 0 : index
    %c0_33 = arith.constant 0 : index
    %c2_34 = arith.constant 2 : index
    %c2_35 = arith.constant 2 : index
    %67 = vector.load %arg3[%c0_32, %c0_33, %c2_34, %c2_35] : memref<1x4x18x18xbf16, #tpu.memory_space<vmem>>, vector<1x1x16x16xbf16>
    %68 = vector.shape_cast %67 : vector<1x1x16x16xbf16> to vector<16x16xbf16>
    %69 = arith.extf %68 : vector<16x16xbf16> to vector<16x16xf32>
    %70 = vector.broadcast %66 : f32 to vector<16x16xf32>
    %71 = arith.mulf %70, %69 : vector<16x16xf32>
    %72 = arith.addf %64, %71 : vector<16x16xf32>
    %cst = arith.constant dense<0.000000e+00> : vector<16xf32>
    %73 = vector.multi_reduction <add>, %72, %cst [0] : vector<16x16xf32> to vector<16xf32>
    %74 = vector.shape_cast %73 : vector<16xf32> to vector<1x16xf32>
    %c0_36 = arith.constant 0 : index
    %c0_37 = arith.constant 0 : index
    %c0_38 = arith.constant 0 : index
    %c0_39 = arith.constant 0 : index
    %75 = vector.load %arg4[%c0_36, %c0_37, %c0_38, %c0_39] : memref<1x4x2x16xf32, #tpu.memory_space<vmem>>, vector<1x1x1x16xf32>
    %76 = vector.shape_cast %75 : vector<1x1x1x16xf32> to vector<1x16xf32>
    %77 = vector.shape_cast %74 : vector<1x16xf32> to vector<1x1x1x16xf32>
    tpu.vector_store %arg4[%c0_36, %c0_37, %c0_38, %c0_39], %77 {strides = array<i32>} : memref<1x4x2x16xf32, #tpu.memory_space<vmem>>, vector<1x1x1x16xf32>,
    %78 = arith.mulf %72, %72 : vector<16x16xf32>
    %cst_40 = arith.constant dense<0.000000e+00> : vector<16xf32>
    %79 = vector.multi_reduction <add>, %78, %cst_40 [0] : vector<16x16xf32> to vector<16xf32>
    %80 = vector.shape_cast %79 : vector<16xf32> to vector<1x16xf32>
    %c0_41 = arith.constant 0 : index
    %c0_42 = arith.constant 0 : index
    %c1_43 = arith.constant 1 : index
    %c0_44 = arith.constant 0 : index
    %81 = vector.load %arg4[%c0_41, %c0_42, %c1_43, %c0_44] : memref<1x4x2x16xf32, #tpu.memory_space<vmem>>, vector<1x1x1x16xf32>
    %82 = vector.shape_cast %81 : vector<1x1x1x16xf32> to vector<1x16xf32>
    %83 = vector.shape_cast %80 : vector<1x16xf32> to vector<1x1x1x16xf32>
    tpu.vector_store %arg4[%c0_41, %c0_42, %c1_43, %c0_44], %83 {strides = array<i32>} : memref<1x4x2x16xf32, #tpu.memory_space<vmem>>, vector<1x1x1x16xf32>,
    %c4_i32_45 = arith.constant 4 : i32
    %84 = arith.muli %arg1, %c4_i32_45 : i32
    %c1_i32 = arith.constant 1 : i32
    %85 = arith.addi %84, %c1_i32 : i32
    %86 = arith.index_cast %85 : i32 to index
    %c0_46 = arith.constant 0 : index
    %87 = memref.load %arg2[%86, %c0_46] : memref<4x9xf32, #tpu.memory_space<smem>>
    %c0_47 = arith.constant 0 : index
    %c1_48 = arith.constant 1 : index
    %c0_49 = arith.constant 0 : index
    %c0_50 = arith.constant 0 : index
    %88 = vector.load %arg3[%c0_47, %c1_48, %c0_49, %c0_50] : memref<1x4x18x18xbf16, #tpu.memory_space<vmem>>, vector<1x1x16x16xbf16>
    %89 = vector.shape_cast %88 : vector<1x1x16x16xbf16> to vector<16x16xbf16>
    %90 = arith.extf %89 : vector<16x16xbf16> to vector<16x16xf32>
    %91 = vector.broadcast %87 : f32 to vector<16x16xf32>
    %92 = arith.mulf %91, %90 : vector<16x16xf32>
    %93 = arith.index_cast %85 : i32 to index
    %c1_51 = arith.constant 1 : index
    %94 = memref.load %arg2[%93, %c1_51] : memref<4x9xf32, #tpu.memory_space<smem>>
    %c0_52 = arith.constant 0 : index
    %c1_53 = arith.constant 1 : index
    %c0_54 = arith.constant 0 : index
    %c1_55 = arith.constant 1 : index
    %95 = vector.load %arg3[%c0_52, %c1_53, %c0_54, %c1_55] : memref<1x4x18x18xbf16, #tpu.memory_space<vmem>>, vector<1x1x16x16xbf16>
    %96 = vector.shape_cast %95 : vector<1x1x16x16xbf16> to vector<16x16xbf16>
    %97 = arith.extf %96 : vector<16x16xbf16> to vector<16x16xf32>
    %98 = vector.broadcast %94 : f32 to vector<16x16xf32>
    %99 = arith.mulf %98, %97 : vector<16x16xf32>
    %100 = arith.addf %92, %99 : vector<16x16xf32>
    %101 = arith.index_cast %85 : i32 to index
    %c2_56 = arith.constant 2 : index
    %102 = memref.load %arg2[%101, %c2_56] : memref<4x9xf32, #tpu.memory_space<smem>>
    %c0_57 = arith.constant 0 : index
    %c1_58 = arith.constant 1 : index
    %c0_59 = arith.constant 0 : index
    %c2_60 = arith.constant 2 : index
    %103 = vector.load %arg3[%c0_57, %c1_58, %c0_59, %c2_60] : memref<1x4x18x18xbf16, #tpu.memory_space<vmem>>, vector<1x1x16x16xbf16>
    %104 = vector.shape_cast %103 : vector<1x1x16x16xbf16> to vector<16x16xbf16>
    %105 = arith.extf %104 : vector<16x16xbf16> to vector<16x16xf32>
    %106 = vector.broadcast %102 : f32 to vector<16x16xf32>
    %107 = arith.mulf %106, %105 : vector<16x16xf32>
    %108 = arith.addf %100, %107 : vector<16x16xf32>
    %109 = arith.index_cast %85 : i32 to index
    %c3_61 = arith.constant 3 : index
    %110 = memref.load %arg2[%109, %c3_61] : memref<4x9xf32, #tpu.memory_space<smem>>
    %c0_62 = arith.constant 0 : index
    %c1_63 = arith.constant 1 : index
    %c1_64 = arith.constant 1 : index
    %c0_65 = arith.constant 0 : index
    %111 = vector.load %arg3[%c0_62, %c1_63, %c1_64, %c0_65] : memref<1x4x18x18xbf16, #tpu.memory_space<vmem>>, vector<1x1x16x16xbf16>
    %112 = vector.shape_cast %111 : vector<1x1x16x16xbf16> to vector<16x16xbf16>
    %113 = arith.extf %112 : vector<16x16xbf16> to vector<16x16xf32>
    %114 = vector.broadcast %110 : f32 to vector<16x16xf32>
    %115 = arith.mulf %114, %113 : vector<16x16xf32>
    %116 = arith.addf %108, %115 : vector<16x16xf32>
    %117 = arith.index_cast %85 : i32 to index
    %c4_66 = arith.constant 4 : index
    %118 = memref.load %arg2[%117, %c4_66] : memref<4x9xf32, #tpu.memory_space<smem>>
    %c0_67 = arith.constant 0 : index
    %c1_68 = arith.constant 1 : index
    %c1_69 = arith.constant 1 : index
    %c1_70 = arith.constant 1 : index
    %119 = vector.load %arg3[%c0_67, %c1_68, %c1_69, %c1_70] : memref<1x4x18x18xbf16, #tpu.memory_space<vmem>>, vector<1x1x16x16xbf16>
    %120 = vector.shape_cast %119 : vector<1x1x16x16xbf16> to vector<16x16xbf16>
    %121 = arith.extf %120 : vector<16x16xbf16> to vector<16x16xf32>
    %122 = vector.broadcast %118 : f32 to vector<16x16xf32>
    %123 = arith.mulf %122, %121 : vector<16x16xf32>
    %124 = arith.addf %116, %123 : vector<16x16xf32>
    %125 = arith.index_cast %85 : i32 to index
    %c5_71 = arith.constant 5 : index
    %126 = memref.load %arg2[%125, %c5_71] : memref<4x9xf32, #tpu.memory_space<smem>>
    %c0_72 = arith.constant 0 : index
    %c1_73 = arith.constant 1 : index
    %c1_74 = arith.constant 1 : index
    %c2_75 = arith.constant 2 : index
    %127 = vector.load %arg3[%c0_72, %c1_73, %c1_74, %c2_75] : memref<1x4x18x18xbf16, #tpu.memory_space<vmem>>, vector<1x1x16x16xbf16>
    %128 = vector.shape_cast %127 : vector<1x1x16x16xbf16> to vector<16x16xbf16>
    %129 = arith.extf %128 : vector<16x16xbf16> to vector<16x16xf32>
    %130 = vector.broadcast %126 : f32 to vector<16x16xf32>
    %131 = arith.mulf %130, %129 : vector<16x16xf32>
    %132 = arith.addf %124, %131 : vector<16x16xf32>
    %133 = arith.index_cast %85 : i32 to index
    %c6_76 = arith.constant 6 : index
    %134 = memref.load %arg2[%133, %c6_76] : memref<4x9xf32, #tpu.memory_space<smem>>
    %c0_77 = arith.constant 0 : index
    %c1_78 = arith.constant 1 : index
    %c2_79 = arith.constant 2 : index
    %c0_80 = arith.constant 0 : index
    %135 = vector.load %arg3[%c0_77, %c1_78, %c2_79, %c0_80] : memref<1x4x18x18xbf16, #tpu.memory_space<vmem>>, vector<1x1x16x16xbf16>
    %136 = vector.shape_cast %135 : vector<1x1x16x16xbf16> to vector<16x16xbf16>
    %137 = arith.extf %136 : vector<16x16xbf16> to vector<16x16xf32>
    %138 = vector.broadcast %134 : f32 to vector<16x16xf32>
    %139 = arith.mulf %138, %137 : vector<16x16xf32>
    %140 = arith.addf %132, %139 : vector<16x16xf32>
    %141 = arith.index_cast %85 : i32 to index
    %c7_81 = arith.constant 7 : index
    %142 = memref.load %arg2[%141, %c7_81] : memref<4x9xf32, #tpu.memory_space<smem>>
    %c0_82 = arith.constant 0 : index
    %c1_83 = arith.constant 1 : index
    %c2_84 = arith.constant 2 : index
    %c1_85 = arith.constant 1 : index
    %143 = vector.load %arg3[%c0_82, %c1_83, %c2_84, %c1_85] : memref<1x4x18x18xbf16, #tpu.memory_space<vmem>>, vector<1x1x16x16xbf16>
    %144 = vector.shape_cast %143 : vector<1x1x16x16xbf16> to vector<16x16xbf16>
    %145 = arith.extf %144 : vector<16x16xbf16> to vector<16x16xf32>
    %146 = vector.broadcast %142 : f32 to vector<16x16xf32>
    %147 = arith.mulf %146, %145 : vector<16x16xf32>
    %148 = arith.addf %140, %147 : vector<16x16xf32>
    %149 = arith.index_cast %85 : i32 to index
    %c8_86 = arith.constant 8 : index
    %150 = memref.load %arg2[%149, %c8_86] : memref<4x9xf32, #tpu.memory_space<smem>>
    %c0_87 = arith.constant 0 : index
    %c1_88 = arith.constant 1 : index
    %c2_89 = arith.constant 2 : index
    %c2_90 = arith.constant 2 : index
    %151 = vector.load %arg3[%c0_87, %c1_88, %c2_89, %c2_90] : memref<1x4x18x18xbf16, #tpu.memory_space<vmem>>, vector<1x1x16x16xbf16>
    %152 = vector.shape_cast %151 : vector<1x1x16x16xbf16> to vector<16x16xbf16>
    %153 = arith.extf %152 : vector<16x16xbf16> to vector<16x16xf32>
    %154 = vector.broadcast %150 : f32 to vector<16x16xf32>
    %155 = arith.mulf %154, %153 : vector<16x16xf32>
    %156 = arith.addf %148, %155 : vector<16x16xf32>
    %cst_91 = arith.constant dense<0.000000e+00> : vector<16xf32>
    %157 = vector.multi_reduction <add>, %156, %cst_91 [0] : vector<16x16xf32> to vector<16xf32>
    %158 = vector.shape_cast %157 : vector<16xf32> to vector<1x16xf32>
    %c0_92 = arith.constant 0 : index
    %c1_93 = arith.constant 1 : index
    %c0_94 = arith.constant 0 : index
    %c0_95 = arith.constant 0 : index
    %159 = vector.load %arg4[%c0_92, %c1_93, %c0_94, %c0_95] : memref<1x4x2x16xf32, #tpu.memory_space<vmem>>, vector<1x1x1x16xf32>
    %160 = vector.shape_cast %159 : vector<1x1x1x16xf32> to vector<1x16xf32>
    %161 = vector.shape_cast %158 : vector<1x16xf32> to vector<1x1x1x16xf32>
    tpu.vector_store %arg4[%c0_92, %c1_93, %c0_94, %c0_95], %161 {strides = array<i32>} : memref<1x4x2x16xf32, #tpu.memory_space<vmem>>, vector<1x1x1x16xf32>,
    %162 = arith.mulf %156, %156 : vector<16x16xf32>
    %cst_96 = arith.constant dense<0.000000e+00> : vector<16xf32>
    %163 = vector.multi_reduction <add>, %162, %cst_96 [0] : vector<16x16xf32> to vector<16xf32>
    %164 = vector.shape_cast %163 : vector<16xf32> to vector<1x16xf32>
    %c0_97 = arith.constant 0 : index
    %c1_98 = arith.constant 1 : index
    %c1_99 = arith.constant 1 : index
    %c0_100 = arith.constant 0 : index
    %165 = vector.load %arg4[%c0_97, %c1_98, %c1_99, %c0_100] : memref<1x4x2x16xf32, #tpu.memory_space<vmem>>, vector<1x1x1x16xf32>
    %166 = vector.shape_cast %165 : vector<1x1x1x16xf32> to vector<1x16xf32>
    %167 = vector.shape_cast %164 : vector<1x16xf32> to vector<1x1x1x16xf32>
    tpu.vector_store %arg4[%c0_97, %c1_98, %c1_99, %c0_100], %167 {strides = array<i32>} : memref<1x4x2x16xf32, #tpu.memory_space<vmem>>, vector<1x1x1x16xf32>,
    %c4_i32_101 = arith.constant 4 : i32
    %168 = arith.muli %arg1, %c4_i32_101 : i32
    %c2_i32 = arith.constant 2 : i32
    %169 = arith.addi %168, %c2_i32 : i32
    %170 = arith.index_cast %169 : i32 to index
    %c0_102 = arith.constant 0 : index
    %171 = memref.load %arg2[%170, %c0_102] : memref<4x9xf32, #tpu.memory_space<smem>>
    %c0_103 = arith.constant 0 : index
    %c2_104 = arith.constant 2 : index
    %c0_105 = arith.constant 0 : index
    %c0_106 = arith.constant 0 : index
    %172 = vector.load %arg3[%c0_103, %c2_104, %c0_105, %c0_106] : memref<1x4x18x18xbf16, #tpu.memory_space<vmem>>, vector<1x1x16x16xbf16>
    %173 = vector.shape_cast %172 : vector<1x1x16x16xbf16> to vector<16x16xbf16>
    %174 = arith.extf %173 : vector<16x16xbf16> to vector<16x16xf32>
    %175 = vector.broadcast %171 : f32 to vector<16x16xf32>
    %176 = arith.mulf %175, %174 : vector<16x16xf32>
    %177 = arith.index_cast %169 : i32 to index
    %c1_107 = arith.constant 1 : index
    %178 = memref.load %arg2[%177, %c1_107] : memref<4x9xf32, #tpu.memory_space<smem>>
    %c0_108 = arith.constant 0 : index
    %c2_109 = arith.constant 2 : index
    %c0_110 = arith.constant 0 : index
    %c1_111 = arith.constant 1 : index
    %179 = vector.load %arg3[%c0_108, %c2_109, %c0_110, %c1_111] : memref<1x4x18x18xbf16, #tpu.memory_space<vmem>>, vector<1x1x16x16xbf16>
    %180 = vector.shape_cast %179 : vector<1x1x16x16xbf16> to vector<16x16xbf16>
    %181 = arith.extf %180 : vector<16x16xbf16> to vector<16x16xf32>
    %182 = vector.broadcast %178 : f32 to vector<16x16xf32>
    %183 = arith.mulf %182, %181 : vector<16x16xf32>
    %184 = arith.addf %176, %183 : vector<16x16xf32>
    %185 = arith.index_cast %169 : i32 to index
    %c2_112 = arith.constant 2 : index
    %186 = memref.load %arg2[%185, %c2_112] : memref<4x9xf32, #tpu.memory_space<smem>>
    %c0_113 = arith.constant 0 : index
    %c2_114 = arith.constant 2 : index
    %c0_115 = arith.constant 0 : index
    %c2_116 = arith.constant 2 : index
    %187 = vector.load %arg3[%c0_113, %c2_114, %c0_115, %c2_116] : memref<1x4x18x18xbf16, #tpu.memory_space<vmem>>, vector<1x1x16x16xbf16>
    %188 = vector.shape_cast %187 : vector<1x1x16x16xbf16> to vector<16x16xbf16>
    %189 = arith.extf %188 : vector<16x16xbf16> to vector<16x16xf32>
    %190 = vector.broadcast %186 : f32 to vector<16x16xf32>
    %191 = arith.mulf %190, %189 : vector<16x16xf32>
    %192 = arith.addf %184, %191 : vector<16x16xf32>
    %193 = arith.index_cast %169 : i32 to index
    %c3_117 = arith.constant 3 : index
    %194 = memref.load %arg2[%193, %c3_117] : memref<4x9xf32, #tpu.memory_space<smem>>
    %c0_118 = arith.constant 0 : index
    %c2_119 = arith.constant 2 : index
    %c1_120 = arith.constant 1 : index
    %c0_121 = arith.constant 0 : index
    %195 = vector.load %arg3[%c0_118, %c2_119, %c1_120, %c0_121] : memref<1x4x18x18xbf16, #tpu.memory_space<vmem>>, vector<1x1x16x16xbf16>
    %196 = vector.shape_cast %195 : vector<1x1x16x16xbf16> to vector<16x16xbf16>
    %197 = arith.extf %196 : vector<16x16xbf16> to vector<16x16xf32>
    %198 = vector.broadcast %194 : f32 to vector<16x16xf32>
    %199 = arith.mulf %198, %197 : vector<16x16xf32>
    %200 = arith.addf %192, %199 : vector<16x16xf32>
    %201 = arith.index_cast %169 : i32 to index
    %c4_122 = arith.constant 4 : index
    %202 = memref.load %arg2[%201, %c4_122] : memref<4x9xf32, #tpu.memory_space<smem>>
    %c0_123 = arith.constant 0 : index
    %c2_124 = arith.constant 2 : index
    %c1_125 = arith.constant 1 : index
    %c1_126 = arith.constant 1 : index
    %203 = vector.load %arg3[%c0_123, %c2_124, %c1_125, %c1_126] : memref<1x4x18x18xbf16, #tpu.memory_space<vmem>>, vector<1x1x16x16xbf16>
    %204 = vector.shape_cast %203 : vector<1x1x16x16xbf16> to vector<16x16xbf16>
    %205 = arith.extf %204 : vector<16x16xbf16> to vector<16x16xf32>
    %206 = vector.broadcast %202 : f32 to vector<16x16xf32>
    %207 = arith.mulf %206, %205 : vector<16x16xf32>
    %208 = arith.addf %200, %207 : vector<16x16xf32>
    %209 = arith.index_cast %169 : i32 to index
    %c5_127 = arith.constant 5 : index
    %210 = memref.load %arg2[%209, %c5_127] : memref<4x9xf32, #tpu.memory_space<smem>>
    %c0_128 = arith.constant 0 : index
    %c2_129 = arith.constant 2 : index
    %c1_130 = arith.constant 1 : index
    %c2_131 = arith.constant 2 : index
    %211 = vector.load %arg3[%c0_128, %c2_129, %c1_130, %c2_131] : memref<1x4x18x18xbf16, #tpu.memory_space<vmem>>, vector<1x1x16x16xbf16>
    %212 = vector.shape_cast %211 : vector<1x1x16x16xbf16> to vector<16x16xbf16>
    %213 = arith.extf %212 : vector<16x16xbf16> to vector<16x16xf32>
    %214 = vector.broadcast %210 : f32 to vector<16x16xf32>
    %215 = arith.mulf %214, %213 : vector<16x16xf32>
    %216 = arith.addf %208, %215 : vector<16x16xf32>
    %217 = arith.index_cast %169 : i32 to index
    %c6_132 = arith.constant 6 : index
    %218 = memref.load %arg2[%217, %c6_132] : memref<4x9xf32, #tpu.memory_space<smem>>
    %c0_133 = arith.constant 0 : index
    %c2_134 = arith.constant 2 : index
    %c2_135 = arith.constant 2 : index
    %c0_136 = arith.constant 0 : index
    %219 = vector.load %arg3[%c0_133, %c2_134, %c2_135, %c0_136] : memref<1x4x18x18xbf16, #tpu.memory_space<vmem>>, vector<1x1x16x16xbf16>
    %220 = vector.shape_cast %219 : vector<1x1x16x16xbf16> to vector<16x16xbf16>
    %221 = arith.extf %220 : vector<16x16xbf16> to vector<16x16xf32>
    %222 = vector.broadcast %218 : f32 to vector<16x16xf32>
    %223 = arith.mulf %222, %221 : vector<16x16xf32>
    %224 = arith.addf %216, %223 : vector<16x16xf32>
    %225 = arith.index_cast %169 : i32 to index
    %c7_137 = arith.constant 7 : index
    %226 = memref.load %arg2[%225, %c7_137] : memref<4x9xf32, #tpu.memory_space<smem>>
    %c0_138 = arith.constant 0 : index
    %c2_139 = arith.constant 2 : index
    %c2_140 = arith.constant 2 : index
    %c1_141 = arith.constant 1 : index
    %227 = vector.load %arg3[%c0_138, %c2_139, %c2_140, %c1_141] : memref<1x4x18x18xbf16, #tpu.memory_space<vmem>>, vector<1x1x16x16xbf16>
    %228 = vector.shape_cast %227 : vector<1x1x16x16xbf16> to vector<16x16xbf16>
    %229 = arith.extf %228 : vector<16x16xbf16> to vector<16x16xf32>
    %230 = vector.broadcast %226 : f32 to vector<16x16xf32>
    %231 = arith.mulf %230, %229 : vector<16x16xf32>
    %232 = arith.addf %224, %231 : vector<16x16xf32>
    %233 = arith.index_cast %169 : i32 to index
    %c8_142 = arith.constant 8 : index
    %234 = memref.load %arg2[%233, %c8_142] : memref<4x9xf32, #tpu.memory_space<smem>>
    %c0_143 = arith.constant 0 : index
    %c2_144 = arith.constant 2 : index
    %c2_145 = arith.constant 2 : index
    %c2_146 = arith.constant 2 : index
    %235 = vector.load %arg3[%c0_143, %c2_144, %c2_145, %c2_146] : memref<1x4x18x18xbf16, #tpu.memory_space<vmem>>, vector<1x1x16x16xbf16>
    %236 = vector.shape_cast %235 : vector<1x1x16x16xbf16> to vector<16x16xbf16>
    %237 = arith.extf %236 : vector<16x16xbf16> to vector<16x16xf32>
    %238 = vector.broadcast %234 : f32 to vector<16x16xf32>
    %239 = arith.mulf %238, %237 : vector<16x16xf32>
    %240 = arith.addf %232, %239 : vector<16x16xf32>
    %cst_147 = arith.constant dense<0.000000e+00> : vector<16xf32>
    %241 = vector.multi_reduction <add>, %240, %cst_147 [0] : vector<16x16xf32> to vector<16xf32>
    %242 = vector.shape_cast %241 : vector<16xf32> to vector<1x16xf32>
    %c0_148 = arith.constant 0 : index
    %c2_149 = arith.constant 2 : index
    %c0_150 = arith.constant 0 : index
    %c0_151 = arith.constant 0 : index
    %243 = vector.load %arg4[%c0_148, %c2_149, %c0_150, %c0_151] : memref<1x4x2x16xf32, #tpu.memory_space<vmem>>, vector<1x1x1x16xf32>
    %244 = vector.shape_cast %243 : vector<1x1x1x16xf32> to vector<1x16xf32>
    %245 = vector.shape_cast %242 : vector<1x16xf32> to vector<1x1x1x16xf32>
    tpu.vector_store %arg4[%c0_148, %c2_149, %c0_150, %c0_151], %245 {strides = array<i32>} : memref<1x4x2x16xf32, #tpu.memory_space<vmem>>, vector<1x1x1x16xf32>,
    %246 = arith.mulf %240, %240 : vector<16x16xf32>
    %cst_152 = arith.constant dense<0.000000e+00> : vector<16xf32>
    %247 = vector.multi_reduction <add>, %246, %cst_152 [0] : vector<16x16xf32> to vector<16xf32>
    %248 = vector.shape_cast %247 : vector<16xf32> to vector<1x16xf32>
    %c0_153 = arith.constant 0 : index
    %c2_154 = arith.constant 2 : index
    %c1_155 = arith.constant 1 : index
    %c0_156 = arith.constant 0 : index
    %249 = vector.load %arg4[%c0_153, %c2_154, %c1_155, %c0_156] : memref<1x4x2x16xf32, #tpu.memory_space<vmem>>, vector<1x1x1x16xf32>
    %250 = vector.shape_cast %249 : vector<1x1x1x16xf32> to vector<1x16xf32>
    %251 = vector.shape_cast %248 : vector<1x16xf32> to vector<1x1x1x16xf32>
    tpu.vector_store %arg4[%c0_153, %c2_154, %c1_155, %c0_156], %251 {strides = array<i32>} : memref<1x4x2x16xf32, #tpu.memory_space<vmem>>, vector<1x1x1x16xf32>,
    %c4_i32_157 = arith.constant 4 : i32
    %252 = arith.muli %arg1, %c4_i32_157 : i32
    %c3_i32 = arith.constant 3 : i32
    %253 = arith.addi %252, %c3_i32 : i32
    %254 = arith.index_cast %253 : i32 to index
    %c0_158 = arith.constant 0 : index
    %255 = memref.load %arg2[%254, %c0_158] : memref<4x9xf32, #tpu.memory_space<smem>>
    %c0_159 = arith.constant 0 : index
    %c3_160 = arith.constant 3 : index
    %c0_161 = arith.constant 0 : index
    %c0_162 = arith.constant 0 : index
    %256 = vector.load %arg3[%c0_159, %c3_160, %c0_161, %c0_162] : memref<1x4x18x18xbf16, #tpu.memory_space<vmem>>, vector<1x1x16x16xbf16>
    %257 = vector.shape_cast %256 : vector<1x1x16x16xbf16> to vector<16x16xbf16>
    %258 = arith.extf %257 : vector<16x16xbf16> to vector<16x16xf32>
    %259 = vector.broadcast %255 : f32 to vector<16x16xf32>
    %260 = arith.mulf %259, %258 : vector<16x16xf32>
    %261 = arith.index_cast %253 : i32 to index
    %c1_163 = arith.constant 1 : index
    %262 = memref.load %arg2[%261, %c1_163] : memref<4x9xf32, #tpu.memory_space<smem>>
    %c0_164 = arith.constant 0 : index
    %c3_165 = arith.constant 3 : index
    %c0_166 = arith.constant 0 : index
    %c1_167 = arith.constant 1 : index
    %263 = vector.load %arg3[%c0_164, %c3_165, %c0_166, %c1_167] : memref<1x4x18x18xbf16, #tpu.memory_space<vmem>>, vector<1x1x16x16xbf16>
    %264 = vector.shape_cast %263 : vector<1x1x16x16xbf16> to vector<16x16xbf16>
    %265 = arith.extf %264 : vector<16x16xbf16> to vector<16x16xf32>
    %266 = vector.broadcast %262 : f32 to vector<16x16xf32>
    %267 = arith.mulf %266, %265 : vector<16x16xf32>
    %268 = arith.addf %260, %267 : vector<16x16xf32>
    %269 = arith.index_cast %253 : i32 to index
    %c2_168 = arith.constant 2 : index
    %270 = memref.load %arg2[%269, %c2_168] : memref<4x9xf32, #tpu.memory_space<smem>>
    %c0_169 = arith.constant 0 : index
    %c3_170 = arith.constant 3 : index
    %c0_171 = arith.constant 0 : index
    %c2_172 = arith.constant 2 : index
    %271 = vector.load %arg3[%c0_169, %c3_170, %c0_171, %c2_172] : memref<1x4x18x18xbf16, #tpu.memory_space<vmem>>, vector<1x1x16x16xbf16>
    %272 = vector.shape_cast %271 : vector<1x1x16x16xbf16> to vector<16x16xbf16>
    %273 = arith.extf %272 : vector<16x16xbf16> to vector<16x16xf32>
    %274 = vector.broadcast %270 : f32 to vector<16x16xf32>
    %275 = arith.mulf %274, %273 : vector<16x16xf32>
    %276 = arith.addf %268, %275 : vector<16x16xf32>
    %277 = arith.index_cast %253 : i32 to index
    %c3_173 = arith.constant 3 : index
    %278 = memref.load %arg2[%277, %c3_173] : memref<4x9xf32, #tpu.memory_space<smem>>
    %c0_174 = arith.constant 0 : index
    %c3_175 = arith.constant 3 : index
    %c1_176 = arith.constant 1 : index
    %c0_177 = arith.constant 0 : index
    %279 = vector.load %arg3[%c0_174, %c3_175, %c1_176, %c0_177] : memref<1x4x18x18xbf16, #tpu.memory_space<vmem>>, vector<1x1x16x16xbf16>
    %280 = vector.shape_cast %279 : vector<1x1x16x16xbf16> to vector<16x16xbf16>
    %281 = arith.extf %280 : vector<16x16xbf16> to vector<16x16xf32>
    %282 = vector.broadcast %278 : f32 to vector<16x16xf32>
    %283 = arith.mulf %282, %281 : vector<16x16xf32>
    %284 = arith.addf %276, %283 : vector<16x16xf32>
    %285 = arith.index_cast %253 : i32 to index
    %c4_178 = arith.constant 4 : index
    %286 = memref.load %arg2[%285, %c4_178] : memref<4x9xf32, #tpu.memory_space<smem>>
    %c0_179 = arith.constant 0 : index
    %c3_180 = arith.constant 3 : index
    %c1_181 = arith.constant 1 : index
    %c1_182 = arith.constant 1 : index
    %287 = vector.load %arg3[%c0_179, %c3_180, %c1_181, %c1_182] : memref<1x4x18x18xbf16, #tpu.memory_space<vmem>>, vector<1x1x16x16xbf16>
    %288 = vector.shape_cast %287 : vector<1x1x16x16xbf16> to vector<16x16xbf16>
    %289 = arith.extf %288 : vector<16x16xbf16> to vector<16x16xf32>
    %290 = vector.broadcast %286 : f32 to vector<16x16xf32>
    %291 = arith.mulf %290, %289 : vector<16x16xf32>
    %292 = arith.addf %284, %291 : vector<16x16xf32>
    %293 = arith.index_cast %253 : i32 to index
    %c5_183 = arith.constant 5 : index
    %294 = memref.load %arg2[%293, %c5_183] : memref<4x9xf32, #tpu.memory_space<smem>>
    %c0_184 = arith.constant 0 : index
    %c3_185 = arith.constant 3 : index
    %c1_186 = arith.constant 1 : index
    %c2_187 = arith.constant 2 : index
    %295 = vector.load %arg3[%c0_184, %c3_185, %c1_186, %c2_187] : memref<1x4x18x18xbf16, #tpu.memory_space<vmem>>, vector<1x1x16x16xbf16>
    %296 = vector.shape_cast %295 : vector<1x1x16x16xbf16> to vector<16x16xbf16>
    %297 = arith.extf %296 : vector<16x16xbf16> to vector<16x16xf32>
    %298 = vector.broadcast %294 : f32 to vector<16x16xf32>
    %299 = arith.mulf %298, %297 : vector<16x16xf32>
    %300 = arith.addf %292, %299 : vector<16x16xf32>
    %301 = arith.index_cast %253 : i32 to index
    %c6_188 = arith.constant 6 : index
    %302 = memref.load %arg2[%301, %c6_188] : memref<4x9xf32, #tpu.memory_space<smem>>
    %c0_189 = arith.constant 0 : index
    %c3_190 = arith.constant 3 : index
    %c2_191 = arith.constant 2 : index
    %c0_192 = arith.constant 0 : index
    %303 = vector.load %arg3[%c0_189, %c3_190, %c2_191, %c0_192] : memref<1x4x18x18xbf16, #tpu.memory_space<vmem>>, vector<1x1x16x16xbf16>
    %304 = vector.shape_cast %303 : vector<1x1x16x16xbf16> to vector<16x16xbf16>
    %305 = arith.extf %304 : vector<16x16xbf16> to vector<16x16xf32>
    %306 = vector.broadcast %302 : f32 to vector<16x16xf32>
    %307 = arith.mulf %306, %305 : vector<16x16xf32>
    %308 = arith.addf %300, %307 : vector<16x16xf32>
    %309 = arith.index_cast %253 : i32 to index
    %c7_193 = arith.constant 7 : index
    %310 = memref.load %arg2[%309, %c7_193] : memref<4x9xf32, #tpu.memory_space<smem>>
    %c0_194 = arith.constant 0 : index
    %c3_195 = arith.constant 3 : index
    %c2_196 = arith.constant 2 : index
    %c1_197 = arith.constant 1 : index
    %311 = vector.load %arg3[%c0_194, %c3_195, %c2_196, %c1_197] : memref<1x4x18x18xbf16, #tpu.memory_space<vmem>>, vector<1x1x16x16xbf16>
    %312 = vector.shape_cast %311 : vector<1x1x16x16xbf16> to vector<16x16xbf16>
    %313 = arith.extf %312 : vector<16x16xbf16> to vector<16x16xf32>
    %314 = vector.broadcast %310 : f32 to vector<16x16xf32>
    %315 = arith.mulf %314, %313 : vector<16x16xf32>
    %316 = arith.addf %308, %315 : vector<16x16xf32>
    %317 = arith.index_cast %253 : i32 to index
    %c8_198 = arith.constant 8 : index
    %318 = memref.load %arg2[%317, %c8_198] : memref<4x9xf32, #tpu.memory_space<smem>>
    %c0_199 = arith.constant 0 : index
    %c3_200 = arith.constant 3 : index
    %c2_201 = arith.constant 2 : index
    %c2_202 = arith.constant 2 : index
    %319 = vector.load %arg3[%c0_199, %c3_200, %c2_201, %c2_202] : memref<1x4x18x18xbf16, #tpu.memory_space<vmem>>, vector<1x1x16x16xbf16>
    %320 = vector.shape_cast %319 : vector<1x1x16x16xbf16> to vector<16x16xbf16>
    %321 = arith.extf %320 : vector<16x16xbf16> to vector<16x16xf32>
    %322 = vector.broadcast %318 : f32 to vector<16x16xf32>
    %323 = arith.mulf %322, %321 : vector<16x16xf32>
    %324 = arith.addf %316, %323 : vector<16x16xf32>
    %cst_203 = arith.constant dense<0.000000e+00> : vector<16xf32>
    %325 = vector.multi_reduction <add>, %324, %cst_203 [0] : vector<16x16xf32> to vector<16xf32>
    %326 = vector.shape_cast %325 : vector<16xf32> to vector<1x16xf32>
    %c0_204 = arith.constant 0 : index
    %c3_205 = arith.constant 3 : index
    %c0_206 = arith.constant 0 : index
    %c0_207 = arith.constant 0 : index
    %327 = vector.load %arg4[%c0_204, %c3_205, %c0_206, %c0_207] : memref<1x4x2x16xf32, #tpu.memory_space<vmem>>, vector<1x1x1x16xf32>
    %328 = vector.shape_cast %327 : vector<1x1x1x16xf32> to vector<1x16xf32>
    %329 = vector.shape_cast %326 : vector<1x16xf32> to vector<1x1x1x16xf32>
    tpu.vector_store %arg4[%c0_204, %c3_205, %c0_206, %c0_207], %329 {strides = array<i32>} : memref<1x4x2x16xf32, #tpu.memory_space<vmem>>, vector<1x1x1x16xf32>,
    %330 = arith.mulf %324, %324 : vector<16x16xf32>
    %cst_208 = arith.constant dense<0.000000e+00> : vector<16xf32>
    %331 = vector.multi_reduction <add>, %330, %cst_208 [0] : vector<16x16xf32> to vector<16xf32>
    %332 = vector.shape_cast %331 : vector<16xf32> to vector<1x16xf32>
    %c0_209 = arith.constant 0 : index
    %c3_210 = arith.constant 3 : index
    %c1_211 = arith.constant 1 : index
    %c0_212 = arith.constant 0 : index
    %333 = vector.load %arg4[%c0_209, %c3_210, %c1_211, %c0_212] : memref<1x4x2x16xf32, #tpu.memory_space<vmem>>, vector<1x1x1x16xf32>
    %334 = vector.shape_cast %333 : vector<1x1x1x16xf32> to vector<1x16xf32>
    %335 = vector.shape_cast %332 : vector<1x16xf32> to vector<1x1x1x16xf32>
    tpu.vector_store %arg4[%c0_209, %c3_210, %c1_211, %c0_212], %335 {strides = array<i32>} : memref<1x4x2x16xf32, #tpu.memory_space<vmem>>, vector<1x1x1x16xf32>,
    return
  }
  func.func @transform_0(%arg0: i32, %arg1: i32) -> (i32, i32) {
    %c0_i32 = arith.constant 0 : i32
    %c0_i32_0 = arith.constant 0 : i32
    %c0_i32_1 = arith.constant 0 : i32
    return %c0_i32, %c0_i32_0 : i32, i32
  }
  func.func @transform_1(%arg0: i32, %arg1: i32) -> (i32, i32, i32, i32) {
    %c0_i32 = arith.constant 0 : i32
    %c0_i32_0 = arith.constant 0 : i32
    %c0_i32_1 = arith.constant 0 : i32
    return %arg0, %arg1, %c0_i32, %c0_i32_0 : i32, i32, i32, i32
  }
  func.func @transform_2(%arg0: i32, %arg1: i32) -> (i32, i32, i32, i32) {
    %c0_i32 = arith.constant 0 : i32
    %c0_i32_0 = arith.constant 0 : i32
    %c0_i32_1 = arith.constant 0 : i32
    return %arg0, %arg1, %c0_i32, %c0_i32_0 : i32, i32, i32, i32
  }
}

module attributes {stable_mosaic.version = 11 : i64} {
  func.func @_group_act_kernel(%arg0: i32, %arg1: i32, %arg2: memref<4x9xf32, #tpu.memory_space<smem>>, %arg3: memref<4x2xf32, #tpu.memory_space<smem>>, %arg4: memref<1x4x18x18xbf16, #tpu.memory_space<vmem>>, %arg5: memref<1x4x16x16xbf16, #tpu.memory_space<vmem>>) attributes {dimension_semantics = [#tpu.dimension_semantics<parallel>, #tpu.dimension_semantics<parallel>], iteration_bounds = array<i64: 2, 1>, scalar_prefetch = 0 : i64, scratch_operands = 0 : i64, tpu.core_type = #tpu.core_type<tc>, window_params = [{transform_indices = @transform_0, window_bounds = array<i64: 4, 9>}, {transform_indices = @transform_1, window_bounds = array<i64: 4, 2>}, {transform_indices = @transform_2, window_bounds = array<i64: 1, 4, 18, 18>}, {transform_indices = @transform_3, window_bounds = array<i64: 1, 4, 16, 16>}]} {
    %c4_i32 = arith.constant 4 : i32
    %0 = arith.muli %arg1, %c4_i32 : i32
    %c0_i32 = arith.constant 0 : i32
    %1 = arith.addi %0, %c0_i32 : i32
    %2 = arith.index_cast %1 : i32 to index
    %c0 = arith.constant 0 : index
    %3 = memref.load %arg2[%2, %c0] : memref<4x9xf32, #tpu.memory_space<smem>>
    %c0_0 = arith.constant 0 : index
    %c0_1 = arith.constant 0 : index
    %c0_2 = arith.constant 0 : index
    %c0_3 = arith.constant 0 : index
    %4 = vector.load %arg4[%c0_0, %c0_1, %c0_2, %c0_3] : memref<1x4x18x18xbf16, #tpu.memory_space<vmem>>, vector<1x1x16x16xbf16>
    %5 = vector.shape_cast %4 : vector<1x1x16x16xbf16> to vector<16x16xbf16>
    %6 = arith.extf %5 : vector<16x16xbf16> to vector<16x16xf32>
    %7 = vector.broadcast %3 : f32 to vector<16x16xf32>
    %8 = arith.mulf %7, %6 : vector<16x16xf32>
    %9 = arith.index_cast %1 : i32 to index
    %c1 = arith.constant 1 : index
    %10 = memref.load %arg2[%9, %c1] : memref<4x9xf32, #tpu.memory_space<smem>>
    %c0_4 = arith.constant 0 : index
    %c0_5 = arith.constant 0 : index
    %c0_6 = arith.constant 0 : index
    %c1_7 = arith.constant 1 : index
    %11 = vector.load %arg4[%c0_4, %c0_5, %c0_6, %c1_7] : memref<1x4x18x18xbf16, #tpu.memory_space<vmem>>, vector<1x1x16x16xbf16>
    %12 = vector.shape_cast %11 : vector<1x1x16x16xbf16> to vector<16x16xbf16>
    %13 = arith.extf %12 : vector<16x16xbf16> to vector<16x16xf32>
    %14 = vector.broadcast %10 : f32 to vector<16x16xf32>
    %15 = arith.mulf %14, %13 : vector<16x16xf32>
    %16 = arith.addf %8, %15 : vector<16x16xf32>
    %17 = arith.index_cast %1 : i32 to index
    %c2 = arith.constant 2 : index
    %18 = memref.load %arg2[%17, %c2] : memref<4x9xf32, #tpu.memory_space<smem>>
    %c0_8 = arith.constant 0 : index
    %c0_9 = arith.constant 0 : index
    %c0_10 = arith.constant 0 : index
    %c2_11 = arith.constant 2 : index
    %19 = vector.load %arg4[%c0_8, %c0_9, %c0_10, %c2_11] : memref<1x4x18x18xbf16, #tpu.memory_space<vmem>>, vector<1x1x16x16xbf16>
    %20 = vector.shape_cast %19 : vector<1x1x16x16xbf16> to vector<16x16xbf16>
    %21 = arith.extf %20 : vector<16x16xbf16> to vector<16x16xf32>
    %22 = vector.broadcast %18 : f32 to vector<16x16xf32>
    %23 = arith.mulf %22, %21 : vector<16x16xf32>
    %24 = arith.addf %16, %23 : vector<16x16xf32>
    %25 = arith.index_cast %1 : i32 to index
    %c3 = arith.constant 3 : index
    %26 = memref.load %arg2[%25, %c3] : memref<4x9xf32, #tpu.memory_space<smem>>
    %c0_12 = arith.constant 0 : index
    %c0_13 = arith.constant 0 : index
    %c1_14 = arith.constant 1 : index
    %c0_15 = arith.constant 0 : index
    %27 = vector.load %arg4[%c0_12, %c0_13, %c1_14, %c0_15] : memref<1x4x18x18xbf16, #tpu.memory_space<vmem>>, vector<1x1x16x16xbf16>
    %28 = vector.shape_cast %27 : vector<1x1x16x16xbf16> to vector<16x16xbf16>
    %29 = arith.extf %28 : vector<16x16xbf16> to vector<16x16xf32>
    %30 = vector.broadcast %26 : f32 to vector<16x16xf32>
    %31 = arith.mulf %30, %29 : vector<16x16xf32>
    %32 = arith.addf %24, %31 : vector<16x16xf32>
    %33 = arith.index_cast %1 : i32 to index
    %c4 = arith.constant 4 : index
    %34 = memref.load %arg2[%33, %c4] : memref<4x9xf32, #tpu.memory_space<smem>>
    %c0_16 = arith.constant 0 : index
    %c0_17 = arith.constant 0 : index
    %c1_18 = arith.constant 1 : index
    %c1_19 = arith.constant 1 : index
    %35 = vector.load %arg4[%c0_16, %c0_17, %c1_18, %c1_19] : memref<1x4x18x18xbf16, #tpu.memory_space<vmem>>, vector<1x1x16x16xbf16>
    %36 = vector.shape_cast %35 : vector<1x1x16x16xbf16> to vector<16x16xbf16>
    %37 = arith.extf %36 : vector<16x16xbf16> to vector<16x16xf32>
    %38 = vector.broadcast %34 : f32 to vector<16x16xf32>
    %39 = arith.mulf %38, %37 : vector<16x16xf32>
    %40 = arith.addf %32, %39 : vector<16x16xf32>
    %41 = arith.index_cast %1 : i32 to index
    %c5 = arith.constant 5 : index
    %42 = memref.load %arg2[%41, %c5] : memref<4x9xf32, #tpu.memory_space<smem>>
    %c0_20 = arith.constant 0 : index
    %c0_21 = arith.constant 0 : index
    %c1_22 = arith.constant 1 : index
    %c2_23 = arith.constant 2 : index
    %43 = vector.load %arg4[%c0_20, %c0_21, %c1_22, %c2_23] : memref<1x4x18x18xbf16, #tpu.memory_space<vmem>>, vector<1x1x16x16xbf16>
    %44 = vector.shape_cast %43 : vector<1x1x16x16xbf16> to vector<16x16xbf16>
    %45 = arith.extf %44 : vector<16x16xbf16> to vector<16x16xf32>
    %46 = vector.broadcast %42 : f32 to vector<16x16xf32>
    %47 = arith.mulf %46, %45 : vector<16x16xf32>
    %48 = arith.addf %40, %47 : vector<16x16xf32>
    %49 = arith.index_cast %1 : i32 to index
    %c6 = arith.constant 6 : index
    %50 = memref.load %arg2[%49, %c6] : memref<4x9xf32, #tpu.memory_space<smem>>
    %c0_24 = arith.constant 0 : index
    %c0_25 = arith.constant 0 : index
    %c2_26 = arith.constant 2 : index
    %c0_27 = arith.constant 0 : index
    %51 = vector.load %arg4[%c0_24, %c0_25, %c2_26, %c0_27] : memref<1x4x18x18xbf16, #tpu.memory_space<vmem>>, vector<1x1x16x16xbf16>
    %52 = vector.shape_cast %51 : vector<1x1x16x16xbf16> to vector<16x16xbf16>
    %53 = arith.extf %52 : vector<16x16xbf16> to vector<16x16xf32>
    %54 = vector.broadcast %50 : f32 to vector<16x16xf32>
    %55 = arith.mulf %54, %53 : vector<16x16xf32>
    %56 = arith.addf %48, %55 : vector<16x16xf32>
    %57 = arith.index_cast %1 : i32 to index
    %c7 = arith.constant 7 : index
    %58 = memref.load %arg2[%57, %c7] : memref<4x9xf32, #tpu.memory_space<smem>>
    %c0_28 = arith.constant 0 : index
    %c0_29 = arith.constant 0 : index
    %c2_30 = arith.constant 2 : index
    %c1_31 = arith.constant 1 : index
    %59 = vector.load %arg4[%c0_28, %c0_29, %c2_30, %c1_31] : memref<1x4x18x18xbf16, #tpu.memory_space<vmem>>, vector<1x1x16x16xbf16>
    %60 = vector.shape_cast %59 : vector<1x1x16x16xbf16> to vector<16x16xbf16>
    %61 = arith.extf %60 : vector<16x16xbf16> to vector<16x16xf32>
    %62 = vector.broadcast %58 : f32 to vector<16x16xf32>
    %63 = arith.mulf %62, %61 : vector<16x16xf32>
    %64 = arith.addf %56, %63 : vector<16x16xf32>
    %65 = arith.index_cast %1 : i32 to index
    %c8 = arith.constant 8 : index
    %66 = memref.load %arg2[%65, %c8] : memref<4x9xf32, #tpu.memory_space<smem>>
    %c0_32 = arith.constant 0 : index
    %c0_33 = arith.constant 0 : index
    %c2_34 = arith.constant 2 : index
    %c2_35 = arith.constant 2 : index
    %67 = vector.load %arg4[%c0_32, %c0_33, %c2_34, %c2_35] : memref<1x4x18x18xbf16, #tpu.memory_space<vmem>>, vector<1x1x16x16xbf16>
    %68 = vector.shape_cast %67 : vector<1x1x16x16xbf16> to vector<16x16xbf16>
    %69 = arith.extf %68 : vector<16x16xbf16> to vector<16x16xf32>
    %70 = vector.broadcast %66 : f32 to vector<16x16xf32>
    %71 = arith.mulf %70, %69 : vector<16x16xf32>
    %72 = arith.addf %64, %71 : vector<16x16xf32>
    %73 = arith.index_cast %1 : i32 to index
    %c0_36 = arith.constant 0 : index
    %74 = memref.load %arg3[%73, %c0_36] : memref<4x2xf32, #tpu.memory_space<smem>>
    %75 = vector.broadcast %74 : f32 to vector<16x16xf32>
    %76 = arith.addf %72, %75 : vector<16x16xf32>
    %77 = arith.index_cast %1 : i32 to index
    %c1_37 = arith.constant 1 : index
    %78 = memref.load %arg3[%77, %c1_37] : memref<4x2xf32, #tpu.memory_space<smem>>
    %cst = arith.constant 0.000000e+00 : f32
    %79 = vector.broadcast %cst : f32 to vector<16x16xf32>
    %80 = arith.cmpf ogt, %76, %79 : vector<16x16xf32>
    %81 = vector.broadcast %78 : f32 to vector<16x16xf32>
    %82 = arith.mulf %81, %76 : vector<16x16xf32>
    %83 = arith.select %80, %76, %82 : vector<16x16xi1>, vector<16x16xf32>
    %84 = arith.truncf %83 : vector<16x16xf32> to vector<16x16xbf16>
    %c0_38 = arith.constant 0 : index
    %c0_39 = arith.constant 0 : index
    %c0_40 = arith.constant 0 : index
    %c0_41 = arith.constant 0 : index
    %85 = vector.load %arg5[%c0_38, %c0_39, %c0_40, %c0_41] : memref<1x4x16x16xbf16, #tpu.memory_space<vmem>>, vector<1x1x16x16xbf16>
    %86 = vector.shape_cast %85 : vector<1x1x16x16xbf16> to vector<16x16xbf16>
    %87 = vector.shape_cast %84 : vector<16x16xbf16> to vector<1x1x16x16xbf16>
    tpu.vector_store %arg5[%c0_38, %c0_39, %c0_40, %c0_41], %87 {strides = array<i32>} : memref<1x4x16x16xbf16, #tpu.memory_space<vmem>>, vector<1x1x16x16xbf16>,
    %c4_i32_42 = arith.constant 4 : i32
    %88 = arith.muli %arg1, %c4_i32_42 : i32
    %c1_i32 = arith.constant 1 : i32
    %89 = arith.addi %88, %c1_i32 : i32
    %90 = arith.index_cast %89 : i32 to index
    %c0_43 = arith.constant 0 : index
    %91 = memref.load %arg2[%90, %c0_43] : memref<4x9xf32, #tpu.memory_space<smem>>
    %c0_44 = arith.constant 0 : index
    %c1_45 = arith.constant 1 : index
    %c0_46 = arith.constant 0 : index
    %c0_47 = arith.constant 0 : index
    %92 = vector.load %arg4[%c0_44, %c1_45, %c0_46, %c0_47] : memref<1x4x18x18xbf16, #tpu.memory_space<vmem>>, vector<1x1x16x16xbf16>
    %93 = vector.shape_cast %92 : vector<1x1x16x16xbf16> to vector<16x16xbf16>
    %94 = arith.extf %93 : vector<16x16xbf16> to vector<16x16xf32>
    %95 = vector.broadcast %91 : f32 to vector<16x16xf32>
    %96 = arith.mulf %95, %94 : vector<16x16xf32>
    %97 = arith.index_cast %89 : i32 to index
    %c1_48 = arith.constant 1 : index
    %98 = memref.load %arg2[%97, %c1_48] : memref<4x9xf32, #tpu.memory_space<smem>>
    %c0_49 = arith.constant 0 : index
    %c1_50 = arith.constant 1 : index
    %c0_51 = arith.constant 0 : index
    %c1_52 = arith.constant 1 : index
    %99 = vector.load %arg4[%c0_49, %c1_50, %c0_51, %c1_52] : memref<1x4x18x18xbf16, #tpu.memory_space<vmem>>, vector<1x1x16x16xbf16>
    %100 = vector.shape_cast %99 : vector<1x1x16x16xbf16> to vector<16x16xbf16>
    %101 = arith.extf %100 : vector<16x16xbf16> to vector<16x16xf32>
    %102 = vector.broadcast %98 : f32 to vector<16x16xf32>
    %103 = arith.mulf %102, %101 : vector<16x16xf32>
    %104 = arith.addf %96, %103 : vector<16x16xf32>
    %105 = arith.index_cast %89 : i32 to index
    %c2_53 = arith.constant 2 : index
    %106 = memref.load %arg2[%105, %c2_53] : memref<4x9xf32, #tpu.memory_space<smem>>
    %c0_54 = arith.constant 0 : index
    %c1_55 = arith.constant 1 : index
    %c0_56 = arith.constant 0 : index
    %c2_57 = arith.constant 2 : index
    %107 = vector.load %arg4[%c0_54, %c1_55, %c0_56, %c2_57] : memref<1x4x18x18xbf16, #tpu.memory_space<vmem>>, vector<1x1x16x16xbf16>
    %108 = vector.shape_cast %107 : vector<1x1x16x16xbf16> to vector<16x16xbf16>
    %109 = arith.extf %108 : vector<16x16xbf16> to vector<16x16xf32>
    %110 = vector.broadcast %106 : f32 to vector<16x16xf32>
    %111 = arith.mulf %110, %109 : vector<16x16xf32>
    %112 = arith.addf %104, %111 : vector<16x16xf32>
    %113 = arith.index_cast %89 : i32 to index
    %c3_58 = arith.constant 3 : index
    %114 = memref.load %arg2[%113, %c3_58] : memref<4x9xf32, #tpu.memory_space<smem>>
    %c0_59 = arith.constant 0 : index
    %c1_60 = arith.constant 1 : index
    %c1_61 = arith.constant 1 : index
    %c0_62 = arith.constant 0 : index
    %115 = vector.load %arg4[%c0_59, %c1_60, %c1_61, %c0_62] : memref<1x4x18x18xbf16, #tpu.memory_space<vmem>>, vector<1x1x16x16xbf16>
    %116 = vector.shape_cast %115 : vector<1x1x16x16xbf16> to vector<16x16xbf16>
    %117 = arith.extf %116 : vector<16x16xbf16> to vector<16x16xf32>
    %118 = vector.broadcast %114 : f32 to vector<16x16xf32>
    %119 = arith.mulf %118, %117 : vector<16x16xf32>
    %120 = arith.addf %112, %119 : vector<16x16xf32>
    %121 = arith.index_cast %89 : i32 to index
    %c4_63 = arith.constant 4 : index
    %122 = memref.load %arg2[%121, %c4_63] : memref<4x9xf32, #tpu.memory_space<smem>>
    %c0_64 = arith.constant 0 : index
    %c1_65 = arith.constant 1 : index
    %c1_66 = arith.constant 1 : index
    %c1_67 = arith.constant 1 : index
    %123 = vector.load %arg4[%c0_64, %c1_65, %c1_66, %c1_67] : memref<1x4x18x18xbf16, #tpu.memory_space<vmem>>, vector<1x1x16x16xbf16>
    %124 = vector.shape_cast %123 : vector<1x1x16x16xbf16> to vector<16x16xbf16>
    %125 = arith.extf %124 : vector<16x16xbf16> to vector<16x16xf32>
    %126 = vector.broadcast %122 : f32 to vector<16x16xf32>
    %127 = arith.mulf %126, %125 : vector<16x16xf32>
    %128 = arith.addf %120, %127 : vector<16x16xf32>
    %129 = arith.index_cast %89 : i32 to index
    %c5_68 = arith.constant 5 : index
    %130 = memref.load %arg2[%129, %c5_68] : memref<4x9xf32, #tpu.memory_space<smem>>
    %c0_69 = arith.constant 0 : index
    %c1_70 = arith.constant 1 : index
    %c1_71 = arith.constant 1 : index
    %c2_72 = arith.constant 2 : index
    %131 = vector.load %arg4[%c0_69, %c1_70, %c1_71, %c2_72] : memref<1x4x18x18xbf16, #tpu.memory_space<vmem>>, vector<1x1x16x16xbf16>
    %132 = vector.shape_cast %131 : vector<1x1x16x16xbf16> to vector<16x16xbf16>
    %133 = arith.extf %132 : vector<16x16xbf16> to vector<16x16xf32>
    %134 = vector.broadcast %130 : f32 to vector<16x16xf32>
    %135 = arith.mulf %134, %133 : vector<16x16xf32>
    %136 = arith.addf %128, %135 : vector<16x16xf32>
    %137 = arith.index_cast %89 : i32 to index
    %c6_73 = arith.constant 6 : index
    %138 = memref.load %arg2[%137, %c6_73] : memref<4x9xf32, #tpu.memory_space<smem>>
    %c0_74 = arith.constant 0 : index
    %c1_75 = arith.constant 1 : index
    %c2_76 = arith.constant 2 : index
    %c0_77 = arith.constant 0 : index
    %139 = vector.load %arg4[%c0_74, %c1_75, %c2_76, %c0_77] : memref<1x4x18x18xbf16, #tpu.memory_space<vmem>>, vector<1x1x16x16xbf16>
    %140 = vector.shape_cast %139 : vector<1x1x16x16xbf16> to vector<16x16xbf16>
    %141 = arith.extf %140 : vector<16x16xbf16> to vector<16x16xf32>
    %142 = vector.broadcast %138 : f32 to vector<16x16xf32>
    %143 = arith.mulf %142, %141 : vector<16x16xf32>
    %144 = arith.addf %136, %143 : vector<16x16xf32>
    %145 = arith.index_cast %89 : i32 to index
    %c7_78 = arith.constant 7 : index
    %146 = memref.load %arg2[%145, %c7_78] : memref<4x9xf32, #tpu.memory_space<smem>>
    %c0_79 = arith.constant 0 : index
    %c1_80 = arith.constant 1 : index
    %c2_81 = arith.constant 2 : index
    %c1_82 = arith.constant 1 : index
    %147 = vector.load %arg4[%c0_79, %c1_80, %c2_81, %c1_82] : memref<1x4x18x18xbf16, #tpu.memory_space<vmem>>, vector<1x1x16x16xbf16>
    %148 = vector.shape_cast %147 : vector<1x1x16x16xbf16> to vector<16x16xbf16>
    %149 = arith.extf %148 : vector<16x16xbf16> to vector<16x16xf32>
    %150 = vector.broadcast %146 : f32 to vector<16x16xf32>
    %151 = arith.mulf %150, %149 : vector<16x16xf32>
    %152 = arith.addf %144, %151 : vector<16x16xf32>
    %153 = arith.index_cast %89 : i32 to index
    %c8_83 = arith.constant 8 : index
    %154 = memref.load %arg2[%153, %c8_83] : memref<4x9xf32, #tpu.memory_space<smem>>
    %c0_84 = arith.constant 0 : index
    %c1_85 = arith.constant 1 : index
    %c2_86 = arith.constant 2 : index
    %c2_87 = arith.constant 2 : index
    %155 = vector.load %arg4[%c0_84, %c1_85, %c2_86, %c2_87] : memref<1x4x18x18xbf16, #tpu.memory_space<vmem>>, vector<1x1x16x16xbf16>
    %156 = vector.shape_cast %155 : vector<1x1x16x16xbf16> to vector<16x16xbf16>
    %157 = arith.extf %156 : vector<16x16xbf16> to vector<16x16xf32>
    %158 = vector.broadcast %154 : f32 to vector<16x16xf32>
    %159 = arith.mulf %158, %157 : vector<16x16xf32>
    %160 = arith.addf %152, %159 : vector<16x16xf32>
    %161 = arith.index_cast %89 : i32 to index
    %c0_88 = arith.constant 0 : index
    %162 = memref.load %arg3[%161, %c0_88] : memref<4x2xf32, #tpu.memory_space<smem>>
    %163 = vector.broadcast %162 : f32 to vector<16x16xf32>
    %164 = arith.addf %160, %163 : vector<16x16xf32>
    %165 = arith.index_cast %89 : i32 to index
    %c1_89 = arith.constant 1 : index
    %166 = memref.load %arg3[%165, %c1_89] : memref<4x2xf32, #tpu.memory_space<smem>>
    %cst_90 = arith.constant 0.000000e+00 : f32
    %167 = vector.broadcast %cst_90 : f32 to vector<16x16xf32>
    %168 = arith.cmpf ogt, %164, %167 : vector<16x16xf32>
    %169 = vector.broadcast %166 : f32 to vector<16x16xf32>
    %170 = arith.mulf %169, %164 : vector<16x16xf32>
    %171 = arith.select %168, %164, %170 : vector<16x16xi1>, vector<16x16xf32>
    %172 = arith.truncf %171 : vector<16x16xf32> to vector<16x16xbf16>
    %c0_91 = arith.constant 0 : index
    %c1_92 = arith.constant 1 : index
    %c0_93 = arith.constant 0 : index
    %c0_94 = arith.constant 0 : index
    %173 = vector.load %arg5[%c0_91, %c1_92, %c0_93, %c0_94] : memref<1x4x16x16xbf16, #tpu.memory_space<vmem>>, vector<1x1x16x16xbf16>
    %174 = vector.shape_cast %173 : vector<1x1x16x16xbf16> to vector<16x16xbf16>
    %175 = vector.shape_cast %172 : vector<16x16xbf16> to vector<1x1x16x16xbf16>
    tpu.vector_store %arg5[%c0_91, %c1_92, %c0_93, %c0_94], %175 {strides = array<i32>} : memref<1x4x16x16xbf16, #tpu.memory_space<vmem>>, vector<1x1x16x16xbf16>,
    %c4_i32_95 = arith.constant 4 : i32
    %176 = arith.muli %arg1, %c4_i32_95 : i32
    %c2_i32 = arith.constant 2 : i32
    %177 = arith.addi %176, %c2_i32 : i32
    %178 = arith.index_cast %177 : i32 to index
    %c0_96 = arith.constant 0 : index
    %179 = memref.load %arg2[%178, %c0_96] : memref<4x9xf32, #tpu.memory_space<smem>>
    %c0_97 = arith.constant 0 : index
    %c2_98 = arith.constant 2 : index
    %c0_99 = arith.constant 0 : index
    %c0_100 = arith.constant 0 : index
    %180 = vector.load %arg4[%c0_97, %c2_98, %c0_99, %c0_100] : memref<1x4x18x18xbf16, #tpu.memory_space<vmem>>, vector<1x1x16x16xbf16>
    %181 = vector.shape_cast %180 : vector<1x1x16x16xbf16> to vector<16x16xbf16>
    %182 = arith.extf %181 : vector<16x16xbf16> to vector<16x16xf32>
    %183 = vector.broadcast %179 : f32 to vector<16x16xf32>
    %184 = arith.mulf %183, %182 : vector<16x16xf32>
    %185 = arith.index_cast %177 : i32 to index
    %c1_101 = arith.constant 1 : index
    %186 = memref.load %arg2[%185, %c1_101] : memref<4x9xf32, #tpu.memory_space<smem>>
    %c0_102 = arith.constant 0 : index
    %c2_103 = arith.constant 2 : index
    %c0_104 = arith.constant 0 : index
    %c1_105 = arith.constant 1 : index
    %187 = vector.load %arg4[%c0_102, %c2_103, %c0_104, %c1_105] : memref<1x4x18x18xbf16, #tpu.memory_space<vmem>>, vector<1x1x16x16xbf16>
    %188 = vector.shape_cast %187 : vector<1x1x16x16xbf16> to vector<16x16xbf16>
    %189 = arith.extf %188 : vector<16x16xbf16> to vector<16x16xf32>
    %190 = vector.broadcast %186 : f32 to vector<16x16xf32>
    %191 = arith.mulf %190, %189 : vector<16x16xf32>
    %192 = arith.addf %184, %191 : vector<16x16xf32>
    %193 = arith.index_cast %177 : i32 to index
    %c2_106 = arith.constant 2 : index
    %194 = memref.load %arg2[%193, %c2_106] : memref<4x9xf32, #tpu.memory_space<smem>>
    %c0_107 = arith.constant 0 : index
    %c2_108 = arith.constant 2 : index
    %c0_109 = arith.constant 0 : index
    %c2_110 = arith.constant 2 : index
    %195 = vector.load %arg4[%c0_107, %c2_108, %c0_109, %c2_110] : memref<1x4x18x18xbf16, #tpu.memory_space<vmem>>, vector<1x1x16x16xbf16>
    %196 = vector.shape_cast %195 : vector<1x1x16x16xbf16> to vector<16x16xbf16>
    %197 = arith.extf %196 : vector<16x16xbf16> to vector<16x16xf32>
    %198 = vector.broadcast %194 : f32 to vector<16x16xf32>
    %199 = arith.mulf %198, %197 : vector<16x16xf32>
    %200 = arith.addf %192, %199 : vector<16x16xf32>
    %201 = arith.index_cast %177 : i32 to index
    %c3_111 = arith.constant 3 : index
    %202 = memref.load %arg2[%201, %c3_111] : memref<4x9xf32, #tpu.memory_space<smem>>
    %c0_112 = arith.constant 0 : index
    %c2_113 = arith.constant 2 : index
    %c1_114 = arith.constant 1 : index
    %c0_115 = arith.constant 0 : index
    %203 = vector.load %arg4[%c0_112, %c2_113, %c1_114, %c0_115] : memref<1x4x18x18xbf16, #tpu.memory_space<vmem>>, vector<1x1x16x16xbf16>
    %204 = vector.shape_cast %203 : vector<1x1x16x16xbf16> to vector<16x16xbf16>
    %205 = arith.extf %204 : vector<16x16xbf16> to vector<16x16xf32>
    %206 = vector.broadcast %202 : f32 to vector<16x16xf32>
    %207 = arith.mulf %206, %205 : vector<16x16xf32>
    %208 = arith.addf %200, %207 : vector<16x16xf32>
    %209 = arith.index_cast %177 : i32 to index
    %c4_116 = arith.constant 4 : index
    %210 = memref.load %arg2[%209, %c4_116] : memref<4x9xf32, #tpu.memory_space<smem>>
    %c0_117 = arith.constant 0 : index
    %c2_118 = arith.constant 2 : index
    %c1_119 = arith.constant 1 : index
    %c1_120 = arith.constant 1 : index
    %211 = vector.load %arg4[%c0_117, %c2_118, %c1_119, %c1_120] : memref<1x4x18x18xbf16, #tpu.memory_space<vmem>>, vector<1x1x16x16xbf16>
    %212 = vector.shape_cast %211 : vector<1x1x16x16xbf16> to vector<16x16xbf16>
    %213 = arith.extf %212 : vector<16x16xbf16> to vector<16x16xf32>
    %214 = vector.broadcast %210 : f32 to vector<16x16xf32>
    %215 = arith.mulf %214, %213 : vector<16x16xf32>
    %216 = arith.addf %208, %215 : vector<16x16xf32>
    %217 = arith.index_cast %177 : i32 to index
    %c5_121 = arith.constant 5 : index
    %218 = memref.load %arg2[%217, %c5_121] : memref<4x9xf32, #tpu.memory_space<smem>>
    %c0_122 = arith.constant 0 : index
    %c2_123 = arith.constant 2 : index
    %c1_124 = arith.constant 1 : index
    %c2_125 = arith.constant 2 : index
    %219 = vector.load %arg4[%c0_122, %c2_123, %c1_124, %c2_125] : memref<1x4x18x18xbf16, #tpu.memory_space<vmem>>, vector<1x1x16x16xbf16>
    %220 = vector.shape_cast %219 : vector<1x1x16x16xbf16> to vector<16x16xbf16>
    %221 = arith.extf %220 : vector<16x16xbf16> to vector<16x16xf32>
    %222 = vector.broadcast %218 : f32 to vector<16x16xf32>
    %223 = arith.mulf %222, %221 : vector<16x16xf32>
    %224 = arith.addf %216, %223 : vector<16x16xf32>
    %225 = arith.index_cast %177 : i32 to index
    %c6_126 = arith.constant 6 : index
    %226 = memref.load %arg2[%225, %c6_126] : memref<4x9xf32, #tpu.memory_space<smem>>
    %c0_127 = arith.constant 0 : index
    %c2_128 = arith.constant 2 : index
    %c2_129 = arith.constant 2 : index
    %c0_130 = arith.constant 0 : index
    %227 = vector.load %arg4[%c0_127, %c2_128, %c2_129, %c0_130] : memref<1x4x18x18xbf16, #tpu.memory_space<vmem>>, vector<1x1x16x16xbf16>
    %228 = vector.shape_cast %227 : vector<1x1x16x16xbf16> to vector<16x16xbf16>
    %229 = arith.extf %228 : vector<16x16xbf16> to vector<16x16xf32>
    %230 = vector.broadcast %226 : f32 to vector<16x16xf32>
    %231 = arith.mulf %230, %229 : vector<16x16xf32>
    %232 = arith.addf %224, %231 : vector<16x16xf32>
    %233 = arith.index_cast %177 : i32 to index
    %c7_131 = arith.constant 7 : index
    %234 = memref.load %arg2[%233, %c7_131] : memref<4x9xf32, #tpu.memory_space<smem>>
    %c0_132 = arith.constant 0 : index
    %c2_133 = arith.constant 2 : index
    %c2_134 = arith.constant 2 : index
    %c1_135 = arith.constant 1 : index
    %235 = vector.load %arg4[%c0_132, %c2_133, %c2_134, %c1_135] : memref<1x4x18x18xbf16, #tpu.memory_space<vmem>>, vector<1x1x16x16xbf16>
    %236 = vector.shape_cast %235 : vector<1x1x16x16xbf16> to vector<16x16xbf16>
    %237 = arith.extf %236 : vector<16x16xbf16> to vector<16x16xf32>
    %238 = vector.broadcast %234 : f32 to vector<16x16xf32>
    %239 = arith.mulf %238, %237 : vector<16x16xf32>
    %240 = arith.addf %232, %239 : vector<16x16xf32>
    %241 = arith.index_cast %177 : i32 to index
    %c8_136 = arith.constant 8 : index
    %242 = memref.load %arg2[%241, %c8_136] : memref<4x9xf32, #tpu.memory_space<smem>>
    %c0_137 = arith.constant 0 : index
    %c2_138 = arith.constant 2 : index
    %c2_139 = arith.constant 2 : index
    %c2_140 = arith.constant 2 : index
    %243 = vector.load %arg4[%c0_137, %c2_138, %c2_139, %c2_140] : memref<1x4x18x18xbf16, #tpu.memory_space<vmem>>, vector<1x1x16x16xbf16>
    %244 = vector.shape_cast %243 : vector<1x1x16x16xbf16> to vector<16x16xbf16>
    %245 = arith.extf %244 : vector<16x16xbf16> to vector<16x16xf32>
    %246 = vector.broadcast %242 : f32 to vector<16x16xf32>
    %247 = arith.mulf %246, %245 : vector<16x16xf32>
    %248 = arith.addf %240, %247 : vector<16x16xf32>
    %249 = arith.index_cast %177 : i32 to index
    %c0_141 = arith.constant 0 : index
    %250 = memref.load %arg3[%249, %c0_141] : memref<4x2xf32, #tpu.memory_space<smem>>
    %251 = vector.broadcast %250 : f32 to vector<16x16xf32>
    %252 = arith.addf %248, %251 : vector<16x16xf32>
    %253 = arith.index_cast %177 : i32 to index
    %c1_142 = arith.constant 1 : index
    %254 = memref.load %arg3[%253, %c1_142] : memref<4x2xf32, #tpu.memory_space<smem>>
    %cst_143 = arith.constant 0.000000e+00 : f32
    %255 = vector.broadcast %cst_143 : f32 to vector<16x16xf32>
    %256 = arith.cmpf ogt, %252, %255 : vector<16x16xf32>
    %257 = vector.broadcast %254 : f32 to vector<16x16xf32>
    %258 = arith.mulf %257, %252 : vector<16x16xf32>
    %259 = arith.select %256, %252, %258 : vector<16x16xi1>, vector<16x16xf32>
    %260 = arith.truncf %259 : vector<16x16xf32> to vector<16x16xbf16>
    %c0_144 = arith.constant 0 : index
    %c2_145 = arith.constant 2 : index
    %c0_146 = arith.constant 0 : index
    %c0_147 = arith.constant 0 : index
    %261 = vector.load %arg5[%c0_144, %c2_145, %c0_146, %c0_147] : memref<1x4x16x16xbf16, #tpu.memory_space<vmem>>, vector<1x1x16x16xbf16>
    %262 = vector.shape_cast %261 : vector<1x1x16x16xbf16> to vector<16x16xbf16>
    %263 = vector.shape_cast %260 : vector<16x16xbf16> to vector<1x1x16x16xbf16>
    tpu.vector_store %arg5[%c0_144, %c2_145, %c0_146, %c0_147], %263 {strides = array<i32>} : memref<1x4x16x16xbf16, #tpu.memory_space<vmem>>, vector<1x1x16x16xbf16>,
    %c4_i32_148 = arith.constant 4 : i32
    %264 = arith.muli %arg1, %c4_i32_148 : i32
    %c3_i32 = arith.constant 3 : i32
    %265 = arith.addi %264, %c3_i32 : i32
    %266 = arith.index_cast %265 : i32 to index
    %c0_149 = arith.constant 0 : index
    %267 = memref.load %arg2[%266, %c0_149] : memref<4x9xf32, #tpu.memory_space<smem>>
    %c0_150 = arith.constant 0 : index
    %c3_151 = arith.constant 3 : index
    %c0_152 = arith.constant 0 : index
    %c0_153 = arith.constant 0 : index
    %268 = vector.load %arg4[%c0_150, %c3_151, %c0_152, %c0_153] : memref<1x4x18x18xbf16, #tpu.memory_space<vmem>>, vector<1x1x16x16xbf16>
    %269 = vector.shape_cast %268 : vector<1x1x16x16xbf16> to vector<16x16xbf16>
    %270 = arith.extf %269 : vector<16x16xbf16> to vector<16x16xf32>
    %271 = vector.broadcast %267 : f32 to vector<16x16xf32>
    %272 = arith.mulf %271, %270 : vector<16x16xf32>
    %273 = arith.index_cast %265 : i32 to index
    %c1_154 = arith.constant 1 : index
    %274 = memref.load %arg2[%273, %c1_154] : memref<4x9xf32, #tpu.memory_space<smem>>
    %c0_155 = arith.constant 0 : index
    %c3_156 = arith.constant 3 : index
    %c0_157 = arith.constant 0 : index
    %c1_158 = arith.constant 1 : index
    %275 = vector.load %arg4[%c0_155, %c3_156, %c0_157, %c1_158] : memref<1x4x18x18xbf16, #tpu.memory_space<vmem>>, vector<1x1x16x16xbf16>
    %276 = vector.shape_cast %275 : vector<1x1x16x16xbf16> to vector<16x16xbf16>
    %277 = arith.extf %276 : vector<16x16xbf16> to vector<16x16xf32>
    %278 = vector.broadcast %274 : f32 to vector<16x16xf32>
    %279 = arith.mulf %278, %277 : vector<16x16xf32>
    %280 = arith.addf %272, %279 : vector<16x16xf32>
    %281 = arith.index_cast %265 : i32 to index
    %c2_159 = arith.constant 2 : index
    %282 = memref.load %arg2[%281, %c2_159] : memref<4x9xf32, #tpu.memory_space<smem>>
    %c0_160 = arith.constant 0 : index
    %c3_161 = arith.constant 3 : index
    %c0_162 = arith.constant 0 : index
    %c2_163 = arith.constant 2 : index
    %283 = vector.load %arg4[%c0_160, %c3_161, %c0_162, %c2_163] : memref<1x4x18x18xbf16, #tpu.memory_space<vmem>>, vector<1x1x16x16xbf16>
    %284 = vector.shape_cast %283 : vector<1x1x16x16xbf16> to vector<16x16xbf16>
    %285 = arith.extf %284 : vector<16x16xbf16> to vector<16x16xf32>
    %286 = vector.broadcast %282 : f32 to vector<16x16xf32>
    %287 = arith.mulf %286, %285 : vector<16x16xf32>
    %288 = arith.addf %280, %287 : vector<16x16xf32>
    %289 = arith.index_cast %265 : i32 to index
    %c3_164 = arith.constant 3 : index
    %290 = memref.load %arg2[%289, %c3_164] : memref<4x9xf32, #tpu.memory_space<smem>>
    %c0_165 = arith.constant 0 : index
    %c3_166 = arith.constant 3 : index
    %c1_167 = arith.constant 1 : index
    %c0_168 = arith.constant 0 : index
    %291 = vector.load %arg4[%c0_165, %c3_166, %c1_167, %c0_168] : memref<1x4x18x18xbf16, #tpu.memory_space<vmem>>, vector<1x1x16x16xbf16>
    %292 = vector.shape_cast %291 : vector<1x1x16x16xbf16> to vector<16x16xbf16>
    %293 = arith.extf %292 : vector<16x16xbf16> to vector<16x16xf32>
    %294 = vector.broadcast %290 : f32 to vector<16x16xf32>
    %295 = arith.mulf %294, %293 : vector<16x16xf32>
    %296 = arith.addf %288, %295 : vector<16x16xf32>
    %297 = arith.index_cast %265 : i32 to index
    %c4_169 = arith.constant 4 : index
    %298 = memref.load %arg2[%297, %c4_169] : memref<4x9xf32, #tpu.memory_space<smem>>
    %c0_170 = arith.constant 0 : index
    %c3_171 = arith.constant 3 : index
    %c1_172 = arith.constant 1 : index
    %c1_173 = arith.constant 1 : index
    %299 = vector.load %arg4[%c0_170, %c3_171, %c1_172, %c1_173] : memref<1x4x18x18xbf16, #tpu.memory_space<vmem>>, vector<1x1x16x16xbf16>
    %300 = vector.shape_cast %299 : vector<1x1x16x16xbf16> to vector<16x16xbf16>
    %301 = arith.extf %300 : vector<16x16xbf16> to vector<16x16xf32>
    %302 = vector.broadcast %298 : f32 to vector<16x16xf32>
    %303 = arith.mulf %302, %301 : vector<16x16xf32>
    %304 = arith.addf %296, %303 : vector<16x16xf32>
    %305 = arith.index_cast %265 : i32 to index
    %c5_174 = arith.constant 5 : index
    %306 = memref.load %arg2[%305, %c5_174] : memref<4x9xf32, #tpu.memory_space<smem>>
    %c0_175 = arith.constant 0 : index
    %c3_176 = arith.constant 3 : index
    %c1_177 = arith.constant 1 : index
    %c2_178 = arith.constant 2 : index
    %307 = vector.load %arg4[%c0_175, %c3_176, %c1_177, %c2_178] : memref<1x4x18x18xbf16, #tpu.memory_space<vmem>>, vector<1x1x16x16xbf16>
    %308 = vector.shape_cast %307 : vector<1x1x16x16xbf16> to vector<16x16xbf16>
    %309 = arith.extf %308 : vector<16x16xbf16> to vector<16x16xf32>
    %310 = vector.broadcast %306 : f32 to vector<16x16xf32>
    %311 = arith.mulf %310, %309 : vector<16x16xf32>
    %312 = arith.addf %304, %311 : vector<16x16xf32>
    %313 = arith.index_cast %265 : i32 to index
    %c6_179 = arith.constant 6 : index
    %314 = memref.load %arg2[%313, %c6_179] : memref<4x9xf32, #tpu.memory_space<smem>>
    %c0_180 = arith.constant 0 : index
    %c3_181 = arith.constant 3 : index
    %c2_182 = arith.constant 2 : index
    %c0_183 = arith.constant 0 : index
    %315 = vector.load %arg4[%c0_180, %c3_181, %c2_182, %c0_183] : memref<1x4x18x18xbf16, #tpu.memory_space<vmem>>, vector<1x1x16x16xbf16>
    %316 = vector.shape_cast %315 : vector<1x1x16x16xbf16> to vector<16x16xbf16>
    %317 = arith.extf %316 : vector<16x16xbf16> to vector<16x16xf32>
    %318 = vector.broadcast %314 : f32 to vector<16x16xf32>
    %319 = arith.mulf %318, %317 : vector<16x16xf32>
    %320 = arith.addf %312, %319 : vector<16x16xf32>
    %321 = arith.index_cast %265 : i32 to index
    %c7_184 = arith.constant 7 : index
    %322 = memref.load %arg2[%321, %c7_184] : memref<4x9xf32, #tpu.memory_space<smem>>
    %c0_185 = arith.constant 0 : index
    %c3_186 = arith.constant 3 : index
    %c2_187 = arith.constant 2 : index
    %c1_188 = arith.constant 1 : index
    %323 = vector.load %arg4[%c0_185, %c3_186, %c2_187, %c1_188] : memref<1x4x18x18xbf16, #tpu.memory_space<vmem>>, vector<1x1x16x16xbf16>
    %324 = vector.shape_cast %323 : vector<1x1x16x16xbf16> to vector<16x16xbf16>
    %325 = arith.extf %324 : vector<16x16xbf16> to vector<16x16xf32>
    %326 = vector.broadcast %322 : f32 to vector<16x16xf32>
    %327 = arith.mulf %326, %325 : vector<16x16xf32>
    %328 = arith.addf %320, %327 : vector<16x16xf32>
    %329 = arith.index_cast %265 : i32 to index
    %c8_189 = arith.constant 8 : index
    %330 = memref.load %arg2[%329, %c8_189] : memref<4x9xf32, #tpu.memory_space<smem>>
    %c0_190 = arith.constant 0 : index
    %c3_191 = arith.constant 3 : index
    %c2_192 = arith.constant 2 : index
    %c2_193 = arith.constant 2 : index
    %331 = vector.load %arg4[%c0_190, %c3_191, %c2_192, %c2_193] : memref<1x4x18x18xbf16, #tpu.memory_space<vmem>>, vector<1x1x16x16xbf16>
    %332 = vector.shape_cast %331 : vector<1x1x16x16xbf16> to vector<16x16xbf16>
    %333 = arith.extf %332 : vector<16x16xbf16> to vector<16x16xf32>
    %334 = vector.broadcast %330 : f32 to vector<16x16xf32>
    %335 = arith.mulf %334, %333 : vector<16x16xf32>
    %336 = arith.addf %328, %335 : vector<16x16xf32>
    %337 = arith.index_cast %265 : i32 to index
    %c0_194 = arith.constant 0 : index
    %338 = memref.load %arg3[%337, %c0_194] : memref<4x2xf32, #tpu.memory_space<smem>>
    %339 = vector.broadcast %338 : f32 to vector<16x16xf32>
    %340 = arith.addf %336, %339 : vector<16x16xf32>
    %341 = arith.index_cast %265 : i32 to index
    %c1_195 = arith.constant 1 : index
    %342 = memref.load %arg3[%341, %c1_195] : memref<4x2xf32, #tpu.memory_space<smem>>
    %cst_196 = arith.constant 0.000000e+00 : f32
    %343 = vector.broadcast %cst_196 : f32 to vector<16x16xf32>
    %344 = arith.cmpf ogt, %340, %343 : vector<16x16xf32>
    %345 = vector.broadcast %342 : f32 to vector<16x16xf32>
    %346 = arith.mulf %345, %340 : vector<16x16xf32>
    %347 = arith.select %344, %340, %346 : vector<16x16xi1>, vector<16x16xf32>
    %348 = arith.truncf %347 : vector<16x16xf32> to vector<16x16xbf16>
    %c0_197 = arith.constant 0 : index
    %c3_198 = arith.constant 3 : index
    %c0_199 = arith.constant 0 : index
    %c0_200 = arith.constant 0 : index
    %349 = vector.load %arg5[%c0_197, %c3_198, %c0_199, %c0_200] : memref<1x4x16x16xbf16, #tpu.memory_space<vmem>>, vector<1x1x16x16xbf16>
    %350 = vector.shape_cast %349 : vector<1x1x16x16xbf16> to vector<16x16xbf16>
    %351 = vector.shape_cast %348 : vector<16x16xbf16> to vector<1x1x16x16xbf16>
    tpu.vector_store %arg5[%c0_197, %c3_198, %c0_199, %c0_200], %351 {strides = array<i32>} : memref<1x4x16x16xbf16, #tpu.memory_space<vmem>>, vector<1x1x16x16xbf16>,
    return
  }
  func.func @transform_0(%arg0: i32, %arg1: i32) -> (i32, i32) {
    %c0_i32 = arith.constant 0 : i32
    %c0_i32_0 = arith.constant 0 : i32
    %c0_i32_1 = arith.constant 0 : i32
    return %c0_i32, %c0_i32_0 : i32, i32
  }
  func.func @transform_1(%arg0: i32, %arg1: i32) -> (i32, i32) {
    %c0_i32 = arith.constant 0 : i32
    %c0_i32_0 = arith.constant 0 : i32
    %c0_i32_1 = arith.constant 0 : i32
    return %c0_i32, %c0_i32_0 : i32, i32
  }
  func.func @transform_2(%arg0: i32, %arg1: i32) -> (i32, i32, i32, i32) {
    %c0_i32 = arith.constant 0 : i32
    %c0_i32_0 = arith.constant 0 : i32
    %c0_i32_1 = arith.constant 0 : i32
    return %arg0, %arg1, %c0_i32, %c0_i32_0 : i32, i32, i32, i32
  }
  func.func @transform_3(%arg0: i32, %arg1: i32) -> (i32, i32, i32, i32) {
    %c0_i32 = arith.constant 0 : i32
    %c0_i32_0 = arith.constant 0 : i32
    %c0_i32_1 = arith.constant 0 : i32
    return %arg0, %arg1, %c0_i32, %c0_i32_0 : i32, i32, i32, i32
  }
}

</mosaic_0001>

<llo_original>
// kernel: div.17
$region0: #{div.17}
  %s0 = inlined_call_operand.vmem [shape: f32[2,256], index: 0, kind: input, shape index: {}]
  %s1 = inlined_call_operand.vmem [shape: f32[2,16,16], index: 1, kind: output, shape index: {}]
  $region1: #{div.17} parent=0
    #allocation0 [shape = 'u8[8192]{0}', space=vmem, size = 0x2000, scoped, tag = 'scoped mem for input reshape']
    %s3 = sshll.u32 1, 2
    %s4 = ssub.s32 %s3, 1
    %s5 = scalar_lea.vmem %s0, 2
    %v6 = vld [vmem:[%s5] sm:%s4]
    %s7 = scalar_lea.vmem [#allocation0], 8
    %8 = vst [vmem:[%s7] sm:%s4] %v6
    %v9 = vld [vmem:[%s0] sm:%s4]
    %10 = vst [vmem:[#allocation0] sm:%s4] %v9
    %v11 = vld [vmem:[#allocation0] sm:$0x3]
    %vm12 = vcmask 130048
    %13 = vst.msk [vmem:[%s1] ss:$16 sm:$0x3] %vm12, %v11
    %s14 = scalar_lea.vmem [#allocation0], 8
    %v15 = vld [vmem:[%s14] sm:$0x3]
    %vm16 = vcmask 130048
    %s17 = scalar_lea.vmem %s1, 8
    %18 = vst.msk [vmem:[%s17] ss:$16 sm:$0x3] %vm16, %v15
    %v19 = vld.sshfl [vmem:[#allocation0] sm:$0xff pattern:$0x99999180]
    %20 = vrot.lane.b32.xlu0 %v19, 112
    %v21 = vpop.permute.xlu0 %20
    %vm22 = vcmask 130048
    %s23 = scalar_lea.vmem %s1, 1
    %24 = vst.msk [vmem:[%s23] ss:$8 sm:$0xf] %vm22, %v21
    %v25 = vld.sshfl [vmem:[#allocation0] sm:$0xff pattern:$0x99999180]
    %26 = vrot.lane.b32.xlu0 %v25, 96
    %v27 = vpop.permute.xlu0 %26
    %vm28 = vcmask 130048
    %s29 = scalar_lea.vmem %s1, 2
    %30 = vst.msk [vmem:[%s29] ss:$8 sm:$0xf] %vm28, %v27
    %v31 = vld.sshfl [vmem:[#allocation0] sm:$0xff pattern:$0x99999180]
    %32 = vrot.lane.b32.xlu0 %v31, 80
    %v33 = vpop.permute.xlu0 %32
    %vm34 = vcmask 130048
    %s35 = scalar_lea.vmem %s1, 3
    %36 = vst.msk [vmem:[%s35] ss:$8 sm:$0xf] %vm34, %v33
    %v37 = vld.sshfl [vmem:[#allocation0] sm:$0xff pattern:$0x99999180]
    %38 = vrot.lane.b32.xlu0 %v37, 64
    %v39 = vpop.permute.xlu0 %38
    %vm40 = vcmask 130048
    %s41 = scalar_lea.vmem %s1, 4
    %42 = vst.msk [vmem:[%s41] ss:$8 sm:$0xf] %vm40, %v39
    %v43 = vld.sshfl [vmem:[#allocation0] sm:$0xff pattern:$0x99999180]
    %44 = vrot.lane.b32.xlu0 %v43, 48
    %v45 = vpop.permute.xlu0 %44
    %vm46 = vcmask 130048
    %s47 = scalar_lea.vmem %s1, 5
    %48 = vst.msk [vmem:[%s47] ss:$8 sm:$0xf] %vm46, %v45
    %v49 = vld.sshfl [vmem:[#allocation0] sm:$0xff pattern:$0x99999180]
    %50 = vrot.lane.b32.xlu0 %v49, 32
    %v51 = vpop.permute.xlu0 %50
    %vm52 = vcmask 130048
    %s53 = scalar_lea.vmem %s1, 6
    %54 = vst.msk [vmem:[%s53] ss:$8 sm:$0xf] %vm52, %v51
    %v55 = vld.sshfl [vmem:[#allocation0] sm:$0xff pattern:$0x99999180]
    %56 = vrot.lane.b32.xlu0 %v55, 16
    %v57 = vpop.permute.xlu0 %56
    %vm58 = vcmask 130048
    %s59 = scalar_lea.vmem %s1, 7
    %60 = vst.msk [vmem:[%s59] ss:$8 sm:$0xf] %vm58, %v57

// kernel: fem_forward.10
$region0: #{fem_forward.10}
  #allocation0 [shape = 'u32[]', space=smem, size = 0x4, offset = 0x4, fixed_abs, tag = 'smem constant byte address 0x4 - core index']
  #allocation1 [shape = 'u32[144,128]{1,0:T(1,128)}', space=vmem, size = 0x12000, scoped, tag = 'internal scratch']
  %s0 = inlined_call_operand.vmem [shape: f32[4,1], index: 0, kind: input, shape index: {}]
  %s1 = inlined_call_operand.vmem [shape: bf16[2,2,16,16], index: 1, kind: input, shape index: {}]
  %s2 = inlined_call_operand.vmem [shape: f32[2,4,2,16], index: 2, kind: output, shape index: {}]
  %s3 = sld [smem:[#allocation0]]
  $region45: #{fem_forward.10} parent=0
    _
  %s5 = ssub.s32 1, %s3
  %s6 = scalar_select 0, %s5, %s3
  $region1: #{fem_forward.10} parent=0
    #allocation2 [shape = 'u8[2048]{0}', space=smem, size = 0x800, scoped, tag = 'input window, operand 0, single buffered']
    #allocation3 [shape = 's32[2]{0}', space=sflag, size = 0x8, scoped, tag = 'scoped memory for fem_forward.10']
    %7 = vsyncpa [#allocation3], 0
    loop: start=0, step=1, limit=4
    $region2: #{fem_forward.10} parent=1 // loop_pre_header
      _
    $region3: #{fem_forward.10} parent=1 // loop_header
      %s9 = sphi 0, %s13
      %p10 = scmp.ge.s32.totalorder %s9, 4
      %s16 = sphi 0, %s28
      %s17 = sphi 0, %s24
      %s18 = sphi 0, %s16
      %s19 = sphi 0, %s17
      %s20 = sphi 0, %s18
      %s21 = sphi 0, %s19
      %s29 = sphi 0, %s29
      %s31 = sphi 0, %s29
      %s32 = sphi 0, %s31
      %s46 = sphi 0, %s32
      %s54 = sphi 0, %s56
      %s57 = sphi 0, %s54
      %s58 = sphi 0, %s57
      %s74 = sphi 0, %s58
      %s82 = sphi 0, %s84
      %s85 = sphi 0, %s82
      %s86 = sphi 0, %s85
      %s102 = sphi 0, %s86
    $region4: #{fem_forward.10} parent=1 // loop_header_branch
      %12 = sbr.rel (%p10) target = $region8
    $region5: #{fem_forward.10} parent=1 // loop_body
      %s14 = ssub.s32 %s9, 1
      %s15 = ssub.s32 %s9, 2
      %s22 = sadd.s32 1, %s17
      %p23 = scmp.ge.s32.totalorder %s22, 1
      %s24 = scalar_select %p23, 0, %s22
      %s25 = sadd.s32 1, %s16
      %s26 = scalar_select %p23, %s25, %s16
      %p27 = scmp.ge.s32.totalorder %s26, 2
      %s28 = scalar_select %p27, 0, %s26
      %s30 = sadd.s32 %s29, 1
      %p33 = scmp.eq.s32.totalorder %s9, 1
      %p34 = scmp.ne.s32.totalorder %s29, %s31
      %p35 = scmp.eq.s32.totalorder %s9, 0
      %p36 = por %p34, %p35
      %p37 = scmp.ne.s32.totalorder %s29, %s31
      %p38 = scmp.eq.s32.totalorder %s14, 1
      %p39 = por %p37, %p38
      %p40 = scmp.ne.s32.totalorder %s31, %s32
      %p41 = scmp.eq.s32.totalorder %s14, 0
      %p42 = por %p40, %p41
      %p43 = scmp.ne.s32.totalorder %s31, %s32
      %p44 = scmp.eq.s32.totalorder %s15, 1
      %p45 = por %p43, %p44
      %p47 = scmp.ne.s32.totalorder %s32, %s46
      %p48 = scmp.eq.s32.totalorder %s15, 0
      %p49 = por %p47, %p48
      %s50 = ssub.s32 %s16, %s28
      %s51 = ssub.s32 %s17, %s24
      %s52 = sor.u32 %s50, %s51
      %p53 = scmp.eq.s32.totalorder %s52, 0
      %s55 = sadd.s32 %s54, 1
      %s56 = scalar_select %p53, %s54, %s55
      %p59 = pneg %p53
      %p60 = scmp.eq.s32.totalorder %s9, 1
      %p61 = por %p59, %p60
      %p62 = scmp.ne.s32.totalorder %s54, %s57
      %p63 = scmp.eq.s32.totalorder %s9, 0
      %p64 = por %p62, %p63
      %p65 = scmp.ne.s32.totalorder %s54, %s57
      %p66 = scmp.eq.s32.totalorder %s14, 1
      %p67 = por %p65, %p66
      %p68 = scmp.ne.s32.totalorder %s57, %s58
      %p69 = scmp.eq.s32.totalorder %s14, 0
      %p70 = por %p68, %p69
      %p71 = scmp.ne.s32.totalorder %s57, %s58
      %p72 = scmp.eq.s32.totalorder %s15, 1
      %p73 = por %p71, %p72
      %p75 = scmp.ne.s32.totalorder %s58, %s74
      %p76 = scmp.eq.s32.totalorder %s15, 0
      %p77 = por %p75, %p76
      %s78 = ssub.s32 %s16, %s28
      %s79 = ssub.s32 %s17, %s24
      %s80 = sor.u32 %s78, %s79
      %p81 = scmp.eq.s32.totalorder %s80, 0
      %s83 = sadd.s32 %s82, 1
      %s84 = scalar_select %p81, %s82, %s83
      %p87 = pneg %p81
      %p88 = scmp.eq.s32.totalorder %s9, 1
      %p89 = por %p87, %p88
      %p90 = scmp.ne.s32.totalorder %s82, %s85
      %p91 = scmp.eq.s32.totalorder %s9, 0
      %p92 = por %p90, %p91
      %p93 = scmp.ne.s32.totalorder %s82, %s85
      %p94 = scmp.eq.s32.totalorder %s14, 1
      %p95 = por %p93, %p94
      %p96 = scmp.ne.s32.totalorder %s85, %s86
      %p97 = scmp.eq.s32.totalorder %s14, 0
      %p98 = por %p96, %p97
      %p99 = scmp.ne.s32.totalorder %s85, %s86
      %p100 = scmp.eq.s32.totalorder %s15, 1
      %p101 = por %p99, %p100
      %p103 = scmp.ne.s32.totalorder %s86, %s102
      %p104 = scmp.eq.s32.totalorder %s15, 0
      %p105 = por %p103, %p104
      %p106 = scmp.le.s32.totalorder 1, %s9
      %p107 = scmp.lt.s32.totalorder %s9, 3
      %p108 = pnand %p106, %p107
      %p109 = pneg %p108
      // Predicated region
      $region9: #{fem_forward.10} parent=5 // pred_check
        _
      $region10: #{fem_forward.10} parent=5 // pred_check_branch
        %111 = sbr.rel (%p108) target = $region12
      $region11: #{fem_forward.10} parent=5 // pred_region
        %s112 = ssub.s32 %s9, 1
        // Predicated region
        $region13: #{fem_forward.10} parent=11 // pred_check
          %p113 = pneg %p42
        $region14: #{fem_forward.10} parent=11 // pred_check_branch
          %115 = sbr.rel (%p113) target = $region16
        $region15: #{fem_forward.10} parent=11 // pred_region
          %s117 = ssub.s32 64, 64
          %118 = vsyncadd [#allocation3], %s117
          %s120 = sshll.u32 %s0, 4
          %s121 = int_to_ptr.vmem [resolvable:$true] %s120
          %123 = dma.vmem_to_smem %s121, 64, [#allocation2], [#allocation3]
        $region16: #{fem_forward.10} parent=11 // pred_fallthru
          _
      $region12: #{fem_forward.10} parent=5 // pred_fallthru
        _
      %p124 = scmp.lt.s32.totalorder %s9, 2
      // Predicated region
      $region17: #{fem_forward.10} parent=5 // pred_check
        %p125 = pneg %p124
      $region18: #{fem_forward.10} parent=5 // pred_check_branch
        %127 = sbr.rel (%p125) target = $region20
      $region19: #{fem_forward.10} parent=5 // pred_region
        // Predicated region
        $region21: #{fem_forward.10} parent=19 // pred_check
          %p128 = pneg %p64
        $region22: #{fem_forward.10} parent=19 // pred_check_branch
          %130 = sbr.rel (%p128) target = $region24
        $region23: #{fem_forward.10} parent=19 // pred_region
          %s131 = smul.u32 2, %s17
          %p132 = scmp.lt.s32.totalorder %s16, 1
          %s133 = scalar_select %p132, %s16, 1
          %p134 = scmp.lt.s32.totalorder %s131, 1
          %s135 = scalar_select %p134, %s131, 1
          %s136 = smul.addr %s135, 2
          %s137 = smul.addr %s133, 4
          %s138 = sadd.s32 %s136, %s137
          %s139 = smul.addr %s138, 4
          %s140 = scalar_lea.vmem %s1, %s139
          %s141 = smul.u32 2, %s17
        $region24: #{fem_forward.10} parent=19 // pred_fallthru
          _
      $region20: #{fem_forward.10} parent=5 // pred_fallthru
        _
      %p142 = scmp.le.s32.totalorder 1, %s9
      %p143 = scmp.lt.s32.totalorder %s9, 3
      %p144 = pnand %p142, %p143
      %p145 = pneg %p144
      // Predicated region
      $region25: #{fem_forward.10} parent=5 // pred_check
        _
      $region26: #{fem_forward.10} parent=5 // pred_check_branch
        %147 = sbr.rel (%p144) target = $region28
      $region27: #{fem_forward.10} parent=5 // pred_region
        %s148 = ssub.s32 %s9, 1
        // Predicated region
        $region29: #{fem_forward.10} parent=27 // pred_check
          %p149 = pneg %p42
        $region30: #{fem_forward.10} parent=27 // pred_check_branch
          %151 = sbr.rel (%p149) target = $region32
        $region31: #{fem_forward.10} parent=27 // pred_region
          %152 = dma.done [#allocation3], 64
        $region32: #{fem_forward.10} parent=27 // pred_fallthru
          _
        %153 = sfence
        %p154 = pneg %p42
        %p155 = pneg %p39
        %s156 = smul.u32 2, %s19
        %p157 = scmp.lt.s32.totalorder %s18, 1
        %s158 = scalar_select %p157, %s18, 1
        %p159 = scmp.lt.s32.totalorder %s156, 1
        %s160 = scalar_select %p159, %s156, 1
        %s161 = smul.addr %s160, 2
        %s162 = smul.addr %s158, 4
        %s163 = sadd.s32 %s161, %s162
        %s164 = smul.addr %s163, 4
        %s165 = scalar_lea.vmem %s1, %s164
        %p166 = pneg %p70
        %p167 = pneg %p67
        %p168 = pneg %p98
        %p169 = pneg %p95
        %s170 = smul.u32 4, %s19
        %p171 = scmp.lt.s32.totalorder %s18, 1
        %s172 = scalar_select %p171, %s18, 1
        %p173 = scmp.lt.s32.totalorder %s170, 3
        %s174 = scalar_select %p173, %s170, 3
        %s175 = smul.addr %s172, 4
        %s176 = sadd.s32 %s174, %s175
        %s177 = smul.addr %s176, 2
        %s178 = scalar_lea.vmem %s2, %s177
        %s179 = smul.u32 2, %s19
        %p180 = scmp.lt.s32.totalorder %s18, 1
        %s181 = scalar_select %p180, %s18, 1
        %p182 = scmp.lt.s32.totalorder %s179, 1
        %s183 = scalar_select %p182, %s179, 1
        %s184 = smul.addr %s183, 2
        %s185 = smul.addr %s181, 4
        %s186 = sadd.s32 %s184, %s185
        %s187 = smul.addr %s186, 4
        %s188 = scalar_lea.vmem %s1, %s187
        %s189 = smul.u32 2, %s19
        %s190 = smul.u32 4, %s19
        %p191 = scmp.lt.s32.totalorder %s18, 1
        %s192 = scalar_select %p191, %s18, 1
        %p193 = scmp.lt.s32.totalorder %s190, 3
        %s194 = scalar_select %p193, %s190, 3
        %s195 = smul.addr %s192, 4
        %s196 = sadd.s32 %s194, %s195
        %s197 = smul.addr %s196, 2
        %s198 = scalar_lea.vmem %s2, %s197
        %s199 = smul.u32 4, %s19
        %s200 = smul.u32 %s19, 4
        %s201 = smul.u32 %s200, 128
        %s202 = sld [smem:[#allocation2 + %s201]]
        %v203 = vld [vmem:[%s188] sm:$0xf]
        %v204 = vld [vmem:[%s188 + $0x4] sm:$0xf]
        %v205 = vunpack.c.l.bf16 %v203
        %v206 = vunpack.c.l.bf16 %v204
        %v207 = vstv %s202
        %v208 = vmul.f32 %v207, %v205
        %v209 = vmul.f32 %v207, %v206
        %vm210 = vcmask 130048
        %v211 = vsel %vm210, %v208, 0.0
        %v212 = vsel %vm210, %v209, 0.0
        %v213 = vadd.f32 %v211, %v212
        %v214 = vrot.slane %v213, 4
        %v215 = vadd.f32 %v213, %v214
        %v216 = vrot.slane %v215, 2
        %v217 = vadd.f32 %v215, %v216
        %v218 = vrot.slane %v217, 1
        %v219 = vadd.f32 %v217, %v218
        %vm220 = vcmask 122880
        %221 = vst.msk [vmem:[%s198] sm:$0x1] %vm220, %v219
        %v222 = vmul.f32 %v208, %v208
        %v223 = vmul.f32 %v209, %v209
        %v224 = vsel %vm210, %v222, 0.0
        %v225 = vsel %vm210, %v223, 0.0
        %v226 = vadd.f32 %v224, %v225
        %v227 = vrot.slane %v226, 4
        %v228 = vadd.f32 %v226, %v227
        %v229 = vrot.slane %v228, 2
        %v230 = vadd.f32 %v228, %v229
        %v231 = vrot.slane %v230, 1
        %v232 = vadd.f32 %v230, %v231
        %233 = vst.msk [vmem:[%s198 + $0x1] sm:$0x1] %vm220, %v232
        %s234 = sadd.s32 %s200, 1
        %s235 = smul.u32 %s234, 128
        %s236 = sld [smem:[#allocation2 + %s235]]
        %v237 = vld [vmem:[%s188] sm:$0xf]
        %v238 = vld [vmem:[%s188 + $0x4] sm:$0xf]
        %v239 = vunpack.c.l.bf16 %v237
        %v240 = vunpack.c.l.bf16 %v238
        %v241 = vstv %s236
        %v242 = vmul.f32 %v241, %v239
        %v243 = vmul.f32 %v241, %v240
        %v244 = vsel %vm210, %v242, 0.0
        %v245 = vsel %vm210, %v243, 0.0
        %v246 = vadd.f32 %v244, %v245
        %v247 = vrot.slane %v246, 4
        %v248 = vadd.f32 %v246, %v247
        %v249 = vrot.slane %v248, 2
        %v250 = vadd.f32 %v248, %v249
        %v251 = vrot.slane %v250, 1
        %v252 = vadd.f32 %v250, %v251
        %s253 = scalar_lea.vmem %s198, 2
        %254 = vst.msk [vmem:[%s253] sm:$0x1] %vm220, %v252
        %v255 = vmul.f32 %v242, %v242
        %v256 = vmul.f32 %v243, %v243
        %v257 = vsel %vm210, %v255, 0.0
        %v258 = vsel %vm210, %v256, 0.0
        %v259 = vadd.f32 %v257, %v258
        %v260 = vrot.slane %v259, 4
        %v261 = vadd.f32 %v259, %v260
        %v262 = vrot.slane %v261, 2
        %v263 = vadd.f32 %v261, %v262
        %v264 = vrot.slane %v263, 1
        %v265 = vadd.f32 %v263, %v264
        %266 = vst.msk [vmem:[%s253 + $0x1] sm:$0x1] %vm220, %v265
        %s267 = sadd.s32 %s200, 2
        %s268 = smul.u32 %s267, 128
        %s269 = sld [smem:[#allocation2 + %s268]]
        %s270 = scalar_lea.vmem %s188, 8
        %v271 = vld [vmem:[%s270] sm:$0xf]
        %v272 = vld [vmem:[%s270 + $0x4] sm:$0xf]
        %v273 = vunpack.c.l.bf16 %v271
        %v274 = vunpack.c.l.bf16 %v272
        %v275 = vstv %s269
        %v276 = vmul.f32 %v275, %v273
        %v277 = vmul.f32 %v275, %v274
        %v278 = vsel %vm210, %v276, 0.0
        %v279 = vsel %vm210, %v277, 0.0
        %v280 = vadd.f32 %v278, %v279
        %v281 = vrot.slane %v280, 4
        %v282 = vadd.f32 %v280, %v281
        %v283 = vrot.slane %v282, 2
        %v284 = vadd.f32 %v282, %v283
        %v285 = vrot.slane %v284, 1
        %v286 = vadd.f32 %v284, %v285
        %s287 = scalar_lea.vmem %s198, 4
        %288 = vst.msk [vmem:[%s287] sm:$0x1] %vm220, %v286
        %v289 = vmul.f32 %v276, %v276
        %v290 = vmul.f32 %v277, %v277
        %v291 = vsel %vm210, %v289, 0.0
        %v292 = vsel %vm210, %v290, 0.0
        %v293 = vadd.f32 %v291, %v292
        %v294 = vrot.slane %v293, 4
        %v295 = vadd.f32 %v293, %v294
        %v296 = vrot.slane %v295, 2
        %v297 = vadd.f32 %v295, %v296
        %v298 = vrot.slane %v297, 1
        %v299 = vadd.f32 %v297, %v298
        %300 = vst.msk [vmem:[%s287 + $0x1] sm:$0x1] %vm220, %v299
        %s301 = sadd.s32 %s200, 3
        %s302 = smul.u32 %s301, 128
        %s303 = sld [smem:[#allocation2 + %s302]]
        %v304 = vld [vmem:[%s270] sm:$0xf]
        %v305 = vld [vmem:[%s270 + $0x4] sm:$0xf]
        %v306 = vunpack.c.l.bf16 %v304
        %v307 = vunpack.c.l.bf16 %v305
        %v308 = vstv %s303
        %v309 = vmul.f32 %v308, %v306
        %v310 = vmul.f32 %v308, %v307
        %v311 = vsel %vm210, %v309, 0.0
        %v312 = vsel %vm210, %v310, 0.0
        %v313 = vadd.f32 %v311, %v312
        %v314 = vrot.slane %v313, 4
        %v315 = vadd.f32 %v313, %v314
        %v316 = vrot.slane %v315, 2
        %v317 = vadd.f32 %v315, %v316
        %v318 = vrot.slane %v317, 1
        %v319 = vadd.f32 %v317, %v318
        %s320 = scalar_lea.vmem %s198, 6
        %321 = vst.msk [vmem:[%s320] sm:$0x1] %vm220, %v319
        %v322 = vmul.f32 %v309, %v309
        %v323 = vmul.f32 %v310, %v310
        %v324 = vsel %vm210, %v322, 0.0
        %v325 = vsel %vm210, %v323, 0.0
        %v326 = vadd.f32 %v324, %v325
        %v327 = vrot.slane %v326, 4
        %v328 = vadd.f32 %v326, %v327
        %v329 = vrot.slane %v328, 2
        %v330 = vadd.f32 %v328, %v329
        %v331 = vrot.slane %v330, 1
        %v332 = vadd.f32 %v330, %v331
        %333 = vst.msk [vmem:[%s320 + $0x1] sm:$0x1] %vm220, %v332
        %s334 = smul.u32 4, %s19
        %p335 = scmp.lt.s32.totalorder %s18, 1
        %s336 = scalar_select %p335, %s18, 1
        %p337 = scmp.lt.s32.totalorder %s334, 3
        %s338 = scalar_select %p337, %s334, 3
        %s339 = smul.addr %s336, 4
        %s340 = sadd.s32 %s338, %s339
        %s341 = smul.addr %s340, 2
        %s342 = scalar_lea.vmem %s2, %s341
        // Predicated region
        $region33: #{fem_forward.10} parent=27 // pred_check
          %p343 = pneg %p95
        $region34: #{fem_forward.10} parent=27 // pred_check_branch
          %345 = sbr.rel (%p343) target = $region36
        $region35: #{fem_forward.10} parent=27 // pred_region
          %s346 = smul.u32 4, %s19
        $region36: #{fem_forward.10} parent=27 // pred_fallthru
          _
      $region28: #{fem_forward.10} parent=5 // pred_fallthru
        _
      %p347 = scmp.le.s32.totalorder 2, %s9
      // Predicated region
      $region37: #{fem_forward.10} parent=5 // pred_check
        %p348 = pneg %p347
      $region38: #{fem_forward.10} parent=5 // pred_check_branch
        %350 = sbr.rel (%p348) target = $region40
      $region39: #{fem_forward.10} parent=5 // pred_region
        %s351 = ssub.s32 %s9, 2
        // Predicated region
        $region41: #{fem_forward.10} parent=39 // pred_check
          %p352 = pneg %p101
        $region42: #{fem_forward.10} parent=39 // pred_check_branch
          %354 = sbr.rel (%p352) target = $region44
        $region43: #{fem_forward.10} parent=39 // pred_region
          %s355 = smul.u32 4, %s21
          %p356 = scmp.lt.s32.totalorder %s20, 1
          %s357 = scalar_select %p356, %s20, 1
          %p358 = scmp.lt.s32.totalorder %s355, 3
          %s359 = scalar_select %p358, %s355, 3
          %s360 = smul.addr %s357, 4
          %s361 = sadd.s32 %s359, %s360
          %s362 = smul.addr %s361, 2
          %s363 = scalar_lea.vmem %s2, %s362
        $region44: #{fem_forward.10} parent=39 // pred_fallthru
          _
      $region40: #{fem_forward.10} parent=5 // pred_fallthru
        _
    $region6: #{fem_forward.10} parent=1 // loop_footer
      %s13 = sadd.s32 1, %s9
    $region7: #{fem_forward.10} parent=1 // loop_footer_branch
      %8 = sbr.rel target = $region3
    $region8: #{fem_forward.10} parent=1 // loop_exit
      _
    %364 = vsyncpa [#allocation3], 1
    %s365 = scalar_lea.sflag [#allocation3], 1
    %366 = vsyncpa %s365, 1

// kernel: fem_forward.14
$region0: #{fem_forward.14}
  #allocation0 [shape = 'u32[]', space=smem, size = 0x4, offset = 0x4, fixed_abs, tag = 'smem constant byte address 0x4 - core index']
  #allocation1 [shape = 'u32[144,128]{1,0:T(1,128)}', space=vmem, size = 0x12000, scoped, tag = 'internal scratch']
  %s0 = inlined_call_operand.vmem [shape: f32[4,1], index: 0, kind: input, shape index: {}]
  %s1 = inlined_call_operand.vmem [shape: f32[4,2], index: 1, kind: input, shape index: {}]
  %s2 = inlined_call_operand.vmem [shape: bf16[2,2,16,16], index: 2, kind: input, shape index: {}]
  %s3 = inlined_call_operand.vmem [shape: bf16[2,4,16,16], index: 3, kind: output, shape index: {}]
  %s4 = sld [smem:[#allocation0]]
  $region53: #{fem_forward.14} parent=0
    _
  %s6 = ssub.s32 1, %s4
  %s7 = scalar_select 0, %s6, %s4
  $region1: #{fem_forward.14} parent=0
    #allocation2 [shape = 'u8[2048]{0}', space=smem, size = 0x800, scoped, tag = 'input window, operand 0, single buffered']
    #allocation3 [shape = 's32[2]{0}', space=sflag, size = 0x8, scoped, tag = 'scoped memory for fem_forward.14']
    #allocation4 [shape = 'u8[2048]{0}', space=smem, size = 0x800, scoped, tag = 'input window, operand 1, single buffered']
    #allocation5 [shape = 's32[1]{0}', space=sflag, size = 0x4, scoped, tag = 'scoped memory for fem_forward.14']
    %8 = vsyncpa [#allocation3], 0
    %9 = vsyncpa [#allocation5], 0
    loop: start=0, step=1, limit=4
    $region2: #{fem_forward.14} parent=1 // loop_pre_header
      _
    $region3: #{fem_forward.14} parent=1 // loop_header
      %s11 = sphi 0, %s15
      %p12 = scmp.ge.s32.totalorder %s11, 4
      %s18 = sphi 0, %s30
      %s19 = sphi 0, %s26
      %s20 = sphi 0, %s18
      %s21 = sphi 0, %s19
      %s22 = sphi 0, %s20
      %s23 = sphi 0, %s21
      %s31 = sphi 0, %s31
      %s33 = sphi 0, %s31
      %s34 = sphi 0, %s33
      %s48 = sphi 0, %s34
      %s52 = sphi 0, %s52
      %s54 = sphi 0, %s52
      %s55 = sphi 0, %s54
      %s69 = sphi 0, %s55
      %s77 = sphi 0, %s79
      %s80 = sphi 0, %s77
      %s81 = sphi 0, %s80
      %s97 = sphi 0, %s81
      %s105 = sphi 0, %s107
      %s108 = sphi 0, %s105
      %s109 = sphi 0, %s108
      %s125 = sphi 0, %s109
    $region4: #{fem_forward.14} parent=1 // loop_header_branch
      %14 = sbr.rel (%p12) target = $region8
    $region5: #{fem_forward.14} parent=1 // loop_body
      %s16 = ssub.s32 %s11, 1
      %s17 = ssub.s32 %s11, 2
      %s24 = sadd.s32 1, %s19
      %p25 = scmp.ge.s32.totalorder %s24, 1
      %s26 = scalar_select %p25, 0, %s24
      %s27 = sadd.s32 1, %s18
      %s28 = scalar_select %p25, %s27, %s18
      %p29 = scmp.ge.s32.totalorder %s28, 2
      %s30 = scalar_select %p29, 0, %s28
      %s32 = sadd.s32 %s31, 1
      %p35 = scmp.eq.s32.totalorder %s11, 1
      %p36 = scmp.ne.s32.totalorder %s31, %s33
      %p37 = scmp.eq.s32.totalorder %s11, 0
      %p38 = por %p36, %p37
      %p39 = scmp.ne.s32.totalorder %s31, %s33
      %p40 = scmp.eq.s32.totalorder %s16, 1
      %p41 = por %p39, %p40
      %p42 = scmp.ne.s32.totalorder %s33, %s34
      %p43 = scmp.eq.s32.totalorder %s16, 0
      %p44 = por %p42, %p43
      %p45 = scmp.ne.s32.totalorder %s33, %s34
      %p46 = scmp.eq.s32.totalorder %s17, 1
      %p47 = por %p45, %p46
      %p49 = scmp.ne.s32.totalorder %s34, %s48
      %p50 = scmp.eq.s32.totalorder %s17, 0
      %p51 = por %p49, %p50
      %s53 = sadd.s32 %s52, 1
      %p56 = scmp.eq.s32.totalorder %s11, 1
      %p57 = scmp.ne.s32.totalorder %s52, %s54
      %p58 = scmp.eq.s32.totalorder %s11, 0
      %p59 = por %p57, %p58
      %p60 = scmp.ne.s32.totalorder %s52, %s54
      %p61 = scmp.eq.s32.totalorder %s16, 1
      %p62 = por %p60, %p61
      %p63 = scmp.ne.s32.totalorder %s54, %s55
      %p64 = scmp.eq.s32.totalorder %s16, 0
      %p65 = por %p63, %p64
      %p66 = scmp.ne.s32.totalorder %s54, %s55
      %p67 = scmp.eq.s32.totalorder %s17, 1
      %p68 = por %p66, %p67
      %p70 = scmp.ne.s32.totalorder %s55, %s69
      %p71 = scmp.eq.s32.totalorder %s17, 0
      %p72 = por %p70, %p71
      %s73 = ssub.s32 %s18, %s30
      %s74 = ssub.s32 %s19, %s26
      %s75 = sor.u32 %s73, %s74
      %p76 = scmp.eq.s32.totalorder %s75, 0
      %s78 = sadd.s32 %s77, 1
      %s79 = scalar_select %p76, %s77, %s78
      %p82 = pneg %p76
      %p83 = scmp.eq.s32.totalorder %s11, 1
      %p84 = por %p82, %p83
      %p85 = scmp.ne.s32.totalorder %s77, %s80
      %p86 = scmp.eq.s32.totalorder %s11, 0
      %p87 = por %p85, %p86
      %p88 = scmp.ne.s32.totalorder %s77, %s80
      %p89 = scmp.eq.s32.totalorder %s16, 1
      %p90 = por %p88, %p89
      %p91 = scmp.ne.s32.totalorder %s80, %s81
      %p92 = scmp.eq.s32.totalorder %s16, 0
      %p93 = por %p91, %p92
      %p94 = scmp.ne.s32.totalorder %s80, %s81
      %p95 = scmp.eq.s32.totalorder %s17, 1
      %p96 = por %p94, %p95
      %p98 = scmp.ne.s32.totalorder %s81, %s97
      %p99 = scmp.eq.s32.totalorder %s17, 0
      %p100 = por %p98, %p99
      %s101 = ssub.s32 %s18, %s30
      %s102 = ssub.s32 %s19, %s26
      %s103 = sor.u32 %s101, %s102
      %p104 = scmp.eq.s32.totalorder %s103, 0
      %s106 = sadd.s32 %s105, 1
      %s107 = scalar_select %p104, %s105, %s106
      %p110 = pneg %p104
      %p111 = scmp.eq.s32.totalorder %s11, 1
      %p112 = por %p110, %p111
      %p113 = scmp.ne.s32.totalorder %s105, %s108
      %p114 = scmp.eq.s32.totalorder %s11, 0
      %p115 = por %p113, %p114
      %p116 = scmp.ne.s32.totalorder %s105, %s108
      %p117 = scmp.eq.s32.totalorder %s16, 1
      %p118 = por %p116, %p117
      %p119 = scmp.ne.s32.totalorder %s108, %s109
      %p120 = scmp.eq.s32.totalorder %s16, 0
      %p121 = por %p119, %p120
      %p122 = scmp.ne.s32.totalorder %s108, %s109
      %p123 = scmp.eq.s32.totalorder %s17, 1
      %p124 = por %p122, %p123
      %p126 = scmp.ne.s32.totalorder %s109, %s125
      %p127 = scmp.eq.s32.totalorder %s17, 0
      %p128 = por %p126, %p127
      %p129 = scmp.le.s32.totalorder 1, %s11
      %p130 = scmp.lt.s32.totalorder %s11, 3
      %p131 = pnand %p129, %p130
      %p132 = pneg %p131
      // Predicated region
      $region9: #{fem_forward.14} parent=5 // pred_check
        _
      $region10: #{fem_forward.14} parent=5 // pred_check_branch
        %134 = sbr.rel (%p131) target = $region12
      $region11: #{fem_forward.14} parent=5 // pred_region
        %s135 = ssub.s32 %s11, 1
        // Predicated region
        $region13: #{fem_forward.14} parent=11 // pred_check
          %p136 = pneg %p44
        $region14: #{fem_forward.14} parent=11 // pred_check_branch
          %138 = sbr.rel (%p136) target = $region16
        $region15: #{fem_forward.14} parent=11 // pred_region
          %s140 = ssub.s32 64, 64
          %141 = vsyncadd [#allocation3], %s140
          %s143 = sshll.u32 %s0, 4
          %s144 = int_to_ptr.vmem [resolvable:$true] %s143
          %146 = dma.vmem_to_smem %s144, 64, [#allocation2], [#allocation3]
        $region16: #{fem_forward.14} parent=11 // pred_fallthru
          _
        // Predicated region
        $region17: #{fem_forward.14} parent=11 // pred_check
          %p147 = pneg %p65
        $region18: #{fem_forward.14} parent=11 // pred_check_branch
          %149 = sbr.rel (%p147) target = $region20
        $region19: #{fem_forward.14} parent=11 // pred_region
          %s151 = ssub.s32 64, 64
          %152 = vsyncadd [#allocation5], %s151
          %s154 = sshll.u32 %s1, 4
          %s155 = int_to_ptr.vmem [resolvable:$true] %s154
          %157 = dma.vmem_to_smem %s155, 64, [#allocation4], [#allocation5]
        $region20: #{fem_forward.14} parent=11 // pred_fallthru
          _
      $region12: #{fem_forward.14} parent=5 // pred_fallthru
        _
      %p158 = scmp.lt.s32.totalorder %s11, 2
      // Predicated region
      $region21: #{fem_forward.14} parent=5 // pred_check
        %p159 = pneg %p158
      $region22: #{fem_forward.14} parent=5 // pred_check_branch
        %161 = sbr.rel (%p159) target = $region24
      $region23: #{fem_forward.14} parent=5 // pred_region
        // Predicated region
        $region25: #{fem_forward.14} parent=23 // pred_check
          %p162 = pneg %p87
        $region26: #{fem_forward.14} parent=23 // pred_check_branch
          %164 = sbr.rel (%p162) target = $region28
        $region27: #{fem_forward.14} parent=23 // pred_region
          %s165 = smul.u32 2, %s19
          %p166 = scmp.lt.s32.totalorder %s18, 1
          %s167 = scalar_select %p166, %s18, 1
          %p168 = scmp.lt.s32.totalorder %s165, 1
          %s169 = scalar_select %p168, %s165, 1
          %s170 = smul.addr %s169, 2
          %s171 = smul.addr %s167, 4
          %s172 = sadd.s32 %s170, %s171
          %s173 = smul.addr %s172, 4
          %s174 = scalar_lea.vmem %s2, %s173
          %s175 = smul.u32 2, %s19
        $region28: #{fem_forward.14} parent=23 // pred_fallthru
          _
      $region24: #{fem_forward.14} parent=5 // pred_fallthru
        _
      %p176 = scmp.le.s32.totalorder 1, %s11
      %p177 = scmp.lt.s32.totalorder %s11, 3
      %p178 = pnand %p176, %p177
      %p179 = pneg %p178
      // Predicated region
      $region29: #{fem_forward.14} parent=5 // pred_check
        _
      $region30: #{fem_forward.14} parent=5 // pred_check_branch
        %181 = sbr.rel (%p178) target = $region32
      $region31: #{fem_forward.14} parent=5 // pred_region
        %s182 = ssub.s32 %s11, 1
        // Predicated region
        $region33: #{fem_forward.14} parent=31 // pred_check
          %p183 = pneg %p44
        $region34: #{fem_forward.14} parent=31 // pred_check_branch
          %185 = sbr.rel (%p183) target = $region36
        $region35: #{fem_forward.14} parent=31 // pred_region
          %186 = dma.done [#allocation3], 64
        $region36: #{fem_forward.14} parent=31 // pred_fallthru
          _
        // Predicated region
        $region37: #{fem_forward.14} parent=31 // pred_check
          %p187 = pneg %p65
        $region38: #{fem_forward.14} parent=31 // pred_check_branch
          %189 = sbr.rel (%p187) target = $region40
        $region39: #{fem_forward.14} parent=31 // pred_region
          %190 = dma.done [#allocation5], 64
        $region40: #{fem_forward.14} parent=31 // pred_fallthru
          _
        %191 = sfence
        %p192 = pneg %p44
        %p193 = pneg %p41
        %p194 = pneg %p65
        %p195 = pneg %p62
        %s196 = smul.u32 2, %s21
        %p197 = scmp.lt.s32.totalorder %s20, 1
        %s198 = scalar_select %p197, %s20, 1
        %p199 = scmp.lt.s32.totalorder %s196, 1
        %s200 = scalar_select %p199, %s196, 1
        %s201 = smul.addr %s200, 2
        %s202 = smul.addr %s198, 4
        %s203 = sadd.s32 %s201, %s202
        %s204 = smul.addr %s203, 4
        %s205 = scalar_lea.vmem %s2, %s204
        %p206 = pneg %p93
        %p207 = pneg %p90
        %p208 = pneg %p121
        %p209 = pneg %p118
        %s210 = smul.u32 4, %s21
        %p211 = scmp.lt.s32.totalorder %s20, 1
        %s212 = scalar_select %p211, %s20, 1
        %p213 = scmp.lt.s32.totalorder %s210, 3
        %s214 = scalar_select %p213, %s210, 3
        %s215 = smul.addr %s214, 2
        %s216 = smul.addr %s212, 8
        %s217 = sadd.s32 %s215, %s216
        %s218 = smul.addr %s217, 4
        %s219 = scalar_lea.vmem %s3, %s218
        %s220 = smul.u32 2, %s21
        %p221 = scmp.lt.s32.totalorder %s20, 1
        %s222 = scalar_select %p221, %s20, 1
        %p223 = scmp.lt.s32.totalorder %s220, 1
        %s224 = scalar_select %p223, %s220, 1
        %s225 = smul.addr %s224, 2
        %s226 = smul.addr %s222, 4
        %s227 = sadd.s32 %s225, %s226
        %s228 = smul.addr %s227, 4
        %s229 = scalar_lea.vmem %s2, %s228
        %s230 = smul.u32 2, %s21
        %s231 = smul.u32 4, %s21
        %p232 = scmp.lt.s32.totalorder %s20, 1
        %s233 = scalar_select %p232, %s20, 1
        %p234 = scmp.lt.s32.totalorder %s231, 3
        %s235 = scalar_select %p234, %s231, 3
        %s236 = smul.addr %s235, 2
        %s237 = smul.addr %s233, 8
        %s238 = sadd.s32 %s236, %s237
        %s239 = smul.addr %s238, 4
        %s240 = scalar_lea.vmem %s3, %s239
        %s241 = smul.u32 4, %s21
        %s242 = smul.u32 %s21, 4
        %s243 = smul.u32 %s242, 128
        %s244 = sld [smem:[#allocation2 + %s243]]
        %v245 = vld [vmem:[%s229] sm:$0xf]
        %v246 = vld [vmem:[%s229 + $0x4] sm:$0xf]
        %v247 = vunpack.c.l.bf16 %v245
        %v248 = vunpack.c.l.bf16 %v246
        %v249 = vstv %s244
        %v250 = vmul.f32 %v249, %v247
        %v251 = vmul.f32 %v249, %v248
        %s252 = sld [smem:[#allocation4 + %s243]]
        %v253 = vstv %s252
        %v254 = vadd.f32 %v250, %v253
        %v255 = vadd.f32 %v251, %v253
        %s256 = sadd.s32 %s243, 1
        %s257 = sld [smem:[#allocation4 + %s256]]
        %vm258 = vcmp.gt.f32.partialorder %v254, 0.0
        %vm259 = vcmp.gt.f32.partialorder %v255, 0.0
        %v260 = vstv %s257
        %v261 = vmul.f32 %v260, %v254
        %v262 = vmul.f32 %v260, %v255
        %v263 = vsel %vm258, %v254, %v261
        %v264 = vsel %vm259, %v255, %v262
        %v265 = vpack.c.bf16 %v264, %v263
        %v267 = vunpack.c.l.b16 %v265
        %v268 = vunpack.c.h.b16 %v265
        %v269 = vpack.c.b16 %v267, %v267
        %v270 = vpack.c.b16 %v268, %v268
        %vm273 = vcmask 125952
        %274 = vst.msk [vmem:[%s240] sm:$0xf] %vm273, %v269
        %275 = vst.msk [vmem:[%s240 + $0x4] sm:$0xf] %vm273, %v270
        %s276 = sadd.s32 %s242, 1
        %s277 = smul.u32 %s276, 128
        %s278 = sld [smem:[#allocation2 + %s277]]
        %v279 = vld [vmem:[%s229] sm:$0xf]
        %v280 = vld [vmem:[%s229 + $0x4] sm:$0xf]
        %v281 = vunpack.c.l.bf16 %v279
        %v282 = vunpack.c.l.bf16 %v280
        %v283 = vstv %s278
        %v284 = vmul.f32 %v283, %v281
        %v285 = vmul.f32 %v283, %v282
        %s286 = sld [smem:[#allocation4 + %s277]]
        %v287 = vstv %s286
        %v288 = vadd.f32 %v284, %v287
        %v289 = vadd.f32 %v285, %v287
        %s290 = sadd.s32 %s277, 1
        %s291 = sld [smem:[#allocation4 + %s290]]
        %vm292 = vcmp.gt.f32.partialorder %v288, 0.0
        %vm293 = vcmp.gt.f32.partialorder %v289, 0.0
        %v294 = vstv %s291
        %v295 = vmul.f32 %v294, %v288
        %v296 = vmul.f32 %v294, %v289
        %v297 = vsel %vm292, %v288, %v295
        %v298 = vsel %vm293, %v289, %v296
        %v299 = vpack.c.bf16 %v298, %v297
        %v301 = vunpack.c.l.b16 %v299
        %v302 = vunpack.c.h.b16 %v299
        %v303 = vpack.c.b16 %v301, %v301
        %v304 = vpack.c.b16 %v302, %v302
        %s307 = scalar_lea.vmem %s240, 8
        %308 = vst.msk [vmem:[%s307] sm:$0xf] %vm273, %v303
        %309 = vst.msk [vmem:[%s307 + $0x4] sm:$0xf] %vm273, %v304
        %s310 = sadd.s32 %s242, 2
        %s311 = smul.u32 %s310, 128
        %s312 = sld [smem:[#allocation2 + %s311]]
        %s313 = scalar_lea.vmem %s229, 8
        %v314 = vld [vmem:[%s313] sm:$0xf]
        %v315 = vld [vmem:[%s313 + $0x4] sm:$0xf]
        %v316 = vunpack.c.l.bf16 %v314
        %v317 = vunpack.c.l.bf16 %v315
        %v318 = vstv %s312
        %v319 = vmul.f32 %v318, %v316
        %v320 = vmul.f32 %v318, %v317
        %s321 = sld [smem:[#allocation4 + %s311]]
        %v322 = vstv %s321
        %v323 = vadd.f32 %v319, %v322
        %v324 = vadd.f32 %v320, %v322
        %s325 = sadd.s32 %s311, 1
        %s326 = sld [smem:[#allocation4 + %s325]]
        %vm327 = vcmp.gt.f32.partialorder %v323, 0.0
        %vm328 = vcmp.gt.f32.partialorder %v324, 0.0
        %v329 = vstv %s326
        %v330 = vmul.f32 %v329, %v323
        %v331 = vmul.f32 %v329, %v324
        %v332 = vsel %vm327, %v323, %v330
        %v333 = vsel %vm328, %v324, %v331
        %v334 = vpack.c.bf16 %v333, %v332
        %v336 = vunpack.c.l.b16 %v334
        %v337 = vunpack.c.h.b16 %v334
        %v338 = vpack.c.b16 %v336, %v336
        %v339 = vpack.c.b16 %v337, %v337
        %s342 = scalar_lea.vmem %s240, 16
        %343 = vst.msk [vmem:[%s342] sm:$0xf] %vm273, %v338
        %344 = vst.msk [vmem:[%s342 + $0x4] sm:$0xf] %vm273, %v339
        %s345 = sadd.s32 %s242, 3
        %s346 = smul.u32 %s345, 128
        %s347 = sld [smem:[#allocation2 + %s346]]
        %v348 = vld [vmem:[%s313] sm:$0xf]
        %v349 = vld [vmem:[%s313 + $0x4] sm:$0xf]
        %v350 = vunpack.c.l.bf16 %v348
        %v351 = vunpack.c.l.bf16 %v349
        %v352 = vstv %s347
        %v353 = vmul.f32 %v352, %v350
        %v354 = vmul.f32 %v352, %v351
        %s355 = sld [smem:[#allocation4 + %s346]]
        %v356 = vstv %s355
        %v357 = vadd.f32 %v353, %v356
        %v358 = vadd.f32 %v354, %v356
        %s359 = sadd.s32 %s346, 1
        %s360 = sld [smem:[#allocation4 + %s359]]
        %vm361 = vcmp.gt.f32.partialorder %v357, 0.0
        %vm362 = vcmp.gt.f32.partialorder %v358, 0.0
        %v363 = vstv %s360
        %v364 = vmul.f32 %v363, %v357
        %v365 = vmul.f32 %v363, %v358
        %v366 = vsel %vm361, %v357, %v364
        %v367 = vsel %vm362, %v358, %v365
        %v368 = vpack.c.bf16 %v367, %v366
        %v370 = vunpack.c.l.b16 %v368
        %v371 = vunpack.c.h.b16 %v368
        %v372 = vpack.c.b16 %v370, %v370
        %v373 = vpack.c.b16 %v371, %v371
        %s376 = scalar_lea.vmem %s240, 24
        %377 = vst.msk [vmem:[%s376] sm:$0xf] %vm273, %v372
        %378 = vst.msk [vmem:[%s376 + $0x4] sm:$0xf] %vm273, %v373
        %s379 = smul.u32 4, %s21
        %p380 = scmp.lt.s32.totalorder %s20, 1
        %s381 = scalar_select %p380, %s20, 1
        %p382 = scmp.lt.s32.totalorder %s379, 3
        %s383 = scalar_select %p382, %s379, 3
        %s384 = smul.addr %s383, 2
        %s385 = smul.addr %s381, 8
        %s386 = sadd.s32 %s384, %s385
        %s387 = smul.addr %s386, 4
        %s388 = scalar_lea.vmem %s3, %s387
        // Predicated region
        $region41: #{fem_forward.14} parent=31 // pred_check
          %p389 = pneg %p118
        $region42: #{fem_forward.14} parent=31 // pred_check_branch
          %391 = sbr.rel (%p389) target = $region44
        $region43: #{fem_forward.14} parent=31 // pred_region
          %s392 = smul.u32 4, %s21
        $region44: #{fem_forward.14} parent=31 // pred_fallthru
          _
      $region32: #{fem_forward.14} parent=5 // pred_fallthru
        _
      %p393 = scmp.le.s32.totalorder 2, %s11
      // Predicated region
      $region45: #{fem_forward.14} parent=5 // pred_check
        %p394 = pneg %p393
      $region46: #{fem_forward.14} parent=5 // pred_check_branch
        %396 = sbr.rel (%p394) target = $region48
      $region47: #{fem_forward.14} parent=5 // pred_region
        %s397 = ssub.s32 %s11, 2
        // Predicated region
        $region49: #{fem_forward.14} parent=47 // pred_check
          %p398 = pneg %p124
        $region50: #{fem_forward.14} parent=47 // pred_check_branch
          %400 = sbr.rel (%p398) target = $region52
        $region51: #{fem_forward.14} parent=47 // pred_region
          %s401 = smul.u32 4, %s23
          %p402 = scmp.lt.s32.totalorder %s22, 1
          %s403 = scalar_select %p402, %s22, 1
          %p404 = scmp.lt.s32.totalorder %s401, 3
          %s405 = scalar_select %p404, %s401, 3
          %s406 = smul.addr %s405, 2
          %s407 = smul.addr %s403, 8
          %s408 = sadd.s32 %s406, %s407
          %s409 = smul.addr %s408, 4
          %s410 = scalar_lea.vmem %s3, %s409
        $region52: #{fem_forward.14} parent=47 // pred_fallthru
          _
      $region48: #{fem_forward.14} parent=5 // pred_fallthru
        _
    $region6: #{fem_forward.14} parent=1 // loop_footer
      %s15 = sadd.s32 1, %s11
    $region7: #{fem_forward.14} parent=1 // loop_footer_branch
      %10 = sbr.rel target = $region3
    $region8: #{fem_forward.14} parent=1 // loop_exit
      _
    %411 = vsyncpa [#allocation3], 1
    %s412 = scalar_lea.sflag [#allocation3], 1
    %413 = vsyncpa %s412, 1
    %414 = vsyncpa [#allocation5], 1

// kernel: fem_forward.15
$region0: #{fem_forward.15}
  #allocation0 [shape = 'u32[]', space=smem, size = 0x4, offset = 0x4, fixed_abs, tag = 'smem constant byte address 0x4 - core index']
  #allocation1 [shape = 'u32[144,128]{1,0:T(1,128)}', space=vmem, size = 0x12000, scoped, tag = 'internal scratch']
  %s0 = inlined_call_operand.vmem [shape: f32[4,4], index: 0, kind: input, shape index: {}]
  %s1 = inlined_call_operand.vmem [shape: f32[4,2], index: 1, kind: input, shape index: {}]
  %s2 = inlined_call_operand.vmem [shape: bf16[2,4,256], index: 2, kind: input, shape index: {}]
  %s3 = inlined_call_operand.vmem [shape: f32[2,4,256], index: 3, kind: output, shape index: {}]
  %s4 = sld [smem:[#allocation0]]
  $region45: #{fem_forward.15} parent=0
    _
  %s6 = ssub.s32 1, %s4
  %s7 = scalar_select 0, %s6, %s4
  loop: start=0, step=1, limit=6
  $region2: #{fem_forward.15} parent=0 // loop_pre_header
    _
  $region3: #{fem_forward.15} parent=0 // loop_header
    %s9 = sphi 0, %s13
    %p10 = scmp.ge.s32.totalorder %s9, 6
    %s16 = sphi 0, %s28
    %s17 = sphi 0, %s24
    %s18 = sphi 0, %s16
    %s19 = sphi 0, %s17
    %s20 = sphi 0, %s18
    %s21 = sphi 0, %s19
    %s29 = sphi 0, %s29
    %s31 = sphi 0, %s29
    %s32 = sphi 0, %s31
    %s46 = sphi 0, %s32
    %s50 = sphi 0, %s50
    %s52 = sphi 0, %s50
    %s53 = sphi 0, %s52
    %s67 = sphi 0, %s53
    %s75 = sphi 0, %s77
    %s78 = sphi 0, %s75
    %s79 = sphi 0, %s78
    %s95 = sphi 0, %s79
    %s103 = sphi 0, %s105
    %s106 = sphi 0, %s103
    %s107 = sphi 0, %s106
    %s123 = sphi 0, %s107
  $region4: #{fem_forward.15} parent=0 // loop_header_branch
    %12 = sbr.rel (%p10) target = $region8
  $region5: #{fem_forward.15} parent=0 // loop_body
    %s14 = ssub.s32 %s9, 1
    %s15 = ssub.s32 %s9, 2
    %s22 = sadd.s32 1, %s17
    %p23 = scmp.ge.s32.totalorder %s22, 2
    %s24 = scalar_select %p23, 0, %s22
    %s25 = sadd.s32 1, %s16
    %s26 = scalar_select %p23, %s25, %s16
    %p27 = scmp.ge.s32.totalorder %s26, 2
    %s28 = scalar_select %p27, 0, %s26
    %s30 = sadd.s32 %s29, 1
    %p33 = scmp.eq.s32.totalorder %s9, 3
    %p34 = scmp.ne.s32.totalorder %s29, %s31
    %p35 = scmp.eq.s32.totalorder %s9, 0
    %p36 = por %p34, %p35
    %p37 = scmp.ne.s32.totalorder %s29, %s31
    %p38 = scmp.eq.s32.totalorder %s14, 3
    %p39 = por %p37, %p38
    %p40 = scmp.ne.s32.totalorder %s31, %s32
    %p41 = scmp.eq.s32.totalorder %s14, 0
    %p42 = por %p40, %p41
    %p43 = scmp.ne.s32.totalorder %s31, %s32
    %p44 = scmp.eq.s32.totalorder %s15, 3
    %p45 = por %p43, %p44
    %p47 = scmp.ne.s32.totalorder %s32, %s46
    %p48 = scmp.eq.s32.totalorder %s15, 0
    %p49 = por %p47, %p48
    %s51 = sadd.s32 %s50, 1
    %p54 = scmp.eq.s32.totalorder %s9, 3
    %p55 = scmp.ne.s32.totalorder %s50, %s52
    %p56 = scmp.eq.s32.totalorder %s9, 0
    %p57 = por %p55, %p56
    %p58 = scmp.ne.s32.totalorder %s50, %s52
    %p59 = scmp.eq.s32.totalorder %s14, 3
    %p60 = por %p58, %p59
    %p61 = scmp.ne.s32.totalorder %s52, %s53
    %p62 = scmp.eq.s32.totalorder %s14, 0
    %p63 = por %p61, %p62
    %p64 = scmp.ne.s32.totalorder %s52, %s53
    %p65 = scmp.eq.s32.totalorder %s15, 3
    %p66 = por %p64, %p65
    %p68 = scmp.ne.s32.totalorder %s53, %s67
    %p69 = scmp.eq.s32.totalorder %s15, 0
    %p70 = por %p68, %p69
    %s71 = ssub.s32 %s16, %s28
    %s72 = ssub.s32 %s17, %s24
    %s73 = sor.u32 %s71, %s72
    %p74 = scmp.eq.s32.totalorder %s73, 0
    %s76 = sadd.s32 %s75, 1
    %s77 = scalar_select %p74, %s75, %s76
    %p80 = pneg %p74
    %p81 = scmp.eq.s32.totalorder %s9, 3
    %p82 = por %p80, %p81
    %p83 = scmp.ne.s32.totalorder %s75, %s78
    %p84 = scmp.eq.s32.totalorder %s9, 0
    %p85 = por %p83, %p84
    %p86 = scmp.ne.s32.totalorder %s75, %s78
    %p87 = scmp.eq.s32.totalorder %s14, 3
    %p88 = por %p86, %p87
    %p89 = scmp.ne.s32.totalorder %s78, %s79
    %p90 = scmp.eq.s32.totalorder %s14, 0
    %p91 = por %p89, %p90
    %p92 = scmp.ne.s32.totalorder %s78, %s79
    %p93 = scmp.eq.s32.totalorder %s15, 3
    %p94 = por %p92, %p93
    %p96 = scmp.ne.s32.totalorder %s79, %s95
    %p97 = scmp.eq.s32.totalorder %s15, 0
    %p98 = por %p96, %p97
    %s99 = ssub.s32 %s16, %s28
    %s100 = ssub.s32 %s17, %s24
    %s101 = sor.u32 %s99, %s100
    %p102 = scmp.eq.s32.totalorder %s101, 0
    %s104 = sadd.s32 %s103, 1
    %s105 = scalar_select %p102, %s103, %s104
    %p108 = pneg %p102
    %p109 = scmp.eq.s32.totalorder %s9, 3
    %p110 = por %p108, %p109
    %p111 = scmp.ne.s32.totalorder %s103, %s106
    %p112 = scmp.eq.s32.totalorder %s9, 0
    %p113 = por %p111, %p112
    %p114 = scmp.ne.s32.totalorder %s103, %s106
    %p115 = scmp.eq.s32.totalorder %s14, 3
    %p116 = por %p114, %p115
    %p117 = scmp.ne.s32.totalorder %s106, %s107
    %p118 = scmp.eq.s32.totalorder %s14, 0
    %p119 = por %p117, %p118
    %p120 = scmp.ne.s32.totalorder %s106, %s107
    %p121 = scmp.eq.s32.totalorder %s15, 3
    %p122 = por %p120, %p121
    %p124 = scmp.ne.s32.totalorder %s107, %s123
    %p125 = scmp.eq.s32.totalorder %s15, 0
    %p126 = por %p124, %p125
    %p127 = scmp.le.s32.totalorder 1, %s9
    %p128 = scmp.lt.s32.totalorder %s9, 5
    %p129 = pnand %p127, %p128
    %p130 = pneg %p129
    // Predicated region
    $region9: #{fem_forward.15} parent=5 // pred_check
      _
    $region10: #{fem_forward.15} parent=5 // pred_check_branch
      %132 = sbr.rel (%p129) target = $region12
    $region11: #{fem_forward.15} parent=5 // pred_region
      %s133 = ssub.s32 %s9, 1
      // Predicated region
      $region13: #{fem_forward.15} parent=11 // pred_check
        %p134 = pneg %p42
      $region14: #{fem_forward.15} parent=11 // pred_check_branch
        %136 = sbr.rel (%p134) target = $region16
      $region15: #{fem_forward.15} parent=11 // pred_region
        _
      $region16: #{fem_forward.15} parent=11 // pred_fallthru
        _
      // Predicated region
      $region17: #{fem_forward.15} parent=11 // pred_check
        %p137 = pneg %p63
      $region18: #{fem_forward.15} parent=11 // pred_check_branch
        %139 = sbr.rel (%p137) target = $region20
      $region19: #{fem_forward.15} parent=11 // pred_region
        _
      $region20: #{fem_forward.15} parent=11 // pred_fallthru
        _
    $region12: #{fem_forward.15} parent=5 // pred_fallthru
      _
    %p140 = scmp.lt.s32.totalorder %s9, 4
    // Predicated region
    $region21: #{fem_forward.15} parent=5 // pred_check
      %p141 = pneg %p140
    $region22: #{fem_forward.15} parent=5 // pred_check_branch
      %143 = sbr.rel (%p141) target = $region24
    $region23: #{fem_forward.15} parent=5 // pred_region
      // Predicated region
      $region25: #{fem_forward.15} parent=23 // pred_check
        %p144 = pneg %p85
      $region26: #{fem_forward.15} parent=23 // pred_check_branch
        %146 = sbr.rel (%p144) target = $region28
      $region27: #{fem_forward.15} parent=23 // pred_region
        %p147 = scmp.lt.s32.totalorder %s16, 1
        %s148 = scalar_select %p147, %s16, 1
        %p149 = scmp.lt.s32.totalorder %s17, 1
        %s150 = scalar_select %p149, %s17, 1
        %s151 = smul.addr %s148, 2
        %s152 = sadd.s32 %s150, %s151
        %s153 = smul.addr %s152, 2
        %s154 = scalar_lea.vmem %s2, %s153
      $region28: #{fem_forward.15} parent=23 // pred_fallthru
        _
    $region24: #{fem_forward.15} parent=5 // pred_fallthru
      _
    %p155 = scmp.le.s32.totalorder 1, %s9
    %p156 = scmp.lt.s32.totalorder %s9, 5
    %p157 = pnand %p155, %p156
    %p158 = pneg %p157
    // Predicated region
    $region29: #{fem_forward.15} parent=5 // pred_check
      _
    $region30: #{fem_forward.15} parent=5 // pred_check_branch
      %160 = sbr.rel (%p157) target = $region32
    $region31: #{fem_forward.15} parent=5 // pred_region
      %s161 = ssub.s32 %s9, 1
      %p162 = pneg %p42
      %p163 = pneg %p39
      %p164 = pneg %p63
      %p165 = pneg %p60
      %p166 = scmp.lt.s32.totalorder %s18, 1
      %s167 = scalar_select %p166, %s18, 1
      %p168 = scmp.lt.s32.totalorder %s19, 1
      %s169 = scalar_select %p168, %s19, 1
      %s170 = smul.addr %s167, 2
      %s171 = sadd.s32 %s169, %s170
      %s172 = smul.addr %s171, 2
      %s173 = scalar_lea.vmem %s2, %s172
      %p174 = pneg %p91
      %p175 = pneg %p88
      %p176 = pneg %p119
      %p177 = pneg %p116
      %p178 = scmp.lt.s32.totalorder %s18, 1
      %s179 = scalar_select %p178, %s18, 1
      %p180 = scmp.lt.s32.totalorder %s19, 1
      %s181 = scalar_select %p180, %s19, 1
      %s182 = smul.addr %s179, 2
      %s183 = sadd.s32 %s181, %s182
      %s184 = smul.addr %s183, 4
      %s185 = scalar_lea.vmem %s3, %s184
      %p186 = scmp.lt.s32.totalorder %s18, 1
      %s187 = scalar_select %p186, %s18, 1
      %p188 = scmp.lt.s32.totalorder %s19, 1
      %s189 = scalar_select %p188, %s19, 1
      %s190 = smul.addr %s187, 2
      %s191 = sadd.s32 %s189, %s190
      %s192 = smul.addr %s191, 2
      %s193 = scalar_lea.vmem %s2, %s192
      %p194 = scmp.lt.s32.totalorder %s18, 1
      %s195 = scalar_select %p194, %s18, 1
      %p196 = scmp.lt.s32.totalorder %s19, 1
      %s197 = scalar_select %p196, %s19, 1
      %s198 = smul.addr %s195, 2
      %s199 = sadd.s32 %s197, %s198
      %s200 = smul.addr %s199, 4
      %s201 = scalar_lea.vmem %s3, %s200
      %v202 = vld [vmem:[%s0] sm:$0xf]
      %v203 = vld [vmem:[%s193] sm:$0x3]
      %v204 = vunpack.c.l.bf16 %v203
      %206 = vset.pattern.permute.xlu0 0
      %207 = vperm.xlu0 %206, %v202
      %v208 = vpop.permute.xlu0 %207
      %v210 = vlaneseq
      %v211 = vshrl.u32 %v210, 7
      %v212 = vsub.s32 0, %v211
      %v213 = vrot.slane %v204, %v212
      %v214 = vmul.f32 %v208, %v213
      %215 = vset.pattern.permute.xlu0 1
      %216 = vperm.xlu0 %215, %v202
      %v217 = vpop.permute.xlu0 %216
      %v219 = vlaneseq
      %v220 = vshrl.u32 %v219, 7
      %v221 = vsub.s32 1, %v220
      %v222 = vrot.slane %v204, %v221
      %v223 = vmul.f32 %v217, %v222
      %v224 = vadd.f32 %v214, %v223
      %225 = vset.pattern.permute.xlu0 2
      %226 = vperm.xlu0 %225, %v202
      %v227 = vpop.permute.xlu0 %226
      %v229 = vlaneseq
      %v230 = vshrl.u32 %v229, 7
      %v231 = vsub.s32 2, %v230
      %v232 = vrot.slane %v204, %v231
      %v233 = vmul.f32 %v227, %v232
      %v234 = vadd.f32 %v224, %v233
      %235 = vset.pattern.permute.xlu0 3
      %236 = vperm.xlu0 %235, %v202
      %v237 = vpop.permute.xlu0 %236
      %v239 = vlaneseq
      %v240 = vshrl.u32 %v239, 7
      %v241 = vsub.s32 3, %v240
      %v242 = vrot.slane %v204, %v241
      %v243 = vmul.f32 %v237, %v242
      %v244 = vadd.f32 %v234, %v243
      %v245 = vld [vmem:[%s1] sm:$0xf]
      %247 = vset.pattern.permute.xlu0 0
      %248 = vperm.xlu0 %247, %v245
      %v249 = vpop.permute.xlu0 %248
      %v251 = vadd.f32 %v244, %v249
      %vm252 = vcmp.gt.f32.partialorder %v251, 0.0
      %253 = vset.pattern.permute.xlu0 1
      %254 = vperm.xlu0 %253, %v245
      %v255 = vpop.permute.xlu0 %254
      %v257 = vmul.f32 %v255, %v251
      %v258 = vsel %vm252, %v251, %v257
      %259 = vst [vmem:[%s201] sm:$0xf] %v258
      %p260 = scmp.lt.s32.totalorder %s18, 1
      %s261 = scalar_select %p260, %s18, 1
      %p262 = scmp.lt.s32.totalorder %s19, 1
      %s263 = scalar_select %p262, %s19, 1
      %s264 = smul.addr %s261, 2
      %s265 = sadd.s32 %s263, %s264
      %s266 = smul.addr %s265, 4
      %s267 = scalar_lea.vmem %s3, %s266
      // Predicated region
      $region33: #{fem_forward.15} parent=31 // pred_check
        %p268 = pneg %p116
      $region34: #{fem_forward.15} parent=31 // pred_check_branch
        %270 = sbr.rel (%p268) target = $region36
      $region35: #{fem_forward.15} parent=31 // pred_region
        _
      $region36: #{fem_forward.15} parent=31 // pred_fallthru
        _
    $region32: #{fem_forward.15} parent=5 // pred_fallthru
      _
    %p271 = scmp.le.s32.totalorder 2, %s9
    // Predicated region
    $region37: #{fem_forward.15} parent=5 // pred_check
      %p272 = pneg %p271
    $region38: #{fem_forward.15} parent=5 // pred_check_branch
      %274 = sbr.rel (%p272) target = $region40
    $region39: #{fem_forward.15} parent=5 // pred_region
      %s275 = ssub.s32 %s9, 2
      // Predicated region
      $region41: #{fem_forward.15} parent=39 // pred_check
        %p276 = pneg %p122
      $region42: #{fem_forward.15} parent=39 // pred_check_branch
        %278 = sbr.rel (%p276) target = $region44
      $region43: #{fem_forward.15} parent=39 // pred_region
        %p279 = scmp.lt.s32.totalorder %s20, 1
        %s280 = scalar_select %p279, %s20, 1
        %p281 = scmp.lt.s32.totalorder %s21, 1
        %s282 = scalar_select %p281, %s21, 1
        %s283 = smul.addr %s280, 2
        %s284 = sadd.s32 %s282, %s283
        %s285 = smul.addr %s284, 4
        %s286 = scalar_lea.vmem %s3, %s285
      $region44: #{fem_forward.15} parent=39 // pred_fallthru
        _
    $region40: #{fem_forward.15} parent=5 // pred_fallthru
      _
  $region6: #{fem_forward.15} parent=0 // loop_footer
    %s13 = sadd.s32 1, %s9
  $region7: #{fem_forward.15} parent=0 // loop_footer_branch
    %8 = sbr.rel target = $region3
  $region8: #{fem_forward.15} parent=0 // loop_exit
    _

// kernel: fem_forward.18
$region0: #{fem_forward.18}
  #allocation0 [shape = 'u32[]', space=smem, size = 0x4, offset = 0x4, fixed_abs, tag = 'smem constant byte address 0x4 - core index']
  #allocation1 [shape = 'u32[144,128]{1,0:T(1,128)}', space=vmem, size = 0x12000, scoped, tag = 'internal scratch']
  %s0 = inlined_call_operand.vmem [shape: f32[4,4], index: 0, kind: input, shape index: {}]
  %s1 = inlined_call_operand.vmem [shape: bf16[2,4,256], index: 1, kind: input, shape index: {}]
  %s2 = inlined_call_operand.vmem [shape: f32[2,2,4,2], index: 2, kind: output, shape index: {}]
  %s3 = sld [smem:[#allocation0]]
  $region41: #{fem_forward.18} parent=0
    _
  %s5 = ssub.s32 1, %s3
  %s6 = scalar_select 0, %s5, %s3
  loop: start=0, step=1, limit=6
  $region2: #{fem_forward.18} parent=0 // loop_pre_header
    _
  $region3: #{fem_forward.18} parent=0 // loop_header
    %s8 = sphi 0, %s12
    %p9 = scmp.ge.s32.totalorder %s8, 6
    %s15 = sphi 0, %s27
    %s16 = sphi 0, %s23
    %s17 = sphi 0, %s15
    %s18 = sphi 0, %s16
    %s19 = sphi 0, %s17
    %s20 = sphi 0, %s18
    %s28 = sphi 0, %s28
    %s30 = sphi 0, %s28
    %s31 = sphi 0, %s30
    %s45 = sphi 0, %s31
    %s53 = sphi 0, %s55
    %s56 = sphi 0, %s53
    %s57 = sphi 0, %s56
    %s73 = sphi 0, %s57
    %s81 = sphi 0, %s83
    %s84 = sphi 0, %s81
    %s85 = sphi 0, %s84
    %s101 = sphi 0, %s85
  $region4: #{fem_forward.18} parent=0 // loop_header_branch
    %11 = sbr.rel (%p9) target = $region8
  $region5: #{fem_forward.18} parent=0 // loop_body
    %s13 = ssub.s32 %s8, 1
    %s14 = ssub.s32 %s8, 2
    %s21 = sadd.s32 1, %s16
    %p22 = scmp.ge.s32.totalorder %s21, 2
    %s23 = scalar_select %p22, 0, %s21
    %s24 = sadd.s32 1, %s15
    %s25 = scalar_select %p22, %s24, %s15
    %p26 = scmp.ge.s32.totalorder %s25, 2
    %s27 = scalar_select %p26, 0, %s25
    %s29 = sadd.s32 %s28, 1
    %p32 = scmp.eq.s32.totalorder %s8, 3
    %p33 = scmp.ne.s32.totalorder %s28, %s30
    %p34 = scmp.eq.s32.totalorder %s8, 0
    %p35 = por %p33, %p34
    %p36 = scmp.ne.s32.totalorder %s28, %s30
    %p37 = scmp.eq.s32.totalorder %s13, 3
    %p38 = por %p36, %p37
    %p39 = scmp.ne.s32.totalorder %s30, %s31
    %p40 = scmp.eq.s32.totalorder %s13, 0
    %p41 = por %p39, %p40
    %p42 = scmp.ne.s32.totalorder %s30, %s31
    %p43 = scmp.eq.s32.totalorder %s14, 3
    %p44 = por %p42, %p43
    %p46 = scmp.ne.s32.totalorder %s31, %s45
    %p47 = scmp.eq.s32.totalorder %s14, 0
    %p48 = por %p46, %p47
    %s49 = ssub.s32 %s15, %s27
    %s50 = ssub.s32 %s16, %s23
    %s51 = sor.u32 %s49, %s50
    %p52 = scmp.eq.s32.totalorder %s51, 0
    %s54 = sadd.s32 %s53, 1
    %s55 = scalar_select %p52, %s53, %s54
    %p58 = pneg %p52
    %p59 = scmp.eq.s32.totalorder %s8, 3
    %p60 = por %p58, %p59
    %p61 = scmp.ne.s32.totalorder %s53, %s56
    %p62 = scmp.eq.s32.totalorder %s8, 0
    %p63 = por %p61, %p62
    %p64 = scmp.ne.s32.totalorder %s53, %s56
    %p65 = scmp.eq.s32.totalorder %s13, 3
    %p66 = por %p64, %p65
    %p67 = scmp.ne.s32.totalorder %s56, %s57
    %p68 = scmp.eq.s32.totalorder %s13, 0
    %p69 = por %p67, %p68
    %p70 = scmp.ne.s32.totalorder %s56, %s57
    %p71 = scmp.eq.s32.totalorder %s14, 3
    %p72 = por %p70, %p71
    %p74 = scmp.ne.s32.totalorder %s57, %s73
    %p75 = scmp.eq.s32.totalorder %s14, 0
    %p76 = por %p74, %p75
    %s77 = ssub.s32 %s15, %s27
    %s78 = ssub.s32 %s16, %s23
    %s79 = sor.u32 %s77, %s78
    %p80 = scmp.eq.s32.totalorder %s79, 0
    %s82 = sadd.s32 %s81, 1
    %s83 = scalar_select %p80, %s81, %s82
    %p86 = pneg %p80
    %p87 = scmp.eq.s32.totalorder %s8, 3
    %p88 = por %p86, %p87
    %p89 = scmp.ne.s32.totalorder %s81, %s84
    %p90 = scmp.eq.s32.totalorder %s8, 0
    %p91 = por %p89, %p90
    %p92 = scmp.ne.s32.totalorder %s81, %s84
    %p93 = scmp.eq.s32.totalorder %s13, 3
    %p94 = por %p92, %p93
    %p95 = scmp.ne.s32.totalorder %s84, %s85
    %p96 = scmp.eq.s32.totalorder %s13, 0
    %p97 = por %p95, %p96
    %p98 = scmp.ne.s32.totalorder %s84, %s85
    %p99 = scmp.eq.s32.totalorder %s14, 3
    %p100 = por %p98, %p99
    %p102 = scmp.ne.s32.totalorder %s85, %s101
    %p103 = scmp.eq.s32.totalorder %s14, 0
    %p104 = por %p102, %p103
    %p105 = scmp.le.s32.totalorder 1, %s8
    %p106 = scmp.lt.s32.totalorder %s8, 5
    %p107 = pnand %p105, %p106
    %p108 = pneg %p107
    // Predicated region
    $region9: #{fem_forward.18} parent=5 // pred_check
      _
    $region10: #{fem_forward.18} parent=5 // pred_check_branch
      %110 = sbr.rel (%p107) target = $region12
    $region11: #{fem_forward.18} parent=5 // pred_region
      %s111 = ssub.s32 %s8, 1
      // Predicated region
      $region13: #{fem_forward.18} parent=11 // pred_check
        %p112 = pneg %p41
      $region14: #{fem_forward.18} parent=11 // pred_check_branch
        %114 = sbr.rel (%p112) target = $region16
      $region15: #{fem_forward.18} parent=11 // pred_region
        _
      $region16: #{fem_forward.18} parent=11 // pred_fallthru
        _
    $region12: #{fem_forward.18} parent=5 // pred_fallthru
      _
    %p115 = scmp.lt.s32.totalorder %s8, 4
    // Predicated region
    $region17: #{fem_forward.18} parent=5 // pred_check
      %p116 = pneg %p115
    $region18: #{fem_forward.18} parent=5 // pred_check_branch
      %118 = sbr.rel (%p116) target = $region20
    $region19: #{fem_forward.18} parent=5 // pred_region
      // Predicated region
      $region21: #{fem_forward.18} parent=19 // pred_check
        %p119 = pneg %p63
      $region22: #{fem_forward.18} parent=19 // pred_check_branch
        %121 = sbr.rel (%p119) target = $region24
      $region23: #{fem_forward.18} parent=19 // pred_region
        %p122 = scmp.lt.s32.totalorder %s15, 1
        %s123 = scalar_select %p122, %s15, 1
        %p124 = scmp.lt.s32.totalorder %s16, 1
        %s125 = scalar_select %p124, %s16, 1
        %s126 = smul.addr %s123, 2
        %s127 = sadd.s32 %s125, %s126
        %s128 = smul.addr %s127, 2
        %s129 = scalar_lea.vmem %s1, %s128
      $region24: #{fem_forward.18} parent=19 // pred_fallthru
        _
    $region20: #{fem_forward.18} parent=5 // pred_fallthru
      _
    %p130 = scmp.le.s32.totalorder 1, %s8
    %p131 = scmp.lt.s32.totalorder %s8, 5
    %p132 = pnand %p130, %p131
    %p133 = pneg %p132
    // Predicated region
    $region25: #{fem_forward.18} parent=5 // pred_check
      _
    $region26: #{fem_forward.18} parent=5 // pred_check_branch
      %135 = sbr.rel (%p132) target = $region28
    $region27: #{fem_forward.18} parent=5 // pred_region
      %s136 = ssub.s32 %s8, 1
      %p137 = pneg %p41
      %p138 = pneg %p38
      %p139 = scmp.lt.s32.totalorder %s17, 1
      %s140 = scalar_select %p139, %s17, 1
      %p141 = scmp.lt.s32.totalorder %s18, 1
      %s142 = scalar_select %p141, %s18, 1
      %s143 = smul.addr %s140, 2
      %s144 = sadd.s32 %s142, %s143
      %s145 = smul.addr %s144, 2
      %s146 = scalar_lea.vmem %s1, %s145
      %p147 = pneg %p69
      %p148 = pneg %p66
      %p149 = pneg %p97
      %p150 = pneg %p94
      %p151 = scmp.lt.s32.totalorder %s17, 1
      %s152 = scalar_select %p151, %s17, 1
      %p153 = scmp.lt.s32.totalorder %s18, 1
      %s154 = scalar_select %p153, %s18, 1
      %s155 = smul.addr %s152, 2
      %s156 = sadd.s32 %s154, %s155
      %s157 = smul.addr %s156, 4
      %s158 = scalar_lea.vmem %s2, %s157
      %p159 = scmp.lt.s32.totalorder %s17, 1
      %s160 = scalar_select %p159, %s17, 1
      %p161 = scmp.lt.s32.totalorder %s18, 1
      %s162 = scalar_select %p161, %s18, 1
      %s163 = smul.addr %s160, 2
      %s164 = sadd.s32 %s162, %s163
      %s165 = smul.addr %s164, 2
      %s166 = scalar_lea.vmem %s1, %s165
      %p167 = scmp.lt.s32.totalorder %s17, 1
      %s168 = scalar_select %p167, %s17, 1
      %p169 = scmp.lt.s32.totalorder %s18, 1
      %s170 = scalar_select %p169, %s18, 1
      %s171 = smul.addr %s168, 2
      %s172 = sadd.s32 %s170, %s171
      %s173 = smul.addr %s172, 4
      %s174 = scalar_lea.vmem %s2, %s173
      %v175 = vld [vmem:[%s0] sm:$0xf]
      %v176 = vld [vmem:[%s166] sm:$0x3]
      %v177 = vunpack.c.l.bf16 %v176
      %179 = vset.pattern.permute.xlu0 0
      %180 = vperm.xlu0 %179, %v175
      %v181 = vpop.permute.xlu0 %180
      %v183 = vlaneseq
      %v184 = vshrl.u32 %v183, 7
      %v185 = vsub.s32 0, %v184
      %v186 = vrot.slane %v177, %v185
      %v187 = vmul.f32 %v181, %v186
      %188 = vset.pattern.permute.xlu0 1
      %189 = vperm.xlu0 %188, %v175
      %v190 = vpop.permute.xlu0 %189
      %v192 = vlaneseq
      %v193 = vshrl.u32 %v192, 7
      %v194 = vsub.s32 1, %v193
      %v195 = vrot.slane %v177, %v194
      %v196 = vmul.f32 %v190, %v195
      %v197 = vadd.f32 %v187, %v196
      %198 = vset.pattern.permute.xlu0 2
      %199 = vperm.xlu0 %198, %v175
      %v200 = vpop.permute.xlu0 %199
      %v202 = vlaneseq
      %v203 = vshrl.u32 %v202, 7
      %v204 = vsub.s32 2, %v203
      %v205 = vrot.slane %v177, %v204
      %v206 = vmul.f32 %v200, %v205
      %v207 = vadd.f32 %v197, %v206
      %208 = vset.pattern.permute.xlu0 3
      %209 = vperm.xlu0 %208, %v175
      %v210 = vpop.permute.xlu0 %209
      %v212 = vlaneseq
      %v213 = vshrl.u32 %v212, 7
      %v214 = vsub.s32 3, %v213
      %v215 = vrot.slane %v177, %v214
      %v216 = vmul.f32 %v210, %v215
      %v217 = vadd.f32 %v207, %v216
      %vm218 = vcmask 1043456
      %v219 = vsel %vm218, %v217, 0.0
      %220 = vadd.xlane.f32.xlu0 %v219
      %v221 = vpop.xlane.xlu0 %220
      %vm222 = vcmask 3072
      %223 = vst.msk [vmem:[%s174] sm:$0xf] %vm222, %v221
      %v224 = vmul.f32 %v217, %v217
      %v225 = vsel %vm218, %v224, 0.0
      %226 = vadd.xlane.f32.xlu0 %v225
      %v227 = vpop.xlane.xlu0 %226
      %vm228 = vcmask 11272
      %229 = vst.msk [vmem:[%s174] sm:$0xf] %vm228, %v227
      %p230 = scmp.lt.s32.totalorder %s17, 1
      %s231 = scalar_select %p230, %s17, 1
      %p232 = scmp.lt.s32.totalorder %s18, 1
      %s233 = scalar_select %p232, %s18, 1
      %s234 = smul.addr %s231, 2
      %s235 = sadd.s32 %s233, %s234
      %s236 = smul.addr %s235, 4
      %s237 = scalar_lea.vmem %s2, %s236
      // Predicated region
      $region29: #{fem_forward.18} parent=27 // pred_check
        %p238 = pneg %p94
      $region30: #{fem_forward.18} parent=27 // pred_check_branch
        %240 = sbr.rel (%p238) target = $region32
      $region31: #{fem_forward.18} parent=27 // pred_region
        _
      $region32: #{fem_forward.18} parent=27 // pred_fallthru
        _
    $region28: #{fem_forward.18} parent=5 // pred_fallthru
      _
    %p241 = scmp.le.s32.totalorder 2, %s8
    // Predicated region
    $region33: #{fem_forward.18} parent=5 // pred_check
      %p242 = pneg %p241
    $region34: #{fem_forward.18} parent=5 // pred_check_branch
      %244 = sbr.rel (%p242) target = $region36
    $region35: #{fem_forward.18} parent=5 // pred_region
      %s245 = ssub.s32 %s8, 2
      // Predicated region
      $region37: #{fem_forward.18} parent=35 // pred_check
        %p246 = pneg %p100
      $region38: #{fem_forward.18} parent=35 // pred_check_branch
        %248 = sbr.rel (%p246) target = $region40
      $region39: #{fem_forward.18} parent=35 // pred_region
        %p249 = scmp.lt.s32.totalorder %s19, 1
        %s250 = scalar_select %p249, %s19, 1
        %p251 = scmp.lt.s32.totalorder %s20, 1
        %s252 = scalar_select %p251, %s20, 1
        %s253 = smul.addr %s250, 2
        %s254 = sadd.s32 %s252, %s253
        %s255 = smul.addr %s254, 4
        %s256 = scalar_lea.vmem %s2, %s255
      $region40: #{fem_forward.18} parent=35 // pred_fallthru
        _
    $region36: #{fem_forward.18} parent=5 // pred_fallthru
      _
  $region6: #{fem_forward.18} parent=0 // loop_footer
    %s12 = sadd.s32 1, %s8
  $region7: #{fem_forward.18} parent=0 // loop_footer_branch
    %7 = sbr.rel target = $region3
  $region8: #{fem_forward.18} parent=0 // loop_exit
    _

// kernel: fem_forward.16
$region0: #{fem_forward.16}
  #allocation0 [shape = 'u32[]', space=smem, size = 0x4, offset = 0x4, fixed_abs, tag = 'smem constant byte address 0x4 - core index']
  #allocation1 [shape = 'u32[144,128]{1,0:T(1,128)}', space=vmem, size = 0x12000, scoped, tag = 'internal scratch']
  %s0 = inlined_call_operand.vmem [shape: f32[4,9], index: 0, kind: input, shape index: {}]
  %s1 = inlined_call_operand.vmem [shape: bf16[2,4,18,18], index: 1, kind: input, shape index: {}]
  %s2 = inlined_call_operand.vmem [shape: f32[2,4,2,16], index: 2, kind: output, shape index: {}]
  %s3 = sld [smem:[#allocation0]]
  $region45: #{fem_forward.16} parent=0
    _
  %s5 = ssub.s32 1, %s3
  %s6 = scalar_select 0, %s5, %s3
  $region1: #{fem_forward.16} parent=0
    #allocation2 [shape = 'u8[2048]{0}', space=smem, size = 0x800, scoped, tag = 'input window, operand 0, single buffered']
    #allocation3 [shape = 's32[2]{0}', space=sflag, size = 0x8, scoped, tag = 'scoped memory for fem_forward.16']
    %7 = vsyncpa [#allocation3], 0
    loop: start=0, step=1, limit=4
    $region2: #{fem_forward.16} parent=1 // loop_pre_header
      _
    $region3: #{fem_forward.16} parent=1 // loop_header
      %s9 = sphi 0, %s13
      %p10 = scmp.ge.s32.totalorder %s9, 4
      %s16 = sphi 0, %s28
      %s17 = sphi 0, %s24
      %s18 = sphi 0, %s16
      %s19 = sphi 0, %s17
      %s20 = sphi 0, %s18
      %s21 = sphi 0, %s19
      %s29 = sphi 0, %s29
      %s31 = sphi 0, %s29
      %s32 = sphi 0, %s31
      %s46 = sphi 0, %s32
      %s54 = sphi 0, %s56
      %s57 = sphi 0, %s54
      %s58 = sphi 0, %s57
      %s74 = sphi 0, %s58
      %s82 = sphi 0, %s84
      %s85 = sphi 0, %s82
      %s86 = sphi 0, %s85
      %s102 = sphi 0, %s86
    $region4: #{fem_forward.16} parent=1 // loop_header_branch
      %12 = sbr.rel (%p10) target = $region8
    $region5: #{fem_forward.16} parent=1 // loop_body
      %s14 = ssub.s32 %s9, 1
      %s15 = ssub.s32 %s9, 2
      %s22 = sadd.s32 1, %s17
      %p23 = scmp.ge.s32.totalorder %s22, 1
      %s24 = scalar_select %p23, 0, %s22
      %s25 = sadd.s32 1, %s16
      %s26 = scalar_select %p23, %s25, %s16
      %p27 = scmp.ge.s32.totalorder %s26, 2
      %s28 = scalar_select %p27, 0, %s26
      %s30 = sadd.s32 %s29, 1
      %p33 = scmp.eq.s32.totalorder %s9, 1
      %p34 = scmp.ne.s32.totalorder %s29, %s31
      %p35 = scmp.eq.s32.totalorder %s9, 0
      %p36 = por %p34, %p35
      %p37 = scmp.ne.s32.totalorder %s29, %s31
      %p38 = scmp.eq.s32.totalorder %s14, 1
      %p39 = por %p37, %p38
      %p40 = scmp.ne.s32.totalorder %s31, %s32
      %p41 = scmp.eq.s32.totalorder %s14, 0
      %p42 = por %p40, %p41
      %p43 = scmp.ne.s32.totalorder %s31, %s32
      %p44 = scmp.eq.s32.totalorder %s15, 1
      %p45 = por %p43, %p44
      %p47 = scmp.ne.s32.totalorder %s32, %s46
      %p48 = scmp.eq.s32.totalorder %s15, 0
      %p49 = por %p47, %p48
      %s50 = ssub.s32 %s16, %s28
      %s51 = ssub.s32 %s17, %s24
      %s52 = sor.u32 %s50, %s51
      %p53 = scmp.eq.s32.totalorder %s52, 0
      %s55 = sadd.s32 %s54, 1
      %s56 = scalar_select %p53, %s54, %s55
      %p59 = pneg %p53
      %p60 = scmp.eq.s32.totalorder %s9, 1
      %p61 = por %p59, %p60
      %p62 = scmp.ne.s32.totalorder %s54, %s57
      %p63 = scmp.eq.s32.totalorder %s9, 0
      %p64 = por %p62, %p63
      %p65 = scmp.ne.s32.totalorder %s54, %s57
      %p66 = scmp.eq.s32.totalorder %s14, 1
      %p67 = por %p65, %p66
      %p68 = scmp.ne.s32.totalorder %s57, %s58
      %p69 = scmp.eq.s32.totalorder %s14, 0
      %p70 = por %p68, %p69
      %p71 = scmp.ne.s32.totalorder %s57, %s58
      %p72 = scmp.eq.s32.totalorder %s15, 1
      %p73 = por %p71, %p72
      %p75 = scmp.ne.s32.totalorder %s58, %s74
      %p76 = scmp.eq.s32.totalorder %s15, 0
      %p77 = por %p75, %p76
      %s78 = ssub.s32 %s16, %s28
      %s79 = ssub.s32 %s17, %s24
      %s80 = sor.u32 %s78, %s79
      %p81 = scmp.eq.s32.totalorder %s80, 0
      %s83 = sadd.s32 %s82, 1
      %s84 = scalar_select %p81, %s82, %s83
      %p87 = pneg %p81
      %p88 = scmp.eq.s32.totalorder %s9, 1
      %p89 = por %p87, %p88
      %p90 = scmp.ne.s32.totalorder %s82, %s85
      %p91 = scmp.eq.s32.totalorder %s9, 0
      %p92 = por %p90, %p91
      %p93 = scmp.ne.s32.totalorder %s82, %s85
      %p94 = scmp.eq.s32.totalorder %s14, 1
      %p95 = por %p93, %p94
      %p96 = scmp.ne.s32.totalorder %s85, %s86
      %p97 = scmp.eq.s32.totalorder %s14, 0
      %p98 = por %p96, %p97
      %p99 = scmp.ne.s32.totalorder %s85, %s86
      %p100 = scmp.eq.s32.totalorder %s15, 1
      %p101 = por %p99, %p100
      %p103 = scmp.ne.s32.totalorder %s86, %s102
      %p104 = scmp.eq.s32.totalorder %s15, 0
      %p105 = por %p103, %p104
      %p106 = scmp.le.s32.totalorder 1, %s9
      %p107 = scmp.lt.s32.totalorder %s9, 3
      %p108 = pnand %p106, %p107
      %p109 = pneg %p108
      // Predicated region
      $region9: #{fem_forward.16} parent=5 // pred_check
        _
      $region10: #{fem_forward.16} parent=5 // pred_check_branch
        %111 = sbr.rel (%p108) target = $region12
      $region11: #{fem_forward.16} parent=5 // pred_region
        %s112 = ssub.s32 %s9, 1
        // Predicated region
        $region13: #{fem_forward.16} parent=11 // pred_check
          %p113 = pneg %p42
        $region14: #{fem_forward.16} parent=11 // pred_check_branch
          %115 = sbr.rel (%p113) target = $region16
        $region15: #{fem_forward.16} parent=11 // pred_region
          %s117 = ssub.s32 64, 64
          %118 = vsyncadd [#allocation3], %s117
          %s120 = sshll.u32 %s0, 4
          %s121 = int_to_ptr.vmem [resolvable:$true] %s120
          %123 = dma.vmem_to_smem %s121, 64, [#allocation2], [#allocation3]
        $region16: #{fem_forward.16} parent=11 // pred_fallthru
          _
      $region12: #{fem_forward.16} parent=5 // pred_fallthru
        _
      %p124 = scmp.lt.s32.totalorder %s9, 2
      // Predicated region
      $region17: #{fem_forward.16} parent=5 // pred_check
        %p125 = pneg %p124
      $region18: #{fem_forward.16} parent=5 // pred_check_branch
        %127 = sbr.rel (%p125) target = $region20
      $region19: #{fem_forward.16} parent=5 // pred_region
        // Predicated region
        $region21: #{fem_forward.16} parent=19 // pred_check
          %p128 = pneg %p64
        $region22: #{fem_forward.16} parent=19 // pred_check_branch
          %130 = sbr.rel (%p128) target = $region24
        $region23: #{fem_forward.16} parent=19 // pred_region
          %s131 = smul.u32 4, %s17
          %p132 = scmp.lt.s32.totalorder %s16, 1
          %s133 = scalar_select %p132, %s16, 1
          %p134 = scmp.lt.s32.totalorder %s131, 3
          %s135 = scalar_select %p134, %s131, 3
          %s136 = smul.addr %s135, 3
          %s137 = smul.addr %s133, 12
          %s138 = sadd.s32 %s136, %s137
          %s139 = smul.addr %s138, 4
          %s140 = scalar_lea.vmem %s1, %s139
          %s141 = smul.u32 4, %s17
        $region24: #{fem_forward.16} parent=19 // pred_fallthru
          _
      $region20: #{fem_forward.16} parent=5 // pred_fallthru
        _
      %p142 = scmp.le.s32.totalorder 1, %s9
      %p143 = scmp.lt.s32.totalorder %s9, 3
      %p144 = pnand %p142, %p143
      %p145 = pneg %p144
      // Predicated region
      $region25: #{fem_forward.16} parent=5 // pred_check
        _
      $region26: #{fem_forward.16} parent=5 // pred_check_branch
        %147 = sbr.rel (%p144) target = $region28
      $region27: #{fem_forward.16} parent=5 // pred_region
        %s148 = ssub.s32 %s9, 1
        // Predicated region
        $region29: #{fem_forward.16} parent=27 // pred_check
          %p149 = pneg %p42
        $region30: #{fem_forward.16} parent=27 // pred_check_branch
          %151 = sbr.rel (%p149) target = $region32
        $region31: #{fem_forward.16} parent=27 // pred_region
          %152 = dma.done [#allocation3], 64
        $region32: #{fem_forward.16} parent=27 // pred_fallthru
          _
        %153 = sfence
        %p154 = pneg %p42
        %p155 = pneg %p39
        %s156 = smul.u32 4, %s19
        %p157 = scmp.lt.s32.totalorder %s18, 1
        %s158 = scalar_select %p157, %s18, 1
        %p159 = scmp.lt.s32.totalorder %s156, 3
        %s160 = scalar_select %p159, %s156, 3
        %s161 = smul.addr %s160, 3
        %s162 = smul.addr %s158, 12
        %s163 = sadd.s32 %s161, %s162
        %s164 = smul.addr %s163, 4
        %s165 = scalar_lea.vmem %s1, %s164
        %p166 = pneg %p70
        %p167 = pneg %p67
        %p168 = pneg %p98
        %p169 = pneg %p95
        %s170 = smul.u32 4, %s19
        %p171 = scmp.lt.s32.totalorder %s18, 1
        %s172 = scalar_select %p171, %s18, 1
        %p173 = scmp.lt.s32.totalorder %s170, 3
        %s174 = scalar_select %p173, %s170, 3
        %s175 = smul.addr %s172, 4
        %s176 = sadd.s32 %s174, %s175
        %s177 = smul.addr %s176, 2
        %s178 = scalar_lea.vmem %s2, %s177
        %s179 = smul.u32 4, %s19
        %p180 = scmp.lt.s32.totalorder %s18, 1
        %s181 = scalar_select %p180, %s18, 1
        %p182 = scmp.lt.s32.totalorder %s179, 3
        %s183 = scalar_select %p182, %s179, 3
        %s184 = smul.addr %s183, 3
        %s185 = smul.addr %s181, 12
        %s186 = sadd.s32 %s184, %s185
        %s187 = smul.addr %s186, 4
        %s188 = scalar_lea.vmem %s1, %s187
        %s189 = smul.u32 4, %s19
        %s190 = smul.u32 4, %s19
        %p191 = scmp.lt.s32.totalorder %s18, 1
        %s192 = scalar_select %p191, %s18, 1
        %p193 = scmp.lt.s32.totalorder %s190, 3
        %s194 = scalar_select %p193, %s190, 3
        %s195 = smul.addr %s192, 4
        %s196 = sadd.s32 %s194, %s195
        %s197 = smul.addr %s196, 2
        %s198 = scalar_lea.vmem %s2, %s197
        %s199 = smul.u32 4, %s19
        %s200 = smul.u32 %s19, 4
        %s201 = smul.u32 %s200, 128
        %s202 = sld [smem:[#allocation2 + %s201]]
        %v203 = vld [vmem:[%s188] sm:$0xf]
        %v204 = vld [vmem:[%s188 + $0x4] sm:$0xf]
        %v205 = vunpack.c.l.bf16 %v203
        %v206 = vunpack.c.l.bf16 %v204
        %v207 = vstv %s202
        %v208 = vmul.f32 %v207, %v205
        %v209 = vmul.f32 %v207, %v206
        %s210 = sadd.s32 %s201, 1
        %s211 = sld [smem:[#allocation2 + %s210]]
        %v212 = vstv %s211
        %v213 = vmul.f32 %v212, %v205
        %v214 = vmul.f32 %v212, %v206
        %217 = vrot.lane.b32.xlu0 %v213, 127
        %v218 = vpop.permute.xlu0 %217
        %219 = vrot.lane.b32.xlu0 %v214, 127
        %v220 = vpop.permute.xlu0 %219
        %v223 = vadd.f32 %v208, %v218
        %v224 = vadd.f32 %v209, %v220
        %s225 = sadd.s32 %s201, 2
        %s226 = sld [smem:[#allocation2 + %s225]]
        %v227 = vstv %s226
        %v228 = vmul.f32 %v227, %v205
        %v229 = vmul.f32 %v227, %v206
        %232 = vrot.lane.b32.xlu0 %v228, 126
        %v233 = vpop.permute.xlu0 %232
        %234 = vrot.lane.b32.xlu0 %v229, 126
        %v235 = vpop.permute.xlu0 %234
        %v238 = vadd.f32 %v223, %v233
        %v239 = vadd.f32 %v224, %v235
        %s240 = sadd.s32 %s201, 3
        %s241 = sld [smem:[#allocation2 + %s240]]
        %v242 = vld [vmem:[%s188] sm:$0xf]
        %v243 = vld [vmem:[%s188 + $0x4] sm:$0xf]
        %v244 = vld [vmem:[%s188 + $0x8] sm:$0x1]
        %v245 = vunpack.c.l.bf16 %v242
        %v246 = vunpack.c.l.bf16 %v243
        %v247 = vunpack.c.l.bf16 %v244
        %v248 = vstv %s241
        %v249 = vmul.f32 %v248, %v245
        %v250 = vmul.f32 %v248, %v246
        %v251 = vmul.f32 %v248, %v247
        %vm255 = vcmask 1046528
        %v256 = vrot.slane %v249, 1
        %v257 = vrot.slane %v250, 1
        %v258 = vsel %vm255, %v256, %v257
        %v259 = vrot.slane %v251, 1
        %v260 = vsel %vm255, %v257, %v259
        %v263 = vadd.f32 %v238, %v258
        %v264 = vadd.f32 %v239, %v260
        %s265 = sadd.s32 %s201, 4
        %s266 = sld [smem:[#allocation2 + %s265]]
        %v267 = vstv %s266
        %v268 = vmul.f32 %v267, %v245
        %v269 = vmul.f32 %v267, %v246
        %v270 = vmul.f32 %v267, %v247
        %v274 = vrot.slane %v268, 1
        %v275 = vrot.slane %v269, 1
        %v276 = vsel %vm255, %v274, %v275
        %v277 = vrot.slane %v270, 1
        %v278 = vsel %vm255, %v275, %v277
        %279 = vrot.lane.b32.xlu0 %v276, 127
        %v280 = vpop.permute.xlu0 %279
        %281 = vrot.lane.b32.xlu0 %v278, 127
        %v282 = vpop.permute.xlu0 %281
        %v285 = vadd.f32 %v263, %v280
        %v286 = vadd.f32 %v264, %v282
        %s287 = sadd.s32 %s201, 5
        %s288 = sld [smem:[#allocation2 + %s287]]
        %v289 = vstv %s288
        %v290 = vmul.f32 %v289, %v245
        %v291 = vmul.f32 %v289, %v246
        %v292 = vmul.f32 %v289, %v247
        %v296 = vrot.slane %v290, 1
        %v297 = vrot.slane %v291, 1
        %v298 = vsel %vm255, %v296, %v297
        %v299 = vrot.slane %v292, 1
        %v300 = vsel %vm255, %v297, %v299
        %301 = vrot.lane.b32.xlu0 %v298, 126
        %v302 = vpop.permute.xlu0 %301
        %303 = vrot.lane.b32.xlu0 %v300, 126
        %v304 = vpop.permute.xlu0 %303
        %v307 = vadd.f32 %v285, %v302
        %v308 = vadd.f32 %v286, %v304
        %s309 = sadd.s32 %s201, 6
        %s310 = sld [smem:[#allocation2 + %s309]]
        %v311 = vld [vmem:[%s188] sm:$0xe]
        %v312 = vunpack.c.l.bf16 %v311
        %v313 = vstv %s310
        %v314 = vmul.f32 %v313, %v312
        %v315 = vmul.f32 %v313, %v246
        %v316 = vmul.f32 %v313, %v247
        %vm320 = vcmask 1045504
        %v321 = vrot.slane %v314, 2
        %v322 = vrot.slane %v315, 2
        %v323 = vsel %vm320, %v321, %v322
        %v324 = vrot.slane %v316, 2
        %v325 = vsel %vm320, %v322, %v324
        %v328 = vadd.f32 %v307, %v323
        %v329 = vadd.f32 %v308, %v325
        %s330 = sadd.s32 %s201, 7
        %s331 = sld [smem:[#allocation2 + %s330]]
        %v332 = vstv %s331
        %v333 = vmul.f32 %v332, %v312
        %v334 = vmul.f32 %v332, %v246
        %v335 = vmul.f32 %v332, %v247
        %v339 = vrot.slane %v333, 2
        %v340 = vrot.slane %v334, 2
        %v341 = vsel %vm320, %v339, %v340
        %v342 = vrot.slane %v335, 2
        %v343 = vsel %vm320, %v340, %v342
        %344 = vrot.lane.b32.xlu0 %v341, 127
        %v345 = vpop.permute.xlu0 %344
        %346 = vrot.lane.b32.xlu0 %v343, 127
        %v347 = vpop.permute.xlu0 %346
        %v350 = vadd.f32 %v328, %v345
        %v351 = vadd.f32 %v329, %v347
        %s352 = sadd.s32 %s201, 8
        %s353 = sld [smem:[#allocation2 + %s352]]
        %v354 = vstv %s353
        %v355 = vmul.f32 %v354, %v312
        %v356 = vmul.f32 %v354, %v246
        %v357 = vmul.f32 %v354, %v247
        %v361 = vrot.slane %v355, 2
        %v362 = vrot.slane %v356, 2
        %v363 = vsel %vm320, %v361, %v362
        %v364 = vrot.slane %v357, 2
        %v365 = vsel %vm320, %v362, %v364
        %366 = vrot.lane.b32.xlu0 %v363, 126
        %v367 = vpop.permute.xlu0 %366
        %368 = vrot.lane.b32.xlu0 %v365, 126
        %v369 = vpop.permute.xlu0 %368
        %v372 = vadd.f32 %v350, %v367
        %v373 = vadd.f32 %v351, %v369
        %vm374 = vcmask 130048
        %v375 = vsel %vm374, %v372, 0.0
        %v376 = vsel %vm374, %v373, 0.0
        %v377 = vadd.f32 %v375, %v376
        %v378 = vrot.slane %v377, 4
        %v379 = vadd.f32 %v377, %v378
        %v380 = vrot.slane %v379, 2
        %v381 = vadd.f32 %v379, %v380
        %v382 = vrot.slane %v381, 1
        %v383 = vadd.f32 %v381, %v382
        %vm384 = vcmask 122880
        %385 = vst.msk [vmem:[%s198] sm:$0x1] %vm384, %v383
        %v386 = vmul.f32 %v372, %v372
        %v387 = vmul.f32 %v373, %v373
        %v388 = vsel %vm374, %v386, 0.0
        %v389 = vsel %vm374, %v387, 0.0
        %v390 = vadd.f32 %v388, %v389
        %v391 = vrot.slane %v390, 4
        %v392 = vadd.f32 %v390, %v391
        %v393 = vrot.slane %v392, 2
        %v394 = vadd.f32 %v392, %v393
        %v395 = vrot.slane %v394, 1
        %v396 = vadd.f32 %v394, %v395
        %397 = vst.msk [vmem:[%s198 + $0x1] sm:$0x1] %vm384, %v396
        %s398 = sadd.s32 %s200, 1
        %s399 = smul.u32 %s398, 128
        %s400 = sld [smem:[#allocation2 + %s399]]
        %s401 = scalar_lea.vmem %s188, 12
        %v402 = vld [vmem:[%s401] sm:$0xf]
        %v403 = vld [vmem:[%s401 + $0x4] sm:$0xf]
        %v404 = vunpack.c.l.bf16 %v402
        %v405 = vunpack.c.l.bf16 %v403
        %v406 = vstv %s400
        %v407 = vmul.f32 %v406, %v404
        %v408 = vmul.f32 %v406, %v405
        %s409 = sadd.s32 %s399, 1
        %s410 = sld [smem:[#allocation2 + %s409]]
        %v411 = vstv %s410
        %v412 = vmul.f32 %v411, %v404
        %v413 = vmul.f32 %v411, %v405
        %416 = vrot.lane.b32.xlu0 %v412, 127
        %v417 = vpop.permute.xlu0 %416
        %418 = vrot.lane.b32.xlu0 %v413, 127
        %v419 = vpop.permute.xlu0 %418
        %v422 = vadd.f32 %v407, %v417
        %v423 = vadd.f32 %v408, %v419
        %s424 = sadd.s32 %s399, 2
        %s425 = sld [smem:[#allocation2 + %s424]]
        %v426 = vstv %s425
        %v427 = vmul.f32 %v426, %v404
        %v428 = vmul.f32 %v426, %v405
        %431 = vrot.lane.b32.xlu0 %v427, 126
        %v432 = vpop.permute.xlu0 %431
        %433 = vrot.lane.b32.xlu0 %v428, 126
        %v434 = vpop.permute.xlu0 %433
        %v437 = vadd.f32 %v422, %v432
        %v438 = vadd.f32 %v423, %v434
        %s439 = sadd.s32 %s399, 3
        %s440 = sld [smem:[#allocation2 + %s439]]
        %v441 = vld [vmem:[%s401] sm:$0xf]
        %v442 = vld [vmem:[%s401 + $0x4] sm:$0xf]
        %v443 = vld [vmem:[%s401 + $0x8] sm:$0x1]
        %v444 = vunpack.c.l.bf16 %v441
        %v445 = vunpack.c.l.bf16 %v442
        %v446 = vunpack.c.l.bf16 %v443
        %v447 = vstv %s440
        %v448 = vmul.f32 %v447, %v444
        %v449 = vmul.f32 %v447, %v445
        %v450 = vmul.f32 %v447, %v446
        %v454 = vrot.slane %v448, 1
        %v455 = vrot.slane %v449, 1
        %v456 = vsel %vm255, %v454, %v455
        %v457 = vrot.slane %v450, 1
        %v458 = vsel %vm255, %v455, %v457
        %v461 = vadd.f32 %v437, %v456
        %v462 = vadd.f32 %v438, %v458
        %s463 = sadd.s32 %s399, 4
        %s464 = sld [smem:[#allocation2 + %s463]]
        %v465 = vstv %s464
        %v466 = vmul.f32 %v465, %v444
        %v467 = vmul.f32 %v465, %v445
        %v468 = vmul.f32 %v465, %v446
        %v472 = vrot.slane %v466, 1
        %v473 = vrot.slane %v467, 1
        %v474 = vsel %vm255, %v472, %v473
        %v475 = vrot.slane %v468, 1
        %v476 = vsel %vm255, %v473, %v475
        %477 = vrot.lane.b32.xlu0 %v474, 127
        %v478 = vpop.permute.xlu0 %477
        %479 = vrot.lane.b32.xlu0 %v476, 127
        %v480 = vpop.permute.xlu0 %479
        %v483 = vadd.f32 %v461, %v478
        %v484 = vadd.f32 %v462, %v480
        %s485 = sadd.s32 %s399, 5
        %s486 = sld [smem:[#allocation2 + %s485]]
        %v487 = vstv %s486
        %v488 = vmul.f32 %v487, %v444
        %v489 = vmul.f32 %v487, %v445
        %v490 = vmul.f32 %v487, %v446
        %v494 = vrot.slane %v488, 1
        %v495 = vrot.slane %v489, 1
        %v496 = vsel %vm255, %v494, %v495
        %v497 = vrot.slane %v490, 1
        %v498 = vsel %vm255, %v495, %v497
        %499 = vrot.lane.b32.xlu0 %v496, 126
        %v500 = vpop.permute.xlu0 %499
        %501 = vrot.lane.b32.xlu0 %v498, 126
        %v502 = vpop.permute.xlu0 %501
        %v505 = vadd.f32 %v483, %v500
        %v506 = vadd.f32 %v484, %v502
        %s507 = sadd.s32 %s399, 6
        %s508 = sld [smem:[#allocation2 + %s507]]
        %v509 = vld [vmem:[%s401] sm:$0xe]
        %v510 = vunpack.c.l.bf16 %v509
        %v511 = vstv %s508
        %v512 = vmul.f32 %v511, %v510
        %v513 = vmul.f32 %v511, %v445
        %v514 = vmul.f32 %v511, %v446
        %v518 = vrot.slane %v512, 2
        %v519 = vrot.slane %v513, 2
        %v520 = vsel %vm320, %v518, %v519
        %v521 = vrot.slane %v514, 2
        %v522 = vsel %vm320, %v519, %v521
        %v525 = vadd.f32 %v505, %v520
        %v526 = vadd.f32 %v506, %v522
        %s527 = sadd.s32 %s399, 7
        %s528 = sld [smem:[#allocation2 + %s527]]
        %v529 = vstv %s528
        %v530 = vmul.f32 %v529, %v510
        %v531 = vmul.f32 %v529, %v445
        %v532 = vmul.f32 %v529, %v446
        %v536 = vrot.slane %v530, 2
        %v537 = vrot.slane %v531, 2
        %v538 = vsel %vm320, %v536, %v537
        %v539 = vrot.slane %v532, 2
        %v540 = vsel %vm320, %v537, %v539
        %541 = vrot.lane.b32.xlu0 %v538, 127
        %v542 = vpop.permute.xlu0 %541
        %543 = vrot.lane.b32.xlu0 %v540, 127
        %v544 = vpop.permute.xlu0 %543
        %v547 = vadd.f32 %v525, %v542
        %v548 = vadd.f32 %v526, %v544
        %s549 = sadd.s32 %s399, 8
        %s550 = sld [smem:[#allocation2 + %s549]]
        %v551 = vstv %s550
        %v552 = vmul.f32 %v551, %v510
        %v553 = vmul.f32 %v551, %v445
        %v554 = vmul.f32 %v551, %v446
        %v558 = vrot.slane %v552, 2
        %v559 = vrot.slane %v553, 2
        %v560 = vsel %vm320, %v558, %v559
        %v561 = vrot.slane %v554, 2
        %v562 = vsel %vm320, %v559, %v561
        %563 = vrot.lane.b32.xlu0 %v560, 126
        %v564 = vpop.permute.xlu0 %563
        %565 = vrot.lane.b32.xlu0 %v562, 126
        %v566 = vpop.permute.xlu0 %565
        %v569 = vadd.f32 %v547, %v564
        %v570 = vadd.f32 %v548, %v566
        %v571 = vsel %vm374, %v569, 0.0
        %v572 = vsel %vm374, %v570, 0.0
        %v573 = vadd.f32 %v571, %v572
        %v574 = vrot.slane %v573, 4
        %v575 = vadd.f32 %v573, %v574
        %v576 = vrot.slane %v575, 2
        %v577 = vadd.f32 %v575, %v576
        %v578 = vrot.slane %v577, 1
        %v579 = vadd.f32 %v577, %v578
        %s580 = scalar_lea.vmem %s198, 2
        %581 = vst.msk [vmem:[%s580] sm:$0x1] %vm384, %v579
        %v582 = vmul.f32 %v569, %v569
        %v583 = vmul.f32 %v570, %v570
        %v584 = vsel %vm374, %v582, 0.0
        %v585 = vsel %vm374, %v583, 0.0
        %v586 = vadd.f32 %v584, %v585
        %v587 = vrot.slane %v586, 4
        %v588 = vadd.f32 %v586, %v587
        %v589 = vrot.slane %v588, 2
        %v590 = vadd.f32 %v588, %v589
        %v591 = vrot.slane %v590, 1
        %v592 = vadd.f32 %v590, %v591
        %593 = vst.msk [vmem:[%s580 + $0x1] sm:$0x1] %vm384, %v592
        %s594 = sadd.s32 %s200, 2
        %s595 = smul.u32 %s594, 128
        %s596 = sld [smem:[#allocation2 + %s595]]
        %s597 = scalar_lea.vmem %s188, 24
        %v598 = vld [vmem:[%s597] sm:$0xf]
        %v599 = vld [vmem:[%s597 + $0x4] sm:$0xf]
        %v600 = vunpack.c.l.bf16 %v598
        %v601 = vunpack.c.l.bf16 %v599
        %v602 = vstv %s596
        %v603 = vmul.f32 %v602, %v600
        %v604 = vmul.f32 %v602, %v601
        %s605 = sadd.s32 %s595, 1
        %s606 = sld [smem:[#allocation2 + %s605]]
        %v607 = vstv %s606
        %v608 = vmul.f32 %v607, %v600
        %v609 = vmul.f32 %v607, %v601
        %612 = vrot.lane.b32.xlu0 %v608, 127
        %v613 = vpop.permute.xlu0 %612
        %614 = vrot.lane.b32.xlu0 %v609, 127
        %v615 = vpop.permute.xlu0 %614
        %v618 = vadd.f32 %v603, %v613
        %v619 = vadd.f32 %v604, %v615
        %s620 = sadd.s32 %s595, 2
        %s621 = sld [smem:[#allocation2 + %s620]]
        %v622 = vstv %s621
        %v623 = vmul.f32 %v622, %v600
        %v624 = vmul.f32 %v622, %v601
        %627 = vrot.lane.b32.xlu0 %v623, 126
        %v628 = vpop.permute.xlu0 %627
        %629 = vrot.lane.b32.xlu0 %v624, 126
        %v630 = vpop.permute.xlu0 %629
        %v633 = vadd.f32 %v618, %v628
        %v634 = vadd.f32 %v619, %v630
        %s635 = sadd.s32 %s595, 3
        %s636 = sld [smem:[#allocation2 + %s635]]
        %v637 = vld [vmem:[%s597] sm:$0xf]
        %v638 = vld [vmem:[%s597 + $0x4] sm:$0xf]
        %v639 = vld [vmem:[%s597 + $0x8] sm:$0x1]
        %v640 = vunpack.c.l.bf16 %v637
        %v641 = vunpack.c.l.bf16 %v638
        %v642 = vunpack.c.l.bf16 %v639
        %v643 = vstv %s636
        %v644 = vmul.f32 %v643, %v640
        %v645 = vmul.f32 %v643, %v641
        %v646 = vmul.f32 %v643, %v642
        %v650 = vrot.slane %v644, 1
        %v651 = vrot.slane %v645, 1
        %v652 = vsel %vm255, %v650, %v651
        %v653 = vrot.slane %v646, 1
        %v654 = vsel %vm255, %v651, %v653
        %v657 = vadd.f32 %v633, %v652
        %v658 = vadd.f32 %v634, %v654
        %s659 = sadd.s32 %s595, 4
        %s660 = sld [smem:[#allocation2 + %s659]]
        %v661 = vstv %s660
        %v662 = vmul.f32 %v661, %v640
        %v663 = vmul.f32 %v661, %v641
        %v664 = vmul.f32 %v661, %v642
        %v668 = vrot.slane %v662, 1
        %v669 = vrot.slane %v663, 1
        %v670 = vsel %vm255, %v668, %v669
        %v671 = vrot.slane %v664, 1
        %v672 = vsel %vm255, %v669, %v671
        %673 = vrot.lane.b32.xlu0 %v670, 127
        %v674 = vpop.permute.xlu0 %673
        %675 = vrot.lane.b32.xlu0 %v672, 127
        %v676 = vpop.permute.xlu0 %675
        %v679 = vadd.f32 %v657, %v674
        %v680 = vadd.f32 %v658, %v676
        %s681 = sadd.s32 %s595, 5
        %s682 = sld [smem:[#allocation2 + %s681]]
        %v683 = vstv %s682
        %v684 = vmul.f32 %v683, %v640
        %v685 = vmul.f32 %v683, %v641
        %v686 = vmul.f32 %v683, %v642
        %v690 = vrot.slane %v684, 1
        %v691 = vrot.slane %v685, 1
        %v692 = vsel %vm255, %v690, %v691
        %v693 = vrot.slane %v686, 1
        %v694 = vsel %vm255, %v691, %v693
        %695 = vrot.lane.b32.xlu0 %v692, 126
        %v696 = vpop.permute.xlu0 %695
        %697 = vrot.lane.b32.xlu0 %v694, 126
        %v698 = vpop.permute.xlu0 %697
        %v701 = vadd.f32 %v679, %v696
        %v702 = vadd.f32 %v680, %v698
        %s703 = sadd.s32 %s595, 6
        %s704 = sld [smem:[#allocation2 + %s703]]
        %v705 = vld [vmem:[%s597] sm:$0xe]
        %v706 = vunpack.c.l.bf16 %v705
        %v707 = vstv %s704
        %v708 = vmul.f32 %v707, %v706
        %v709 = vmul.f32 %v707, %v641
        %v710 = vmul.f32 %v707, %v642
        %v714 = vrot.slane %v708, 2
        %v715 = vrot.slane %v709, 2
        %v716 = vsel %vm320, %v714, %v715
        %v717 = vrot.slane %v710, 2
        %v718 = vsel %vm320, %v715, %v717
        %v721 = vadd.f32 %v701, %v716
        %v722 = vadd.f32 %v702, %v718
        %s723 = sadd.s32 %s595, 7
        %s724 = sld [smem:[#allocation2 + %s723]]
        %v725 = vstv %s724
        %v726 = vmul.f32 %v725, %v706
        %v727 = vmul.f32 %v725, %v641
        %v728 = vmul.f32 %v725, %v642
        %v732 = vrot.slane %v726, 2
        %v733 = vrot.slane %v727, 2
        %v734 = vsel %vm320, %v732, %v733
        %v735 = vrot.slane %v728, 2
        %v736 = vsel %vm320, %v733, %v735
        %737 = vrot.lane.b32.xlu0 %v734, 127
        %v738 = vpop.permute.xlu0 %737
        %739 = vrot.lane.b32.xlu0 %v736, 127
        %v740 = vpop.permute.xlu0 %739
        %v743 = vadd.f32 %v721, %v738
        %v744 = vadd.f32 %v722, %v740
        %s745 = sadd.s32 %s595, 8
        %s746 = sld [smem:[#allocation2 + %s745]]
        %v747 = vstv %s746
        %v748 = vmul.f32 %v747, %v706
        %v749 = vmul.f32 %v747, %v641
        %v750 = vmul.f32 %v747, %v642
        %v754 = vrot.slane %v748, 2
        %v755 = vrot.slane %v749, 2
        %v756 = vsel %vm320, %v754, %v755
        %v757 = vrot.slane %v750, 2
        %v758 = vsel %vm320, %v755, %v757
        %759 = vrot.lane.b32.xlu0 %v756, 126
        %v760 = vpop.permute.xlu0 %759
        %761 = vrot.lane.b32.xlu0 %v758, 126
        %v762 = vpop.permute.xlu0 %761
        %v765 = vadd.f32 %v743, %v760
        %v766 = vadd.f32 %v744, %v762
        %v767 = vsel %vm374, %v765, 0.0
        %v768 = vsel %vm374, %v766, 0.0
        %v769 = vadd.f32 %v767, %v768
        %v770 = vrot.slane %v769, 4
        %v771 = vadd.f32 %v769, %v770
        %v772 = vrot.slane %v771, 2
        %v773 = vadd.f32 %v771, %v772
        %v774 = vrot.slane %v773, 1
        %v775 = vadd.f32 %v773, %v774
        %s776 = scalar_lea.vmem %s198, 4
        %777 = vst.msk [vmem:[%s776] sm:$0x1] %vm384, %v775
        %v778 = vmul.f32 %v765, %v765
        %v779 = vmul.f32 %v766, %v766
        %v780 = vsel %vm374, %v778, 0.0
        %v781 = vsel %vm374, %v779, 0.0
        %v782 = vadd.f32 %v780, %v781
        %v783 = vrot.slane %v782, 4
        %v784 = vadd.f32 %v782, %v783
        %v785 = vrot.slane %v784, 2
        %v786 = vadd.f32 %v784, %v785
        %v787 = vrot.slane %v786, 1
        %v788 = vadd.f32 %v786, %v787
        %789 = vst.msk [vmem:[%s776 + $0x1] sm:$0x1] %vm384, %v788
        %s790 = sadd.s32 %s200, 3
        %s791 = smul.u32 %s790, 128
        %s792 = sld [smem:[#allocation2 + %s791]]
        %s793 = scalar_lea.vmem %s188, 36
        %v794 = vld [vmem:[%s793] sm:$0xf]
        %v795 = vld [vmem:[%s793 + $0x4] sm:$0xf]
        %v796 = vunpack.c.l.bf16 %v794
        %v797 = vunpack.c.l.bf16 %v795
        %v798 = vstv %s792
        %v799 = vmul.f32 %v798, %v796
        %v800 = vmul.f32 %v798, %v797
        %s801 = sadd.s32 %s791, 1
        %s802 = sld [smem:[#allocation2 + %s801]]
        %v803 = vstv %s802
        %v804 = vmul.f32 %v803, %v796
        %v805 = vmul.f32 %v803, %v797
        %808 = vrot.lane.b32.xlu0 %v804, 127
        %v809 = vpop.permute.xlu0 %808
        %810 = vrot.lane.b32.xlu0 %v805, 127
        %v811 = vpop.permute.xlu0 %810
        %v814 = vadd.f32 %v799, %v809
        %v815 = vadd.f32 %v800, %v811
        %s816 = sadd.s32 %s791, 2
        %s817 = sld [smem:[#allocation2 + %s816]]
        %v818 = vstv %s817
        %v819 = vmul.f32 %v818, %v796
        %v820 = vmul.f32 %v818, %v797
        %823 = vrot.lane.b32.xlu0 %v819, 126
        %v824 = vpop.permute.xlu0 %823
        %825 = vrot.lane.b32.xlu0 %v820, 126
        %v826 = vpop.permute.xlu0 %825
        %v829 = vadd.f32 %v814, %v824
        %v830 = vadd.f32 %v815, %v826
        %s831 = sadd.s32 %s791, 3
        %s832 = sld [smem:[#allocation2 + %s831]]
        %v833 = vld [vmem:[%s793] sm:$0xf]
        %v834 = vld [vmem:[%s793 + $0x4] sm:$0xf]
        %v835 = vld [vmem:[%s793 + $0x8] sm:$0x1]
        %v836 = vunpack.c.l.bf16 %v833
        %v837 = vunpack.c.l.bf16 %v834
        %v838 = vunpack.c.l.bf16 %v835
        %v839 = vstv %s832
        %v840 = vmul.f32 %v839, %v836
        %v841 = vmul.f32 %v839, %v837
        %v842 = vmul.f32 %v839, %v838
        %v846 = vrot.slane %v840, 1
        %v847 = vrot.slane %v841, 1
        %v848 = vsel %vm255, %v846, %v847
        %v849 = vrot.slane %v842, 1
        %v850 = vsel %vm255, %v847, %v849
        %v853 = vadd.f32 %v829, %v848
        %v854 = vadd.f32 %v830, %v850
        %s855 = sadd.s32 %s791, 4
        %s856 = sld [smem:[#allocation2 + %s855]]
        %v857 = vstv %s856
        %v858 = vmul.f32 %v857, %v836
        %v859 = vmul.f32 %v857, %v837
        %v860 = vmul.f32 %v857, %v838
        %v864 = vrot.slane %v858, 1
        %v865 = vrot.slane %v859, 1
        %v866 = vsel %vm255, %v864, %v865
        %v867 = vrot.slane %v860, 1
        %v868 = vsel %vm255, %v865, %v867
        %869 = vrot.lane.b32.xlu0 %v866, 127
        %v870 = vpop.permute.xlu0 %869
        %871 = vrot.lane.b32.xlu0 %v868, 127
        %v872 = vpop.permute.xlu0 %871
        %v875 = vadd.f32 %v853, %v870
        %v876 = vadd.f32 %v854, %v872
        %s877 = sadd.s32 %s791, 5
        %s878 = sld [smem:[#allocation2 + %s877]]
        %v879 = vstv %s878
        %v880 = vmul.f32 %v879, %v836
        %v881 = vmul.f32 %v879, %v837
        %v882 = vmul.f32 %v879, %v838
        %v886 = vrot.slane %v880, 1
        %v887 = vrot.slane %v881, 1
        %v888 = vsel %vm255, %v886, %v887
        %v889 = vrot.slane %v882, 1
        %v890 = vsel %vm255, %v887, %v889
        %891 = vrot.lane.b32.xlu0 %v888, 126
        %v892 = vpop.permute.xlu0 %891
        %893 = vrot.lane.b32.xlu0 %v890, 126
        %v894 = vpop.permute.xlu0 %893
        %v897 = vadd.f32 %v875, %v892
        %v898 = vadd.f32 %v876, %v894
        %s899 = sadd.s32 %s791, 6
        %s900 = sld [smem:[#allocation2 + %s899]]
        %v901 = vld [vmem:[%s793] sm:$0xe]
        %v902 = vunpack.c.l.bf16 %v901
        %v903 = vstv %s900
        %v904 = vmul.f32 %v903, %v902
        %v905 = vmul.f32 %v903, %v837
        %v906 = vmul.f32 %v903, %v838
        %v910 = vrot.slane %v904, 2
        %v911 = vrot.slane %v905, 2
        %v912 = vsel %vm320, %v910, %v911
        %v913 = vrot.slane %v906, 2
        %v914 = vsel %vm320, %v911, %v913
        %v917 = vadd.f32 %v897, %v912
        %v918 = vadd.f32 %v898, %v914
        %s919 = sadd.s32 %s791, 7
        %s920 = sld [smem:[#allocation2 + %s919]]
        %v921 = vstv %s920
        %v922 = vmul.f32 %v921, %v902
        %v923 = vmul.f32 %v921, %v837
        %v924 = vmul.f32 %v921, %v838
        %v928 = vrot.slane %v922, 2
        %v929 = vrot.slane %v923, 2
        %v930 = vsel %vm320, %v928, %v929
        %v931 = vrot.slane %v924, 2
        %v932 = vsel %vm320, %v929, %v931
        %933 = vrot.lane.b32.xlu0 %v930, 127
        %v934 = vpop.permute.xlu0 %933
        %935 = vrot.lane.b32.xlu0 %v932, 127
        %v936 = vpop.permute.xlu0 %935
        %v939 = vadd.f32 %v917, %v934
        %v940 = vadd.f32 %v918, %v936
        %s941 = sadd.s32 %s791, 8
        %s942 = sld [smem:[#allocation2 + %s941]]
        %v943 = vstv %s942
        %v944 = vmul.f32 %v943, %v902
        %v945 = vmul.f32 %v943, %v837
        %v946 = vmul.f32 %v943, %v838
        %v950 = vrot.slane %v944, 2
        %v951 = vrot.slane %v945, 2
        %v952 = vsel %vm320, %v950, %v951
        %v953 = vrot.slane %v946, 2
        %v954 = vsel %vm320, %v951, %v953
        %955 = vrot.lane.b32.xlu0 %v952, 126
        %v956 = vpop.permute.xlu0 %955
        %957 = vrot.lane.b32.xlu0 %v954, 126
        %v958 = vpop.permute.xlu0 %957
        %v961 = vadd.f32 %v939, %v956
        %v962 = vadd.f32 %v940, %v958
        %v963 = vsel %vm374, %v961, 0.0
        %v964 = vsel %vm374, %v962, 0.0
        %v965 = vadd.f32 %v963, %v964
        %v966 = vrot.slane %v965, 4
        %v967 = vadd.f32 %v965, %v966
        %v968 = vrot.slane %v967, 2
        %v969 = vadd.f32 %v967, %v968
        %v970 = vrot.slane %v969, 1
        %v971 = vadd.f32 %v969, %v970
        %s972 = scalar_lea.vmem %s198, 6
        %973 = vst.msk [vmem:[%s972] sm:$0x1] %vm384, %v971
        %v974 = vmul.f32 %v961, %v961
        %v975 = vmul.f32 %v962, %v962
        %v976 = vsel %vm374, %v974, 0.0
        %v977 = vsel %vm374, %v975, 0.0
        %v978 = vadd.f32 %v976, %v977
        %v979 = vrot.slane %v978, 4
        %v980 = vadd.f32 %v978, %v979
        %v981 = vrot.slane %v980, 2
        %v982 = vadd.f32 %v980, %v981
        %v983 = vrot.slane %v982, 1
        %v984 = vadd.f32 %v982, %v983
        %985 = vst.msk [vmem:[%s972 + $0x1] sm:$0x1] %vm384, %v984
        %s986 = smul.u32 4, %s19
        %p987 = scmp.lt.s32.totalorder %s18, 1
        %s988 = scalar_select %p987, %s18, 1
        %p989 = scmp.lt.s32.totalorder %s986, 3
        %s990 = scalar_select %p989, %s986, 3
        %s991 = smul.addr %s988, 4
        %s992 = sadd.s32 %s990, %s991
        %s993 = smul.addr %s992, 2
        %s994 = scalar_lea.vmem %s2, %s993
        // Predicated region
        $region33: #{fem_forward.16} parent=27 // pred_check
          %p995 = pneg %p95
        $region34: #{fem_forward.16} parent=27 // pred_check_branch
          %997 = sbr.rel (%p995) target = $region36
        $region35: #{fem_forward.16} parent=27 // pred_region
          %s998 = smul.u32 4, %s19
        $region36: #{fem_forward.16} parent=27 // pred_fallthru
          _
      $region28: #{fem_forward.16} parent=5 // pred_fallthru
        _
      %p999 = scmp.le.s32.totalorder 2, %s9
      // Predicated region
      $region37: #{fem_forward.16} parent=5 // pred_check
        %p1000 = pneg %p999
      $region38: #{fem_forward.16} parent=5 // pred_check_branch
        %1002 = sbr.rel (%p1000) target = $region40
      $region39: #{fem_forward.16} parent=5 // pred_region
        %s1003 = ssub.s32 %s9, 2
        // Predicated region
        $region41: #{fem_forward.16} parent=39 // pred_check
          %p1004 = pneg %p101
        $region42: #{fem_forward.16} parent=39 // pred_check_branch
          %1006 = sbr.rel (%p1004) target = $region44
        $region43: #{fem_forward.16} parent=39 // pred_region
          %s1007 = smul.u32 4, %s21
          %p1008 = scmp.lt.s32.totalorder %s20, 1
          %s1009 = scalar_select %p1008, %s20, 1
          %p1010 = scmp.lt.s32.totalorder %s1007, 3
          %s1011 = scalar_select %p1010, %s1007, 3
          %s1012 = smul.addr %s1009, 4
          %s1013 = sadd.s32 %s1011, %s1012
          %s1014 = smul.addr %s1013, 2
          %s1015 = scalar_lea.vmem %s2, %s1014
        $region44: #{fem_forward.16} parent=39 // pred_fallthru
          _
      $region40: #{fem_forward.16} parent=5 // pred_fallthru
        _
    $region6: #{fem_forward.16} parent=1 // loop_footer
      %s13 = sadd.s32 1, %s9
    $region7: #{fem_forward.16} parent=1 // loop_footer_branch
      %8 = sbr.rel target = $region3
    $region8: #{fem_forward.16} parent=1 // loop_exit
      _
    %1016 = vsyncpa [#allocation3], 1
    %s1017 = scalar_lea.sflag [#allocation3], 1
    %1018 = vsyncpa %s1017, 1

// kernel: fem_forward.17
$region0: #{fem_forward.17}
  #allocation0 [shape = 'u32[]', space=smem, size = 0x4, offset = 0x4, fixed_abs, tag = 'smem constant byte address 0x4 - core index']
  #allocation1 [shape = 'u32[144,128]{1,0:T(1,128)}', space=vmem, size = 0x12000, scoped, tag = 'internal scratch']
  %s0 = inlined_call_operand.vmem [shape: f32[4,9], index: 0, kind: input, shape index: {}]
  %s1 = inlined_call_operand.vmem [shape: f32[4,2], index: 1, kind: input, shape index: {}]
  %s2 = inlined_call_operand.vmem [shape: bf16[2,4,18,18], index: 2, kind: input, shape index: {}]
  %s3 = inlined_call_operand.vmem [shape: bf16[2,4,16,16], index: 3, kind: output, shape index: {}]
  %s4 = sld [smem:[#allocation0]]
  $region53: #{fem_forward.17} parent=0
    _
  %s6 = ssub.s32 1, %s4
  %s7 = scalar_select 0, %s6, %s4
  $region1: #{fem_forward.17} parent=0
    #allocation2 [shape = 'u8[2048]{0}', space=smem, size = 0x800, scoped, tag = 'input window, operand 0, single buffered']
    #allocation3 [shape = 's32[2]{0}', space=sflag, size = 0x8, scoped, tag = 'scoped memory for fem_forward.17']
    #allocation4 [shape = 'u8[2048]{0}', space=smem, size = 0x800, scoped, tag = 'input window, operand 1, single buffered']
    #allocation5 [shape = 's32[1]{0}', space=sflag, size = 0x4, scoped, tag = 'scoped memory for fem_forward.17']
    %8 = vsyncpa [#allocation3], 0
    %9 = vsyncpa [#allocation5], 0
    loop: start=0, step=1, limit=4
    $region2: #{fem_forward.17} parent=1 // loop_pre_header
      _
    $region3: #{fem_forward.17} parent=1 // loop_header
      %s11 = sphi 0, %s15
      %p12 = scmp.ge.s32.totalorder %s11, 4
      %s18 = sphi 0, %s30
      %s19 = sphi 0, %s26
      %s20 = sphi 0, %s18
      %s21 = sphi 0, %s19
      %s22 = sphi 0, %s20
      %s23 = sphi 0, %s21
      %s31 = sphi 0, %s31
      %s33 = sphi 0, %s31
      %s34 = sphi 0, %s33
      %s48 = sphi 0, %s34
      %s52 = sphi 0, %s52
      %s54 = sphi 0, %s52
      %s55 = sphi 0, %s54
      %s69 = sphi 0, %s55
      %s77 = sphi 0, %s79
      %s80 = sphi 0, %s77
      %s81 = sphi 0, %s80
      %s97 = sphi 0, %s81
      %s105 = sphi 0, %s107
      %s108 = sphi 0, %s105
      %s109 = sphi 0, %s108
      %s125 = sphi 0, %s109
    $region4: #{fem_forward.17} parent=1 // loop_header_branch
      %14 = sbr.rel (%p12) target = $region8
    $region5: #{fem_forward.17} parent=1 // loop_body
      %s16 = ssub.s32 %s11, 1
      %s17 = ssub.s32 %s11, 2
      %s24 = sadd.s32 1, %s19
      %p25 = scmp.ge.s32.totalorder %s24, 1
      %s26 = scalar_select %p25, 0, %s24
      %s27 = sadd.s32 1, %s18
      %s28 = scalar_select %p25, %s27, %s18
      %p29 = scmp.ge.s32.totalorder %s28, 2
      %s30 = scalar_select %p29, 0, %s28
      %s32 = sadd.s32 %s31, 1
      %p35 = scmp.eq.s32.totalorder %s11, 1
      %p36 = scmp.ne.s32.totalorder %s31, %s33
      %p37 = scmp.eq.s32.totalorder %s11, 0
      %p38 = por %p36, %p37
      %p39 = scmp.ne.s32.totalorder %s31, %s33
      %p40 = scmp.eq.s32.totalorder %s16, 1
      %p41 = por %p39, %p40
      %p42 = scmp.ne.s32.totalorder %s33, %s34
      %p43 = scmp.eq.s32.totalorder %s16, 0
      %p44 = por %p42, %p43
      %p45 = scmp.ne.s32.totalorder %s33, %s34
      %p46 = scmp.eq.s32.totalorder %s17, 1
      %p47 = por %p45, %p46
      %p49 = scmp.ne.s32.totalorder %s34, %s48
      %p50 = scmp.eq.s32.totalorder %s17, 0
      %p51 = por %p49, %p50
      %s53 = sadd.s32 %s52, 1
      %p56 = scmp.eq.s32.totalorder %s11, 1
      %p57 = scmp.ne.s32.totalorder %s52, %s54
      %p58 = scmp.eq.s32.totalorder %s11, 0
      %p59 = por %p57, %p58
      %p60 = scmp.ne.s32.totalorder %s52, %s54
      %p61 = scmp.eq.s32.totalorder %s16, 1
      %p62 = por %p60, %p61
      %p63 = scmp.ne.s32.totalorder %s54, %s55
      %p64 = scmp.eq.s32.totalorder %s16, 0
      %p65 = por %p63, %p64
      %p66 = scmp.ne.s32.totalorder %s54, %s55
      %p67 = scmp.eq.s32.totalorder %s17, 1
      %p68 = por %p66, %p67
      %p70 = scmp.ne.s32.totalorder %s55, %s69
      %p71 = scmp.eq.s32.totalorder %s17, 0
      %p72 = por %p70, %p71
      %s73 = ssub.s32 %s18, %s30
      %s74 = ssub.s32 %s19, %s26
      %s75 = sor.u32 %s73, %s74
      %p76 = scmp.eq.s32.totalorder %s75, 0
      %s78 = sadd.s32 %s77, 1
      %s79 = scalar_select %p76, %s77, %s78
      %p82 = pneg %p76
      %p83 = scmp.eq.s32.totalorder %s11, 1
      %p84 = por %p82, %p83
      %p85 = scmp.ne.s32.totalorder %s77, %s80
      %p86 = scmp.eq.s32.totalorder %s11, 0
      %p87 = por %p85, %p86
      %p88 = scmp.ne.s32.totalorder %s77, %s80
      %p89 = scmp.eq.s32.totalorder %s16, 1
      %p90 = por %p88, %p89
      %p91 = scmp.ne.s32.totalorder %s80, %s81
      %p92 = scmp.eq.s32.totalorder %s16, 0
      %p93 = por %p91, %p92
      %p94 = scmp.ne.s32.totalorder %s80, %s81
      %p95 = scmp.eq.s32.totalorder %s17, 1
      %p96 = por %p94, %p95
      %p98 = scmp.ne.s32.totalorder %s81, %s97
      %p99 = scmp.eq.s32.totalorder %s17, 0
      %p100 = por %p98, %p99
      %s101 = ssub.s32 %s18, %s30
      %s102 = ssub.s32 %s19, %s26
      %s103 = sor.u32 %s101, %s102
      %p104 = scmp.eq.s32.totalorder %s103, 0
      %s106 = sadd.s32 %s105, 1
      %s107 = scalar_select %p104, %s105, %s106
      %p110 = pneg %p104
      %p111 = scmp.eq.s32.totalorder %s11, 1
      %p112 = por %p110, %p111
      %p113 = scmp.ne.s32.totalorder %s105, %s108
      %p114 = scmp.eq.s32.totalorder %s11, 0
      %p115 = por %p113, %p114
      %p116 = scmp.ne.s32.totalorder %s105, %s108
      %p117 = scmp.eq.s32.totalorder %s16, 1
      %p118 = por %p116, %p117
      %p119 = scmp.ne.s32.totalorder %s108, %s109
      %p120 = scmp.eq.s32.totalorder %s16, 0
      %p121 = por %p119, %p120
      %p122 = scmp.ne.s32.totalorder %s108, %s109
      %p123 = scmp.eq.s32.totalorder %s17, 1
      %p124 = por %p122, %p123
      %p126 = scmp.ne.s32.totalorder %s109, %s125
      %p127 = scmp.eq.s32.totalorder %s17, 0
      %p128 = por %p126, %p127
      %p129 = scmp.le.s32.totalorder 1, %s11
      %p130 = scmp.lt.s32.totalorder %s11, 3
      %p131 = pnand %p129, %p130
      %p132 = pneg %p131
      // Predicated region
      $region9: #{fem_forward.17} parent=5 // pred_check
        _
      $region10: #{fem_forward.17} parent=5 // pred_check_branch
        %134 = sbr.rel (%p131) target = $region12
      $region11: #{fem_forward.17} parent=5 // pred_region
        %s135 = ssub.s32 %s11, 1
        // Predicated region
        $region13: #{fem_forward.17} parent=11 // pred_check
          %p136 = pneg %p44
        $region14: #{fem_forward.17} parent=11 // pred_check_branch
          %138 = sbr.rel (%p136) target = $region16
        $region15: #{fem_forward.17} parent=11 // pred_region
          %s140 = ssub.s32 64, 64
          %141 = vsyncadd [#allocation3], %s140
          %s143 = sshll.u32 %s0, 4
          %s144 = int_to_ptr.vmem [resolvable:$true] %s143
          %146 = dma.vmem_to_smem %s144, 64, [#allocation2], [#allocation3]
        $region16: #{fem_forward.17} parent=11 // pred_fallthru
          _
        // Predicated region
        $region17: #{fem_forward.17} parent=11 // pred_check
          %p147 = pneg %p65
        $region18: #{fem_forward.17} parent=11 // pred_check_branch
          %149 = sbr.rel (%p147) target = $region20
        $region19: #{fem_forward.17} parent=11 // pred_region
          %s151 = ssub.s32 64, 64
          %152 = vsyncadd [#allocation5], %s151
          %s154 = sshll.u32 %s1, 4
          %s155 = int_to_ptr.vmem [resolvable:$true] %s154
          %157 = dma.vmem_to_smem %s155, 64, [#allocation4], [#allocation5]
        $region20: #{fem_forward.17} parent=11 // pred_fallthru
          _
      $region12: #{fem_forward.17} parent=5 // pred_fallthru
        _
      %p158 = scmp.lt.s32.totalorder %s11, 2
      // Predicated region
      $region21: #{fem_forward.17} parent=5 // pred_check
        %p159 = pneg %p158
      $region22: #{fem_forward.17} parent=5 // pred_check_branch
        %161 = sbr.rel (%p159) target = $region24
      $region23: #{fem_forward.17} parent=5 // pred_region
        // Predicated region
        $region25: #{fem_forward.17} parent=23 // pred_check
          %p162 = pneg %p87
        $region26: #{fem_forward.17} parent=23 // pred_check_branch
          %164 = sbr.rel (%p162) target = $region28
        $region27: #{fem_forward.17} parent=23 // pred_region
          %s165 = smul.u32 4, %s19
          %p166 = scmp.lt.s32.totalorder %s18, 1
          %s167 = scalar_select %p166, %s18, 1
          %p168 = scmp.lt.s32.totalorder %s165, 3
          %s169 = scalar_select %p168, %s165, 3
          %s170 = smul.addr %s169, 3
          %s171 = smul.addr %s167, 12
          %s172 = sadd.s32 %s170, %s171
          %s173 = smul.addr %s172, 4
          %s174 = scalar_lea.vmem %s2, %s173
          %s175 = smul.u32 4, %s19
        $region28: #{fem_forward.17} parent=23 // pred_fallthru
          _
      $region24: #{fem_forward.17} parent=5 // pred_fallthru
        _
      %p176 = scmp.le.s32.totalorder 1, %s11
      %p177 = scmp.lt.s32.totalorder %s11, 3
      %p178 = pnand %p176, %p177
      %p179 = pneg %p178
      // Predicated region
      $region29: #{fem_forward.17} parent=5 // pred_check
        _
      $region30: #{fem_forward.17} parent=5 // pred_check_branch
        %181 = sbr.rel (%p178) target = $region32
      $region31: #{fem_forward.17} parent=5 // pred_region
        %s182 = ssub.s32 %s11, 1
        // Predicated region
        $region33: #{fem_forward.17} parent=31 // pred_check
          %p183 = pneg %p44
        $region34: #{fem_forward.17} parent=31 // pred_check_branch
          %185 = sbr.rel (%p183) target = $region36
        $region35: #{fem_forward.17} parent=31 // pred_region
          %186 = dma.done [#allocation3], 64
        $region36: #{fem_forward.17} parent=31 // pred_fallthru
          _
        // Predicated region
        $region37: #{fem_forward.17} parent=31 // pred_check
          %p187 = pneg %p65
        $region38: #{fem_forward.17} parent=31 // pred_check_branch
          %189 = sbr.rel (%p187) target = $region40
        $region39: #{fem_forward.17} parent=31 // pred_region
          %190 = dma.done [#allocation5], 64
        $region40: #{fem_forward.17} parent=31 // pred_fallthru
          _
        %191 = sfence
        %p192 = pneg %p44
        %p193 = pneg %p41
        %p194 = pneg %p65
        %p195 = pneg %p62
        %s196 = smul.u32 4, %s21
        %p197 = scmp.lt.s32.totalorder %s20, 1
        %s198 = scalar_select %p197, %s20, 1
        %p199 = scmp.lt.s32.totalorder %s196, 3
        %s200 = scalar_select %p199, %s196, 3
        %s201 = smul.addr %s200, 3
        %s202 = smul.addr %s198, 12
        %s203 = sadd.s32 %s201, %s202
        %s204 = smul.addr %s203, 4
        %s205 = scalar_lea.vmem %s2, %s204
        %p206 = pneg %p93
        %p207 = pneg %p90
        %p208 = pneg %p121
        %p209 = pneg %p118
        %s210 = smul.u32 4, %s21
        %p211 = scmp.lt.s32.totalorder %s20, 1
        %s212 = scalar_select %p211, %s20, 1
        %p213 = scmp.lt.s32.totalorder %s210, 3
        %s214 = scalar_select %p213, %s210, 3
        %s215 = smul.addr %s214, 2
        %s216 = smul.addr %s212, 8
        %s217 = sadd.s32 %s215, %s216
        %s218 = smul.addr %s217, 4
        %s219 = scalar_lea.vmem %s3, %s218
        %s220 = smul.u32 4, %s21
        %p221 = scmp.lt.s32.totalorder %s20, 1
        %s222 = scalar_select %p221, %s20, 1
        %p223 = scmp.lt.s32.totalorder %s220, 3
        %s224 = scalar_select %p223, %s220, 3
        %s225 = smul.addr %s224, 3
        %s226 = smul.addr %s222, 12
        %s227 = sadd.s32 %s225, %s226
        %s228 = smul.addr %s227, 4
        %s229 = scalar_lea.vmem %s2, %s228
        %s230 = smul.u32 4, %s21
        %s231 = smul.u32 4, %s21
        %p232 = scmp.lt.s32.totalorder %s20, 1
        %s233 = scalar_select %p232, %s20, 1
        %p234 = scmp.lt.s32.totalorder %s231, 3
        %s235 = scalar_select %p234, %s231, 3
        %s236 = smul.addr %s235, 2
        %s237 = smul.addr %s233, 8
        %s238 = sadd.s32 %s236, %s237
        %s239 = smul.addr %s238, 4
        %s240 = scalar_lea.vmem %s3, %s239
        %s241 = smul.u32 4, %s21
        %s242 = smul.u32 %s21, 4
        %s243 = smul.u32 %s242, 128
        %s244 = sld [smem:[#allocation2 + %s243]]
        %v245 = vld [vmem:[%s229] sm:$0xf]
        %v246 = vld [vmem:[%s229 + $0x4] sm:$0xf]
        %v247 = vunpack.c.l.bf16 %v245
        %v248 = vunpack.c.l.bf16 %v246
        %v249 = vstv %s244
        %v250 = vmul.f32 %v249, %v247
        %v251 = vmul.f32 %v249, %v248
        %s252 = sadd.s32 %s243, 1
        %s253 = sld [smem:[#allocation2 + %s252]]
        %v254 = vstv %s253
        %v255 = vmul.f32 %v254, %v247
        %v256 = vmul.f32 %v254, %v248
        %259 = vrot.lane.b32.xlu0 %v255, 127
        %v260 = vpop.permute.xlu0 %259
        %261 = vrot.lane.b32.xlu0 %v256, 127
        %v262 = vpop.permute.xlu0 %261
        %v265 = vadd.f32 %v250, %v260
        %v266 = vadd.f32 %v251, %v262
        %s267 = sadd.s32 %s243, 2
        %s268 = sld [smem:[#allocation2 + %s267]]
        %v269 = vstv %s268
        %v270 = vmul.f32 %v269, %v247
        %v271 = vmul.f32 %v269, %v248
        %274 = vrot.lane.b32.xlu0 %v270, 126
        %v275 = vpop.permute.xlu0 %274
        %276 = vrot.lane.b32.xlu0 %v271, 126
        %v277 = vpop.permute.xlu0 %276
        %v280 = vadd.f32 %v265, %v275
        %v281 = vadd.f32 %v266, %v277
        %s282 = sadd.s32 %s243, 3
        %s283 = sld [smem:[#allocation2 + %s282]]
        %v284 = vld [vmem:[%s229] sm:$0xf]
        %v285 = vld [vmem:[%s229 + $0x4] sm:$0xf]
        %v286 = vld [vmem:[%s229 + $0x8] sm:$0x1]
        %v287 = vunpack.c.l.bf16 %v284
        %v288 = vunpack.c.l.bf16 %v285
        %v289 = vunpack.c.l.bf16 %v286
        %v290 = vstv %s283
        %v291 = vmul.f32 %v290, %v287
        %v292 = vmul.f32 %v290, %v288
        %v293 = vmul.f32 %v290, %v289
        %vm297 = vcmask 1046528
        %v298 = vrot.slane %v291, 1
        %v299 = vrot.slane %v292, 1
        %v300 = vsel %vm297, %v298, %v299
        %v301 = vrot.slane %v293, 1
        %v302 = vsel %vm297, %v299, %v301
        %v305 = vadd.f32 %v280, %v300
        %v306 = vadd.f32 %v281, %v302
        %s307 = sadd.s32 %s243, 4
        %s308 = sld [smem:[#allocation2 + %s307]]
        %v309 = vstv %s308
        %v310 = vmul.f32 %v309, %v287
        %v311 = vmul.f32 %v309, %v288
        %v312 = vmul.f32 %v309, %v289
        %v316 = vrot.slane %v310, 1
        %v317 = vrot.slane %v311, 1
        %v318 = vsel %vm297, %v316, %v317
        %v319 = vrot.slane %v312, 1
        %v320 = vsel %vm297, %v317, %v319
        %321 = vrot.lane.b32.xlu0 %v318, 127
        %v322 = vpop.permute.xlu0 %321
        %323 = vrot.lane.b32.xlu0 %v320, 127
        %v324 = vpop.permute.xlu0 %323
        %v327 = vadd.f32 %v305, %v322
        %v328 = vadd.f32 %v306, %v324
        %s329 = sadd.s32 %s243, 5
        %s330 = sld [smem:[#allocation2 + %s329]]
        %v331 = vstv %s330
        %v332 = vmul.f32 %v331, %v287
        %v333 = vmul.f32 %v331, %v288
        %v334 = vmul.f32 %v331, %v289
        %v338 = vrot.slane %v332, 1
        %v339 = vrot.slane %v333, 1
        %v340 = vsel %vm297, %v338, %v339
        %v341 = vrot.slane %v334, 1
        %v342 = vsel %vm297, %v339, %v341
        %343 = vrot.lane.b32.xlu0 %v340, 126
        %v344 = vpop.permute.xlu0 %343
        %345 = vrot.lane.b32.xlu0 %v342, 126
        %v346 = vpop.permute.xlu0 %345
        %v349 = vadd.f32 %v327, %v344
        %v350 = vadd.f32 %v328, %v346
        %s351 = sadd.s32 %s243, 6
        %s352 = sld [smem:[#allocation2 + %s351]]
        %v353 = vld [vmem:[%s229] sm:$0xe]
        %v354 = vunpack.c.l.bf16 %v353
        %v355 = vstv %s352
        %v356 = vmul.f32 %v355, %v354
        %v357 = vmul.f32 %v355, %v288
        %v358 = vmul.f32 %v355, %v289
        %vm362 = vcmask 1045504
        %v363 = vrot.slane %v356, 2
        %v364 = vrot.slane %v357, 2
        %v365 = vsel %vm362, %v363, %v364
        %v366 = vrot.slane %v358, 2
        %v367 = vsel %vm362, %v364, %v366
        %v370 = vadd.f32 %v349, %v365
        %v371 = vadd.f32 %v350, %v367
        %s372 = sadd.s32 %s243, 7
        %s373 = sld [smem:[#allocation2 + %s372]]
        %v374 = vstv %s373
        %v375 = vmul.f32 %v374, %v354
        %v376 = vmul.f32 %v374, %v288
        %v377 = vmul.f32 %v374, %v289
        %v381 = vrot.slane %v375, 2
        %v382 = vrot.slane %v376, 2
        %v383 = vsel %vm362, %v381, %v382
        %v384 = vrot.slane %v377, 2
        %v385 = vsel %vm362, %v382, %v384
        %386 = vrot.lane.b32.xlu0 %v383, 127
        %v387 = vpop.permute.xlu0 %386
        %388 = vrot.lane.b32.xlu0 %v385, 127
        %v389 = vpop.permute.xlu0 %388
        %v392 = vadd.f32 %v370, %v387
        %v393 = vadd.f32 %v371, %v389
        %s394 = sadd.s32 %s243, 8
        %s395 = sld [smem:[#allocation2 + %s394]]
        %v396 = vstv %s395
        %v397 = vmul.f32 %v396, %v354
        %v398 = vmul.f32 %v396, %v288
        %v399 = vmul.f32 %v396, %v289
        %v403 = vrot.slane %v397, 2
        %v404 = vrot.slane %v398, 2
        %v405 = vsel %vm362, %v403, %v404
        %v406 = vrot.slane %v399, 2
        %v407 = vsel %vm362, %v404, %v406
        %408 = vrot.lane.b32.xlu0 %v405, 126
        %v409 = vpop.permute.xlu0 %408
        %410 = vrot.lane.b32.xlu0 %v407, 126
        %v411 = vpop.permute.xlu0 %410
        %v414 = vadd.f32 %v392, %v409
        %v415 = vadd.f32 %v393, %v411
        %s416 = sld [smem:[#allocation4 + %s243]]
        %v417 = vstv %s416
        %v418 = vadd.f32 %v414, %v417
        %v419 = vadd.f32 %v415, %v417
        %s420 = sld [smem:[#allocation4 + %s252]]
        %vm421 = vcmp.gt.f32.partialorder %v418, 0.0
        %vm422 = vcmp.gt.f32.partialorder %v419, 0.0
        %v423 = vstv %s420
        %v424 = vmul.f32 %v423, %v418
        %v425 = vmul.f32 %v423, %v419
        %v426 = vsel %vm421, %v418, %v424
        %v427 = vsel %vm422, %v419, %v425
        %v428 = vpack.c.bf16 %v427, %v426
        %v430 = vunpack.c.l.b16 %v428
        %v431 = vunpack.c.h.b16 %v428
        %v432 = vpack.c.b16 %v430, %v430
        %v433 = vpack.c.b16 %v431, %v431
        %vm436 = vcmask 125952
        %437 = vst.msk [vmem:[%s240] sm:$0xf] %vm436, %v432
        %438 = vst.msk [vmem:[%s240 + $0x4] sm:$0xf] %vm436, %v433
        %s439 = sadd.s32 %s242, 1
        %s440 = smul.u32 %s439, 128
        %s441 = sld [smem:[#allocation2 + %s440]]
        %s442 = scalar_lea.vmem %s229, 12
        %v443 = vld [vmem:[%s442] sm:$0xf]
        %v444 = vld [vmem:[%s442 + $0x4] sm:$0xf]
        %v445 = vunpack.c.l.bf16 %v443
        %v446 = vunpack.c.l.bf16 %v444
        %v447 = vstv %s441
        %v448 = vmul.f32 %v447, %v445
        %v449 = vmul.f32 %v447, %v446
        %s450 = sadd.s32 %s440, 1
        %s451 = sld [smem:[#allocation2 + %s450]]
        %v452 = vstv %s451
        %v453 = vmul.f32 %v452, %v445
        %v454 = vmul.f32 %v452, %v446
        %457 = vrot.lane.b32.xlu0 %v453, 127
        %v458 = vpop.permute.xlu0 %457
        %459 = vrot.lane.b32.xlu0 %v454, 127
        %v460 = vpop.permute.xlu0 %459
        %v463 = vadd.f32 %v448, %v458
        %v464 = vadd.f32 %v449, %v460
        %s465 = sadd.s32 %s440, 2
        %s466 = sld [smem:[#allocation2 + %s465]]
        %v467 = vstv %s466
        %v468 = vmul.f32 %v467, %v445
        %v469 = vmul.f32 %v467, %v446
        %472 = vrot.lane.b32.xlu0 %v468, 126
        %v473 = vpop.permute.xlu0 %472
        %474 = vrot.lane.b32.xlu0 %v469, 126
        %v475 = vpop.permute.xlu0 %474
        %v478 = vadd.f32 %v463, %v473
        %v479 = vadd.f32 %v464, %v475
        %s480 = sadd.s32 %s440, 3
        %s481 = sld [smem:[#allocation2 + %s480]]
        %v482 = vld [vmem:[%s442] sm:$0xf]
        %v483 = vld [vmem:[%s442 + $0x4] sm:$0xf]
        %v484 = vld [vmem:[%s442 + $0x8] sm:$0x1]
        %v485 = vunpack.c.l.bf16 %v482
        %v486 = vunpack.c.l.bf16 %v483
        %v487 = vunpack.c.l.bf16 %v484
        %v488 = vstv %s481
        %v489 = vmul.f32 %v488, %v485
        %v490 = vmul.f32 %v488, %v486
        %v491 = vmul.f32 %v488, %v487
        %v495 = vrot.slane %v489, 1
        %v496 = vrot.slane %v490, 1
        %v497 = vsel %vm297, %v495, %v496
        %v498 = vrot.slane %v491, 1
        %v499 = vsel %vm297, %v496, %v498
        %v502 = vadd.f32 %v478, %v497
        %v503 = vadd.f32 %v479, %v499
        %s504 = sadd.s32 %s440, 4
        %s505 = sld [smem:[#allocation2 + %s504]]
        %v506 = vstv %s505
        %v507 = vmul.f32 %v506, %v485
        %v508 = vmul.f32 %v506, %v486
        %v509 = vmul.f32 %v506, %v487
        %v513 = vrot.slane %v507, 1
        %v514 = vrot.slane %v508, 1
        %v515 = vsel %vm297, %v513, %v514
        %v516 = vrot.slane %v509, 1
        %v517 = vsel %vm297, %v514, %v516
        %518 = vrot.lane.b32.xlu0 %v515, 127
        %v519 = vpop.permute.xlu0 %518
        %520 = vrot.lane.b32.xlu0 %v517, 127
        %v521 = vpop.permute.xlu0 %520
        %v524 = vadd.f32 %v502, %v519
        %v525 = vadd.f32 %v503, %v521
        %s526 = sadd.s32 %s440, 5
        %s527 = sld [smem:[#allocation2 + %s526]]
        %v528 = vstv %s527
        %v529 = vmul.f32 %v528, %v485
        %v530 = vmul.f32 %v528, %v486
        %v531 = vmul.f32 %v528, %v487
        %v535 = vrot.slane %v529, 1
        %v536 = vrot.slane %v530, 1
        %v537 = vsel %vm297, %v535, %v536
        %v538 = vrot.slane %v531, 1
        %v539 = vsel %vm297, %v536, %v538
        %540 = vrot.lane.b32.xlu0 %v537, 126
        %v541 = vpop.permute.xlu0 %540
        %542 = vrot.lane.b32.xlu0 %v539, 126
        %v543 = vpop.permute.xlu0 %542
        %v546 = vadd.f32 %v524, %v541
        %v547 = vadd.f32 %v525, %v543
        %s548 = sadd.s32 %s440, 6
        %s549 = sld [smem:[#allocation2 + %s548]]
        %v550 = vld [vmem:[%s442] sm:$0xe]
        %v551 = vunpack.c.l.bf16 %v550
        %v552 = vstv %s549
        %v553 = vmul.f32 %v552, %v551
        %v554 = vmul.f32 %v552, %v486
        %v555 = vmul.f32 %v552, %v487
        %v559 = vrot.slane %v553, 2
        %v560 = vrot.slane %v554, 2
        %v561 = vsel %vm362, %v559, %v560
        %v562 = vrot.slane %v555, 2
        %v563 = vsel %vm362, %v560, %v562
        %v566 = vadd.f32 %v546, %v561
        %v567 = vadd.f32 %v547, %v563
        %s568 = sadd.s32 %s440, 7
        %s569 = sld [smem:[#allocation2 + %s568]]
        %v570 = vstv %s569
        %v571 = vmul.f32 %v570, %v551
        %v572 = vmul.f32 %v570, %v486
        %v573 = vmul.f32 %v570, %v487
        %v577 = vrot.slane %v571, 2
        %v578 = vrot.slane %v572, 2
        %v579 = vsel %vm362, %v577, %v578
        %v580 = vrot.slane %v573, 2
        %v581 = vsel %vm362, %v578, %v580
        %582 = vrot.lane.b32.xlu0 %v579, 127
        %v583 = vpop.permute.xlu0 %582
        %584 = vrot.lane.b32.xlu0 %v581, 127
        %v585 = vpop.permute.xlu0 %584
        %v588 = vadd.f32 %v566, %v583
        %v589 = vadd.f32 %v567, %v585
        %s590 = sadd.s32 %s440, 8
        %s591 = sld [smem:[#allocation2 + %s590]]
        %v592 = vstv %s591
        %v593 = vmul.f32 %v592, %v551
        %v594 = vmul.f32 %v592, %v486
        %v595 = vmul.f32 %v592, %v487
        %v599 = vrot.slane %v593, 2
        %v600 = vrot.slane %v594, 2
        %v601 = vsel %vm362, %v599, %v600
        %v602 = vrot.slane %v595, 2
        %v603 = vsel %vm362, %v600, %v602
        %604 = vrot.lane.b32.xlu0 %v601, 126
        %v605 = vpop.permute.xlu0 %604
        %606 = vrot.lane.b32.xlu0 %v603, 126
        %v607 = vpop.permute.xlu0 %606
        %v610 = vadd.f32 %v588, %v605
        %v611 = vadd.f32 %v589, %v607
        %s612 = sld [smem:[#allocation4 + %s440]]
        %v613 = vstv %s612
        %v614 = vadd.f32 %v610, %v613
        %v615 = vadd.f32 %v611, %v613
        %s616 = sld [smem:[#allocation4 + %s450]]
        %vm617 = vcmp.gt.f32.partialorder %v614, 0.0
        %vm618 = vcmp.gt.f32.partialorder %v615, 0.0
        %v619 = vstv %s616
        %v620 = vmul.f32 %v619, %v614
        %v621 = vmul.f32 %v619, %v615
        %v622 = vsel %vm617, %v614, %v620
        %v623 = vsel %vm618, %v615, %v621
        %v624 = vpack.c.bf16 %v623, %v622
        %v626 = vunpack.c.l.b16 %v624
        %v627 = vunpack.c.h.b16 %v624
        %v628 = vpack.c.b16 %v626, %v626
        %v629 = vpack.c.b16 %v627, %v627
        %s632 = scalar_lea.vmem %s240, 8
        %633 = vst.msk [vmem:[%s632] sm:$0xf] %vm436, %v628
        %634 = vst.msk [vmem:[%s632 + $0x4] sm:$0xf] %vm436, %v629
        %s635 = sadd.s32 %s242, 2
        %s636 = smul.u32 %s635, 128
        %s637 = sld [smem:[#allocation2 + %s636]]
        %s638 = scalar_lea.vmem %s229, 24
        %v639 = vld [vmem:[%s638] sm:$0xf]
        %v640 = vld [vmem:[%s638 + $0x4] sm:$0xf]
        %v641 = vunpack.c.l.bf16 %v639
        %v642 = vunpack.c.l.bf16 %v640
        %v643 = vstv %s637
        %v644 = vmul.f32 %v643, %v641
        %v645 = vmul.f32 %v643, %v642
        %s646 = sadd.s32 %s636, 1
        %s647 = sld [smem:[#allocation2 + %s646]]
        %v648 = vstv %s647
        %v649 = vmul.f32 %v648, %v641
        %v650 = vmul.f32 %v648, %v642
        %653 = vrot.lane.b32.xlu0 %v649, 127
        %v654 = vpop.permute.xlu0 %653
        %655 = vrot.lane.b32.xlu0 %v650, 127
        %v656 = vpop.permute.xlu0 %655
        %v659 = vadd.f32 %v644, %v654
        %v660 = vadd.f32 %v645, %v656
        %s661 = sadd.s32 %s636, 2
        %s662 = sld [smem:[#allocation2 + %s661]]
        %v663 = vstv %s662
        %v664 = vmul.f32 %v663, %v641
        %v665 = vmul.f32 %v663, %v642
        %668 = vrot.lane.b32.xlu0 %v664, 126
        %v669 = vpop.permute.xlu0 %668
        %670 = vrot.lane.b32.xlu0 %v665, 126
        %v671 = vpop.permute.xlu0 %670
        %v674 = vadd.f32 %v659, %v669
        %v675 = vadd.f32 %v660, %v671
        %s676 = sadd.s32 %s636, 3
        %s677 = sld [smem:[#allocation2 + %s676]]
        %v678 = vld [vmem:[%s638] sm:$0xf]
        %v679 = vld [vmem:[%s638 + $0x4] sm:$0xf]
        %v680 = vld [vmem:[%s638 + $0x8] sm:$0x1]
        %v681 = vunpack.c.l.bf16 %v678
        %v682 = vunpack.c.l.bf16 %v679
        %v683 = vunpack.c.l.bf16 %v680
        %v684 = vstv %s677
        %v685 = vmul.f32 %v684, %v681
        %v686 = vmul.f32 %v684, %v682
        %v687 = vmul.f32 %v684, %v683
        %v691 = vrot.slane %v685, 1
        %v692 = vrot.slane %v686, 1
        %v693 = vsel %vm297, %v691, %v692
        %v694 = vrot.slane %v687, 1
        %v695 = vsel %vm297, %v692, %v694
        %v698 = vadd.f32 %v674, %v693
        %v699 = vadd.f32 %v675, %v695
        %s700 = sadd.s32 %s636, 4
        %s701 = sld [smem:[#allocation2 + %s700]]
        %v702 = vstv %s701
        %v703 = vmul.f32 %v702, %v681
        %v704 = vmul.f32 %v702, %v682
        %v705 = vmul.f32 %v702, %v683
        %v709 = vrot.slane %v703, 1
        %v710 = vrot.slane %v704, 1
        %v711 = vsel %vm297, %v709, %v710
        %v712 = vrot.slane %v705, 1
        %v713 = vsel %vm297, %v710, %v712
        %714 = vrot.lane.b32.xlu0 %v711, 127
        %v715 = vpop.permute.xlu0 %714
        %716 = vrot.lane.b32.xlu0 %v713, 127
        %v717 = vpop.permute.xlu0 %716
        %v720 = vadd.f32 %v698, %v715
        %v721 = vadd.f32 %v699, %v717
        %s722 = sadd.s32 %s636, 5
        %s723 = sld [smem:[#allocation2 + %s722]]
        %v724 = vstv %s723
        %v725 = vmul.f32 %v724, %v681
        %v726 = vmul.f32 %v724, %v682
        %v727 = vmul.f32 %v724, %v683
        %v731 = vrot.slane %v725, 1
        %v732 = vrot.slane %v726, 1
        %v733 = vsel %vm297, %v731, %v732
        %v734 = vrot.slane %v727, 1
        %v735 = vsel %vm297, %v732, %v734
        %736 = vrot.lane.b32.xlu0 %v733, 126
        %v737 = vpop.permute.xlu0 %736
        %738 = vrot.lane.b32.xlu0 %v735, 126
        %v739 = vpop.permute.xlu0 %738
        %v742 = vadd.f32 %v720, %v737
        %v743 = vadd.f32 %v721, %v739
        %s744 = sadd.s32 %s636, 6
        %s745 = sld [smem:[#allocation2 + %s744]]
        %v746 = vld [vmem:[%s638] sm:$0xe]
        %v747 = vunpack.c.l.bf16 %v746
        %v748 = vstv %s745
        %v749 = vmul.f32 %v748, %v747
        %v750 = vmul.f32 %v748, %v682
        %v751 = vmul.f32 %v748, %v683
        %v755 = vrot.slane %v749, 2
        %v756 = vrot.slane %v750, 2
        %v757 = vsel %vm362, %v755, %v756
        %v758 = vrot.slane %v751, 2
        %v759 = vsel %vm362, %v756, %v758
        %v762 = vadd.f32 %v742, %v757
        %v763 = vadd.f32 %v743, %v759
        %s764 = sadd.s32 %s636, 7
        %s765 = sld [smem:[#allocation2 + %s764]]
        %v766 = vstv %s765
        %v767 = vmul.f32 %v766, %v747
        %v768 = vmul.f32 %v766, %v682
        %v769 = vmul.f32 %v766, %v683
        %v773 = vrot.slane %v767, 2
        %v774 = vrot.slane %v768, 2
        %v775 = vsel %vm362, %v773, %v774
        %v776 = vrot.slane %v769, 2
        %v777 = vsel %vm362, %v774, %v776
        %778 = vrot.lane.b32.xlu0 %v775, 127
        %v779 = vpop.permute.xlu0 %778
        %780 = vrot.lane.b32.xlu0 %v777, 127
        %v781 = vpop.permute.xlu0 %780
        %v784 = vadd.f32 %v762, %v779
        %v785 = vadd.f32 %v763, %v781
        %s786 = sadd.s32 %s636, 8
        %s787 = sld [smem:[#allocation2 + %s786]]
        %v788 = vstv %s787
        %v789 = vmul.f32 %v788, %v747
        %v790 = vmul.f32 %v788, %v682
        %v791 = vmul.f32 %v788, %v683
        %v795 = vrot.slane %v789, 2
        %v796 = vrot.slane %v790, 2
        %v797 = vsel %vm362, %v795, %v796
        %v798 = vrot.slane %v791, 2
        %v799 = vsel %vm362, %v796, %v798
        %800 = vrot.lane.b32.xlu0 %v797, 126
        %v801 = vpop.permute.xlu0 %800
        %802 = vrot.lane.b32.xlu0 %v799, 126
        %v803 = vpop.permute.xlu0 %802
        %v806 = vadd.f32 %v784, %v801
        %v807 = vadd.f32 %v785, %v803
        %s808 = sld [smem:[#allocation4 + %s636]]
        %v809 = vstv %s808
        %v810 = vadd.f32 %v806, %v809
        %v811 = vadd.f32 %v807, %v809
        %s812 = sld [smem:[#allocation4 + %s646]]
        %vm813 = vcmp.gt.f32.partialorder %v810, 0.0
        %vm814 = vcmp.gt.f32.partialorder %v811, 0.0
        %v815 = vstv %s812
        %v816 = vmul.f32 %v815, %v810
        %v817 = vmul.f32 %v815, %v811
        %v818 = vsel %vm813, %v810, %v816
        %v819 = vsel %vm814, %v811, %v817
        %v820 = vpack.c.bf16 %v819, %v818
        %v822 = vunpack.c.l.b16 %v820
        %v823 = vunpack.c.h.b16 %v820
        %v824 = vpack.c.b16 %v822, %v822
        %v825 = vpack.c.b16 %v823, %v823
        %s828 = scalar_lea.vmem %s240, 16
        %829 = vst.msk [vmem:[%s828] sm:$0xf] %vm436, %v824
        %830 = vst.msk [vmem:[%s828 + $0x4] sm:$0xf] %vm436, %v825
        %s831 = sadd.s32 %s242, 3
        %s832 = smul.u32 %s831, 128
        %s833 = sld [smem:[#allocation2 + %s832]]
        %s834 = scalar_lea.vmem %s229, 36
        %v835 = vld [vmem:[%s834] sm:$0xf]
        %v836 = vld [vmem:[%s834 + $0x4] sm:$0xf]
        %v837 = vunpack.c.l.bf16 %v835
        %v838 = vunpack.c.l.bf16 %v836
        %v839 = vstv %s833
        %v840 = vmul.f32 %v839, %v837
        %v841 = vmul.f32 %v839, %v838
        %s842 = sadd.s32 %s832, 1
        %s843 = sld [smem:[#allocation2 + %s842]]
        %v844 = vstv %s843
        %v845 = vmul.f32 %v844, %v837
        %v846 = vmul.f32 %v844, %v838
        %849 = vrot.lane.b32.xlu0 %v845, 127
        %v850 = vpop.permute.xlu0 %849
        %851 = vrot.lane.b32.xlu0 %v846, 127
        %v852 = vpop.permute.xlu0 %851
        %v855 = vadd.f32 %v840, %v850
        %v856 = vadd.f32 %v841, %v852
        %s857 = sadd.s32 %s832, 2
        %s858 = sld [smem:[#allocation2 + %s857]]
        %v859 = vstv %s858
        %v860 = vmul.f32 %v859, %v837
        %v861 = vmul.f32 %v859, %v838
        %864 = vrot.lane.b32.xlu0 %v860, 126
        %v865 = vpop.permute.xlu0 %864
        %866 = vrot.lane.b32.xlu0 %v861, 126
        %v867 = vpop.permute.xlu0 %866
        %v870 = vadd.f32 %v855, %v865
        %v871 = vadd.f32 %v856, %v867
        %s872 = sadd.s32 %s832, 3
        %s873 = sld [smem:[#allocation2 + %s872]]
        %v874 = vld [vmem:[%s834] sm:$0xf]
        %v875 = vld [vmem:[%s834 + $0x4] sm:$0xf]
        %v876 = vld [vmem:[%s834 + $0x8] sm:$0x1]
        %v877 = vunpack.c.l.bf16 %v874
        %v878 = vunpack.c.l.bf16 %v875
        %v879 = vunpack.c.l.bf16 %v876
        %v880 = vstv %s873
        %v881 = vmul.f32 %v880, %v877
        %v882 = vmul.f32 %v880, %v878
        %v883 = vmul.f32 %v880, %v879
        %v887 = vrot.slane %v881, 1
        %v888 = vrot.slane %v882, 1
        %v889 = vsel %vm297, %v887, %v888
        %v890 = vrot.slane %v883, 1
        %v891 = vsel %vm297, %v888, %v890
        %v894 = vadd.f32 %v870, %v889
        %v895 = vadd.f32 %v871, %v891
        %s896 = sadd.s32 %s832, 4
        %s897 = sld [smem:[#allocation2 + %s896]]
        %v898 = vstv %s897
        %v899 = vmul.f32 %v898, %v877
        %v900 = vmul.f32 %v898, %v878
        %v901 = vmul.f32 %v898, %v879
        %v905 = vrot.slane %v899, 1
        %v906 = vrot.slane %v900, 1
        %v907 = vsel %vm297, %v905, %v906
        %v908 = vrot.slane %v901, 1
        %v909 = vsel %vm297, %v906, %v908
        %910 = vrot.lane.b32.xlu0 %v907, 127
        %v911 = vpop.permute.xlu0 %910
        %912 = vrot.lane.b32.xlu0 %v909, 127
        %v913 = vpop.permute.xlu0 %912
        %v916 = vadd.f32 %v894, %v911
        %v917 = vadd.f32 %v895, %v913
        %s918 = sadd.s32 %s832, 5
        %s919 = sld [smem:[#allocation2 + %s918]]
        %v920 = vstv %s919
        %v921 = vmul.f32 %v920, %v877
        %v922 = vmul.f32 %v920, %v878
        %v923 = vmul.f32 %v920, %v879
        %v927 = vrot.slane %v921, 1
        %v928 = vrot.slane %v922, 1
        %v929 = vsel %vm297, %v927, %v928
        %v930 = vrot.slane %v923, 1
        %v931 = vsel %vm297, %v928, %v930
        %932 = vrot.lane.b32.xlu0 %v929, 126
        %v933 = vpop.permute.xlu0 %932
        %934 = vrot.lane.b32.xlu0 %v931, 126
        %v935 = vpop.permute.xlu0 %934
        %v938 = vadd.f32 %v916, %v933
        %v939 = vadd.f32 %v917, %v935
        %s940 = sadd.s32 %s832, 6
        %s941 = sld [smem:[#allocation2 + %s940]]
        %v942 = vld [vmem:[%s834] sm:$0xe]
        %v943 = vunpack.c.l.bf16 %v942
        %v944 = vstv %s941
        %v945 = vmul.f32 %v944, %v943
        %v946 = vmul.f32 %v944, %v878
        %v947 = vmul.f32 %v944, %v879
        %v951 = vrot.slane %v945, 2
        %v952 = vrot.slane %v946, 2
        %v953 = vsel %vm362, %v951, %v952
        %v954 = vrot.slane %v947, 2
        %v955 = vsel %vm362, %v952, %v954
        %v958 = vadd.f32 %v938, %v953
        %v959 = vadd.f32 %v939, %v955
        %s960 = sadd.s32 %s832, 7
        %s961 = sld [smem:[#allocation2 + %s960]]
        %v962 = vstv %s961
        %v963 = vmul.f32 %v962, %v943
        %v964 = vmul.f32 %v962, %v878
        %v965 = vmul.f32 %v962, %v879
        %v969 = vrot.slane %v963, 2
        %v970 = vrot.slane %v964, 2
        %v971 = vsel %vm362, %v969, %v970
        %v972 = vrot.slane %v965, 2
        %v973 = vsel %vm362, %v970, %v972
        %974 = vrot.lane.b32.xlu0 %v971, 127
        %v975 = vpop.permute.xlu0 %974
        %976 = vrot.lane.b32.xlu0 %v973, 127
        %v977 = vpop.permute.xlu0 %976
        %v980 = vadd.f32 %v958, %v975
        %v981 = vadd.f32 %v959, %v977
        %s982 = sadd.s32 %s832, 8
        %s983 = sld [smem:[#allocation2 + %s982]]
        %v984 = vstv %s983
        %v985 = vmul.f32 %v984, %v943
        %v986 = vmul.f32 %v984, %v878
        %v987 = vmul.f32 %v984, %v879
        %v991 = vrot.slane %v985, 2
        %v992 = vrot.slane %v986, 2
        %v993 = vsel %vm362, %v991, %v992
        %v994 = vrot.slane %v987, 2
        %v995 = vsel %vm362, %v992, %v994
        %996 = vrot.lane.b32.xlu0 %v993, 126
        %v997 = vpop.permute.xlu0 %996
        %998 = vrot.lane.b32.xlu0 %v995, 126
        %v999 = vpop.permute.xlu0 %998
        %v1002 = vadd.f32 %v980, %v997
        %v1003 = vadd.f32 %v981, %v999
        %s1004 = sld [smem:[#allocation4 + %s832]]
        %v1005 = vstv %s1004
        %v1006 = vadd.f32 %v1002, %v1005
        %v1007 = vadd.f32 %v1003, %v1005
        %s1008 = sld [smem:[#allocation4 + %s842]]
        %vm1009 = vcmp.gt.f32.partialorder %v1006, 0.0
        %vm1010 = vcmp.gt.f32.partialorder %v1007, 0.0
        %v1011 = vstv %s1008
        %v1012 = vmul.f32 %v1011, %v1006
        %v1013 = vmul.f32 %v1011, %v1007
        %v1014 = vsel %vm1009, %v1006, %v1012
        %v1015 = vsel %vm1010, %v1007, %v1013
        %v1016 = vpack.c.bf16 %v1015, %v1014
        %v1018 = vunpack.c.l.b16 %v1016
        %v1019 = vunpack.c.h.b16 %v1016
        %v1020 = vpack.c.b16 %v1018, %v1018
        %v1021 = vpack.c.b16 %v1019, %v1019
        %s1024 = scalar_lea.vmem %s240, 24
        %1025 = vst.msk [vmem:[%s1024] sm:$0xf] %vm436, %v1020
        %1026 = vst.msk [vmem:[%s1024 + $0x4] sm:$0xf] %vm436, %v1021
        %s1027 = smul.u32 4, %s21
        %p1028 = scmp.lt.s32.totalorder %s20, 1
        %s1029 = scalar_select %p1028, %s20, 1
        %p1030 = scmp.lt.s32.totalorder %s1027, 3
        %s1031 = scalar_select %p1030, %s1027, 3
        %s1032 = smul.addr %s1031, 2
        %s1033 = smul.addr %s1029, 8
        %s1034 = sadd.s32 %s1032, %s1033
        %s1035 = smul.addr %s1034, 4
        %s1036 = scalar_lea.vmem %s3, %s1035
        // Predicated region
        $region41: #{fem_forward.17} parent=31 // pred_check
          %p1037 = pneg %p118
        $region42: #{fem_forward.17} parent=31 // pred_check_branch
          %1039 = sbr.rel (%p1037) target = $region44
        $region43: #{fem_forward.17} parent=31 // pred_region
          %s1040 = smul.u32 4, %s21
        $region44: #{fem_forward.17} parent=31 // pred_fallthru
          _
      $region32: #{fem_forward.17} parent=5 // pred_fallthru
        _
      %p1041 = scmp.le.s32.totalorder 2, %s11
      // Predicated region
      $region45: #{fem_forward.17} parent=5 // pred_check
        %p1042 = pneg %p1041
      $region46: #{fem_forward.17} parent=5 // pred_check_branch
        %1044 = sbr.rel (%p1042) target = $region48
      $region47: #{fem_forward.17} parent=5 // pred_region
        %s1045 = ssub.s32 %s11, 2
        // Predicated region
        $region49: #{fem_forward.17} parent=47 // pred_check
          %p1046 = pneg %p124
        $region50: #{fem_forward.17} parent=47 // pred_check_branch
          %1048 = sbr.rel (%p1046) target = $region52
        $region51: #{fem_forward.17} parent=47 // pred_region
          %s1049 = smul.u32 4, %s23
          %p1050 = scmp.lt.s32.totalorder %s22, 1
          %s1051 = scalar_select %p1050, %s22, 1
          %p1052 = scmp.lt.s32.totalorder %s1049, 3
          %s1053 = scalar_select %p1052, %s1049, 3
          %s1054 = smul.addr %s1053, 2
          %s1055 = smul.addr %s1051, 8
          %s1056 = sadd.s32 %s1054, %s1055
          %s1057 = smul.addr %s1056, 4
          %s1058 = scalar_lea.vmem %s3, %s1057
        $region52: #{fem_forward.17} parent=47 // pred_fallthru
          _
      $region48: #{fem_forward.17} parent=5 // pred_fallthru
        _
    $region6: #{fem_forward.17} parent=1 // loop_footer
      %s15 = sadd.s32 1, %s11
    $region7: #{fem_forward.17} parent=1 // loop_footer_branch
      %10 = sbr.rel target = $region3
    $region8: #{fem_forward.17} parent=1 // loop_exit
      _
    %1059 = vsyncpa [#allocation3], 1
    %s1060 = scalar_lea.sflag [#allocation3], 1
    %1061 = vsyncpa %s1060, 1
    %1062 = vsyncpa [#allocation5], 1

</llo_original>
